<compile_context>
chip_gen: v7x
topology: tpu7x:2x2x1
jax: 0.10.0
libtpu: 0.0.40
codegen_flags: <defaults>
</compile_context>

<pallas_src>
import functools

import jax
import jax.numpy as jnp
from jax.experimental import pallas as pl
from jax.experimental.pallas import tpu as pltpu

# cfgs.* loss weights (the original reads a global config); fixed constants.
LAMBDA_HMS = 100.0
LAMBDA_MASK = 1.0
LAMBDA_DP = 1.0
LAMBDA_JOINTS = 1.0

# Synthetic sub-module widths (128-multiples so every vmatmul / vst is dense).
CF = 128                  # feature channels
DG = 128                  # global-feature width
HEAD_W = 128              # fused encoder head width (42 hms + 2 mask + 3 dp = 47 real)
JOINTS_W = 128            # decoder joint head width (126 real)
CIN_PAD = 8               # stem input channels padded 3 -> 8
N_HMS, N_MASK, N_DP = 42, 2, 3
N_JOINTS = 21

# bf16 interchange + bf16 MXU inputs, f32 accumulation everywhere.  Applied on
# all generations (v5e MXU is bf16-native too; every pipeline stage is HBM-bound).
COMPUTE_DTYPE = jnp.bfloat16      # matmul-input / stored-weight dtype
ACT_DTYPE = jnp.bfloat16          # HBM interchange dtype for big activations

_VMEM = pl.BlockSpec(memory_space=pltpu.MemorySpace.VMEM)
_SMEM = pl.BlockSpec(memory_space=pltpu.MemorySpace.SMEM)


# ----------------------------------------------------------------------------
# Kernel 1: fused encoder + mid_model (+ in-kernel image-loss partial sums)
# ----------------------------------------------------------------------------
def _fused_encmid_kernel(*refs, with_loss, bs_half, inv_hw):
    """stem -> hms_f/dp_f -> heads, fuse-conv, pool-accumulate, fc.

    Grid is (B, HW // row_tile).  Per-batch quantities (pooled mean,
    global_feature, loss column sums) live in their batch-resident output
    blocks and are finalized under pl.when(last row tile).  feat / hms_f /
    dp_f never leave VMEM.
    """
    if with_loss:
        (x_ref, ws, bst, whf, bhf, wdf, bdf, wha, whb, bhd,
         wf1, wf2, wf3, bfu, wfc, bfc, tgt_ref,
         heads_ref, fused_ref, gf_ref, pooled_ref, lsq_ref, labs_ref) = refs
    else:
        (x_ref, ws, bst, whf, bhf, wdf, bdf, wha, whb, bhd,
         wf1, wf2, wf3, bfu, wfc, bfc,
         heads_ref, fused_ref, gf_ref, pooled_ref) = refs

    b = pl.program_id(0)
    j = pl.program_id(1)
    n_rt = pl.num_programs(1)

    x = x_ref[0]                                                   # (rt, CIN_PAD) f32
    feat = jnp.maximum(
        jnp.dot(x, ws[...], preferred_element_type=jnp.float32) + bst[...], 0.0)
    feat_c = feat.astype(COMPUTE_DTYPE)
    hms_f = jnp.maximum(
        jnp.dot(feat_c, whf[...], preferred_element_type=jnp.float32) + bhf[...], 0.0)
    dp_f = jnp.maximum(
        jnp.dot(feat_c, wdf[...], preferred_element_type=jnp.float32) + bdf[...], 0.0)
    hms_c = hms_f.astype(COMPUTE_DTYPE)
    dp_c = dp_f.astype(COMPUTE_DTYPE)
    # Fused encoder heads: hms/mask columns fed by hms_f, dp columns by dp_f,
    # remaining lanes exactly zero (weight pad columns must stay zero).
    heads = (jnp.dot(hms_c, wha[...], preferred_element_type=jnp.float32)
             + jnp.dot(dp_c, whb[...], preferred_element_type=jnp.float32)
             + bhd[...])
    # mid_model fuse-conv: concat([feat, hms_f, dp_f]) @ W == 3 block matmuls.
    fused = jnp.maximum(
        jnp.dot(feat_c, wf1[...], preferred_element_type=jnp.float32)
        + jnp.dot(hms_c, wf2[...], preferred_element_type=jnp.float32)
        + jnp.dot(dp_c, wf3[...], preferred_element_type=jnp.float32)
        + bfu[...], 0.0)

    heads_ref[0] = heads.astype(heads_ref.dtype)
    fused_ref[0] = fused.astype(fused_ref.dtype)

    # Global mean pool accumulated into the batch-resident pooled block
    # (XLU sublane reduce; no pool matrix, no second pass over `fused`).
    @pl.when(j == 0)
    def _():
        pooled_ref[...] = jnp.zeros_like(pooled_ref)
    pooled_ref[0] += jnp.sum(fused, axis=0, keepdims=True)

    if with_loss:
        # Per-lane image-loss partial sums while `heads` is still VMEM-resident
        # (f32 accumulator, so bf16 interchange does not touch loss numerics).
        @pl.when(j == 0)
        def _():
            lsq_ref[...] = jnp.zeros_like(lsq_ref)
            labs_ref[...] = jnp.zeros_like(labs_ref)

        @pl.when(b < bs_half)
        def _():
            d = heads - tgt_ref[0]
            lsq_ref[0] += jnp.sum(d * d, axis=0, keepdims=True)
            labs_ref[0] += jnp.sum(jnp.abs(d), axis=0, keepdims=True)

    # Finalize this batch element: mean pool + fc (global_feature).
    @pl.when(j == n_rt - 1)
    def _():
        pooled_mean = pooled_ref[0] * inv_hw                        # (1, CF)
        pooled_ref[0] = pooled_mean
        gf = jnp.maximum(
            jnp.dot(pooled_mean.astype(COMPUTE_DTYPE), wfc[...],
                    preferred_element_type=jnp.float32) + bfc[...], 0.0)
        gf_ref[0] = gf


def _pick_row_tile(hw, cap):
    """Largest divisor of hw that is a multiple of 16 (bf16 sublane pack) <= cap."""
    best = None
    for rt in range(16, min(hw, cap) + 1, 16):
        if hw % rt == 0:
            best = rt
    if best is None:
        raise ValueError(f"H*W={hw}: need a divisor that is a multiple of 16 and <= {cap}")
    return best


def fused_encoder_mid(enc, mid, img, tgt_heads=None, *, row_tile_cap=1024):
    """One pallas_call for encoder + mid_model (+ train image-loss col-sums)."""
    total_batch, cin, h, w = img.shape
    hw = h * w
    rt = _pick_row_tile(hw, row_tile_cap)
    n_rt = hw // rt
    with_loss = tgt_heads is not None

    # Single cheap layout transform of the tiny input; channels padded to 8 so
    # the stem load is not 3-of-128-lane sparse.
    x = jnp.transpose(img, (0, 2, 3, 1)).reshape(total_batch, hw, cin)
    x = jnp.pad(x.astype(jnp.float32), ((0, 0), (0, 0), (0, CIN_PAD - cin)))

    def row_block(c):
        return pl.BlockSpec((1, rt, c), lambda b, j: (b, j, 0))

    def resident(a):       # weights / biases: fetched once, stay VMEM-resident
        return pl.BlockSpec(a.shape, lambda b, j: (0,) * a.ndim)

    def per_batch(c):      # (B, 1, c) outputs, one resident block per batch element
        return pl.BlockSpec((1, 1, c), lambda b, j: (b, 0, 0))

    params = [enc.w_stem, enc.b_stem, enc.w_hms_f, enc.b_hms_f,
              enc.w_dp_f, enc.b_dp_f, enc.w_head_a, enc.w_head_b, enc.b_head,
              mid.w_f1, mid.w_f2, mid.w_f3, mid.b_fuse, mid.w_fc, mid.b_fc]
    args = [x] + params
    in_specs = [row_block(CIN_PAD)] + [resident(p) for p in params]
    out_shapes = [jax.ShapeDtypeStruct((total_batch, hw, HEAD_W), ACT_DTYPE),
                  jax.ShapeDtypeStruct((total_batch, hw, CF), ACT_DTYPE),
                  jax.ShapeDtypeStruct((total_batch, 1, DG), jnp.float32),
                  jax.ShapeDtypeStruct((total_batch, 1, CF), jnp.float32)]
    out_specs = [row_block(HEAD_W), row_block(CF), per_batch(DG), per_batch(CF)]
    if with_loss:
        args.append(tgt_heads)
        in_specs.append(row_block(HEAD_W))
        out_shapes += [jax.ShapeDtypeStruct((total_batch, 1, HEAD_W), jnp.float32)] * 2
        out_specs += [per_batch(HEAD_W), per_batch(HEAD_W)]

    outs = pl.pallas_call(
        functools.partial(_fused_encmid_kernel, with_loss=with_loss,
                          bs_half=total_batch // 2, inv_hw=1.0 / hw),
        out_shape=tuple(out_shapes),
        grid_spec=pltpu.PrefetchScalarGridSpec(
            num_scalar_prefetch=0,
            grid=(total_batch, n_rt),
            in_specs=in_specs,
            out_specs=tuple(out_specs)),
        compiler_params=pltpu.CompilerParams(
            # Batch axis parallel (megacore / v7x 2xTC); row axis carries the
            # per-batch accumulators so it must stay arbitrary.
            dimension_semantics=("parallel", "arbitrary"),
            # Explicit headroom, comfortably below v7x's 64 MiB physical VMEM.
            vmem_limit_bytes=48 * 1024 * 1024),
    )(*args)

    heads, fused, gf, pooled = outs[:4]
    gf = gf.reshape(total_batch, DG)
    pooled = pooled.reshape(total_batch, CF)
    if with_loss:
        return (heads, fused, gf, pooled,
                outs[4].reshape(total_batch, HEAD_W),
                outs[5].reshape(total_batch, HEAD_W))
    return heads, fused, gf, pooled


# ----------------------------------------------------------------------------
# Kernel 2: decoder (joint head from global_feature + pooled fmap) + joints MSE
# ----------------------------------------------------------------------------
def _decoder_kernel(*refs, with_loss, nj3):
    if with_loss:
        gf_ref, pooled_ref, wg_ref, wp_ref, b_ref, tgt_ref, joints_ref, loss_ref = refs
    else:
        gf_ref, pooled_ref, wg_ref, wp_ref, b_ref, joints_ref = refs
    # concat([gf, pooled]) @ W  ==  gf @ Wg + pooled @ Wp  (no concat needed)
    joints = (jnp.dot(gf_ref[...], wg_ref[...], preferred_element_type=jnp.float32)
              + jnp.dot(pooled_ref[...], wp_ref[...], preferred_element_type=jnp.float32)
              + b_ref[...])
    joints_ref[...] = joints
    if with_loss:
        d = joints - tgt_ref[...]
        sq = d * d
        col = jax.lax.broadcasted_iota(jnp.int32, sq.shape, 1)
        loss_ref[0, 0] = jnp.sum(jnp.where(col < nj3, sq, 0.0))
        loss_ref[0, 1] = jnp.sum(jnp.where((col >= nj3) & (col < 2 * nj3), sq, 0.0))


# ----------------------------------------------------------------------------
# Synthetic sub-modules (the originals are injected black boxes)
# ----------------------------------------------------------------------------
def _init_w(key, cin, cout, scale=0.05, dtype=jnp.float32):
    return (scale * jax.random.normal(key, (cin, cout), jnp.float32)).astype(dtype)


class Encoder:
    """Parameters for stem -> hms_f/dp_f -> fused 128-wide heads (run in kernel 1)."""

    def __init__(self, key, cin=3, cf=CF):
        ks = jax.random.split(key, 6)
        w_stem = _init_w(ks[0], cin, cf)
        # Channel-pad the stem weight to CIN_PAD; pad rows are zero.
        self.w_stem = jnp.zeros((CIN_PAD, cf), jnp.float32).at[:cin].set(w_stem)
        self.b_stem = jnp.zeros((1, cf), jnp.float32)
        self.w_hms_f = _init_w(ks[1], cf, cf, dtype=COMPUTE_DTYPE)
        self.b_hms_f = jnp.zeros((1, cf), jnp.float32)
        self.w_dp_f = _init_w(ks[2], cf, cf, dtype=COMPUTE_DTYPE)
        self.b_dp_f = jnp.zeros((1, cf), jnp.float32)
        # Heads fused into one lane-dense 128-wide output: cols 0..41 hms,
        # 42..43 mask, 44..46 dp.  Pad columns MUST stay zero (the in-kernel
        # image-loss column sums rely on it).
        wa = jnp.zeros((cf, HEAD_W), jnp.float32)
        wa = wa.at[:, :N_HMS].set(_init_w(ks[3], cf, N_HMS))
        wa = wa.at[:, N_HMS:N_HMS + N_MASK].set(_init_w(ks[4], cf, N_MASK))
        wb = jnp.zeros((cf, HEAD_W), jnp.float32)
        wb = wb.at[:, N_HMS + N_MASK:N_HMS + N_MASK + N_DP].set(_init_w(ks[5], cf, N_DP))
        self.w_head_a = wa.astype(COMPUTE_DTYPE)    # fed by hms_f
        self.w_head_b = wb.astype(COMPUTE_DTYPE)    # fed by dp_f
        self.b_head = jnp.zeros((1, HEAD_W), jnp.float32)


class MidModel:
    """Parameters for fuse 1x1-conv + global mean pool + fc (run in kernel 1)."""

    def __init__(self, key, cf=CF, dg=DG):
        ks = jax.random.split(key, 4)
        self.w_f1 = _init_w(ks[0], cf, cf, dtype=COMPUTE_DTYPE)
        self.w_f2 = _init_w(ks[1], cf, cf, dtype=COMPUTE_DTYPE)
        self.w_f3 = _init_w(ks[2], cf, cf, dtype=COMPUTE_DTYPE)
        self.b_fuse = jnp.zeros((1, cf), jnp.float32)
        self.w_fc = _init_w(ks[3], cf, dg, dtype=COMPUTE_DTYPE)
        self.b_fc = jnp.zeros((1, dg), jnp.float32)


class Decoder:
    """Joint head on [global_feature ++ pooled fmap]; joints MSE sums in-kernel.

    Consumes the (bs, CF) pooled features produced by the fused encoder+mid
    kernel instead of re-reading and re-pooling the full feature map."""

    def __init__(self, key, cf=CF, dg=DG, n_joints=N_JOINTS):
        self.n_joints = n_joints
        out_real = n_joints * 3 * 2                # 126 real cols, padded to 128
        k1, k2 = jax.random.split(key)
        self.w_g = jnp.zeros((dg, JOINTS_W), jnp.float32).at[:, :out_real].set(
            _init_w(k1, dg, out_real))
        self.w_p = jnp.zeros((cf, JOINTS_W), jnp.float32).at[:, :out_real].set(
            _init_w(k2, cf, out_real))
        self.b = jnp.zeros((1, JOINTS_W), jnp.float32)

    def __call__(self, global_feature, pooled, target, *args):
        if len(args) == 2:
            # TODO(synk): cliff path — bbox_info conditioning not implemented;
            # falls through to the plain decoder.
            _bbox_info, mode = args
        else:
            (mode,) = args
        bs = global_feature.shape[0]
        nj = self.n_joints
        nj3 = nj * 3
        if mode == "train":
            tgt = jnp.zeros((bs, JOINTS_W), jnp.float32)
            tgt = tgt.at[:, :nj3].set(
                target["left"]["joints3d"].reshape(bs, nj3).astype(jnp.float32))
            tgt = tgt.at[:, nj3:2 * nj3].set(
                target["right"]["joints3d"].reshape(bs, nj3).astype(jnp.float32))
            joints, loss_sums = pl.pallas_call(
                functools.partial(_decoder_kernel, with_loss=True, nj3=nj3),
                out_shape=(jax.ShapeDtypeStruct((bs, JOINTS_W), jnp.float32),
                           jax.ShapeDtypeStruct((1, 2), jnp.float32)),
                in_specs=[_VMEM] * 6,
                out_specs=(_VMEM, _SMEM),
            )(global_feature, pooled, self.w_g, self.w_p, self.b, tgt)
        else:
            joints = pl.pallas_call(
                functools.partial(_decoder_kernel, with_loss=False, nj3=nj3),
                out_shape=jax.ShapeDtypeStruct((bs, JOINTS_W), jnp.float32),
                in_specs=[_VMEM] * 5,
                out_specs=_VMEM,
            )(global_feature, pooled, self.w_g, self.w_p, self.b)
        pred_left = joints[:, :nj3].reshape(bs, nj, 3)
        pred_right = joints[:, nj3:2 * nj3].reshape(bs, nj, 3)
        result = {"joints3d_left": pred_left, "joints3d_right": pred_right}
        if mode == "train":
            cnt = jnp.float32(bs * nj3)
            result["joints"] = LAMBDA_JOINTS * (loss_sums[0, 0] / cnt
                                                + loss_sums[0, 1] / cnt)
        return result


# ----------------------------------------------------------------------------
# Host-side helpers
# ----------------------------------------------------------------------------
def _pack_image_targets(target, batch_size, total_batch, h, w):
    """Channels-last packed image-loss targets aligned with the heads layout.

    Columns: 0..20 left hms, 21..41 right hms, 42 left mask, 43 right mask,
    44..46 left dense, 47..127 zero.  Rows b >= batch_size are zero padding
    (the kernel gates their accumulation with pl.when)."""
    hw = h * w

    def to_flat(t):
        t = t[:batch_size].astype(jnp.float32)
        return jnp.transpose(t, (0, 2, 3, 1)).reshape(batch_size, hw, t.shape[1])

    packed = jnp.concatenate(
        [to_flat(target["left"]["hms"]), to_flat(target["right"]["hms"]),
         to_flat(target["left"]["mask"]), to_flat(target["right"]["mask"]),
         to_flat(target["left"]["dense"])], axis=-1)
    return jnp.pad(packed, ((0, total_batch - batch_size), (0, 0),
                            (0, HEAD_W - packed.shape[-1])))


# ----------------------------------------------------------------------------
# HandNET_GCN forward (mirrors the PyTorch module)
# ----------------------------------------------------------------------------
class HandNET_GCN:
    def __init__(self, encoder, mid_model, decoder, cliff, row_tile_cap=1024):
        self.encoder = encoder
        self.mid_model = mid_model
        self.decoder = decoder
        self.cliff = cliff
        self.row_tile_cap = row_tile_cap

    def forward(self, oriimg, target, otherinfo, mode):
        img = oriimg["img"]
        total_batch, _, h, w = img.shape
        batch_size = total_batch // 2
        hw = h * w
        train = mode == "train"

        tgt_heads = (_pack_image_targets(target, batch_size, total_batch, h, w)
                     if train else None)
        outs = fused_encoder_mid(self.encoder, self.mid_model, img, tgt_heads,
                                 row_tile_cap=self.row_tile_cap)
        if train:
            heads, fused, global_feature, pooled, loss_sq, loss_abs = outs
        else:
            heads, fused, global_feature, pooled = outs
        # `heads` holds (hms|mask|dp) channels-last for parity with the original
        # encoder outputs; the train losses were already accumulated in-kernel,
        # so nothing downstream re-reads it.
        del heads
        fmaps = [fused]                       # (B, H*W, CF) channels-last, bf16

        if self.cliff:
            bbox_info = oriimg["bbox_info"]
            result = self.decoder(global_feature, pooled, target, bbox_info, mode)
        elif mode == "train":
            for hand in ("left", "right"):
                for k in ("joints3d", "verts3d", "joints2d", "mano_pose",
                          "mano_shape"):
                    target[hand][k] = target[hand][k][:batch_size]
            for i in range(len(fmaps)):
                fmaps[i] = fmaps[i][:batch_size]
            # NOTE: the decoder consumes the per-batch pooled features directly
            # (mathematically the pool of fmaps[0][:batch_size]); the original
            # code's `fmaps[:batch_size]` list-slicing quirk is therefore moot.
            result = self.decoder(global_feature[:batch_size],
                                  pooled[:batch_size], target, mode)
        else:
            result = self.decoder(global_feature, pooled, target, mode)

        if mode == "train":
            sq = loss_sq[:batch_size]                       # (bs, 128) col sums
            ab = loss_abs[:batch_size]
            n_hms = jnp.float32(batch_size * (N_HMS // 2) * hw)
            n_msk = jnp.float32(batch_size * 1 * hw)
            n_dp = jnp.float32(batch_size * N_DP * hw)
            result["hms"] = LAMBDA_HMS * (jnp.sum(sq[:, :21]) / n_hms
                                          + jnp.sum(sq[:, 21:42]) / n_hms)
            result["mask"] = LAMBDA_MASK * (jnp.sum(sq[:, 42]) / n_msk
                                            + jnp.sum(sq[:, 43]) / n_msk)
            result["dense"] = LAMBDA_DP * (jnp.sum(ab[:, 44:47]) / n_dp)
        return (result, global_feature, fmaps)

    __call__ = forward


# ----------------------------------------------------------------------------
# Main
# ----------------------------------------------------------------------------
if __name__ == "__main__":
    key = jax.random.PRNGKey(0)
    kimg, kparams, ktgt = jax.random.split(key, 3)

    B, H, W = 4, 16, 16    # interacting-hands convention: true batch = B // 2
    img = jax.random.normal(kimg, (B, 3, H, W), jnp.float32)

    ke, km, kd = jax.random.split(kparams, 3)
    # Small row-tile cap so the toy run exercises the multi-tile (j > 0)
    # accumulation path; production uses the default cap (512-4096 rows).
    net = HandNET_GCN(Encoder(ke), MidModel(km), Decoder(kd), cliff=False,
                      row_tile_cap=128)

    tks = jax.random.split(ktgt, 16)

    def make_hand(ks):
        return {
            "joints3d": jax.random.normal(ks[0], (B, 21, 3), jnp.float32),
            "verts3d": jax.random.normal(ks[1], (B, 50, 3), jnp.float32),
            "joints2d": jax.random.normal(ks[2], (B, 21, 2), jnp.float32),
            "mano_pose": jax.random.normal(ks[3], (B, 48), jnp.float32),
            "mano_shape": jax.random.normal(ks[4], (B, 10), jnp.float32),
            "hms": jax.random.normal(ks[5], (B, 21, H, W), jnp.float32),
            "mask": jax.random.normal(ks[6], (B, 1, H, W), jnp.float32),
            "dense": jax.random.normal(ks[7], (B, 3, H, W), jnp.float32),
        }

    target = {"left": make_hand(tks[:8]), "right": make_hand(tks[8:])}

    result, global_feature, fmaps = net({"img": img}, target, None, "train")
    jax.block_until_ready(result)
    jax.block_until_ready(global_feature)
    jax.block_until_ready(fmaps)

    # Eval path exercises the with_loss=False kernel variant (no image losses).
    eval_result, eval_gf, eval_fmaps = net({"img": img}, target, None, "eval")
    jax.block_until_ready(eval_result)
    jax.block_until_ready(eval_gf)

    print("KERNEL_OK")
</pallas_src>

<mosaic_0001>
module attributes {stable_mosaic.version = 11 : i64} {
  func.func @_fused_encmid_kernel(%arg0: i32, %arg1: i32, %arg2: memref<1x128x8xf32, #tpu.memory_space<vmem>>, %arg3: memref<8x128xf32, #tpu.memory_space<vmem>>, %arg4: memref<1x128xf32, #tpu.memory_space<vmem>>, %arg5: memref<128x128xbf16, #tpu.memory_space<vmem>>, %arg6: memref<1x128xf32, #tpu.memory_space<vmem>>, %arg7: memref<128x128xbf16, #tpu.memory_space<vmem>>, %arg8: memref<1x128xf32, #tpu.memory_space<vmem>>, %arg9: memref<128x128xbf16, #tpu.memory_space<vmem>>, %arg10: memref<128x128xbf16, #tpu.memory_space<vmem>>, %arg11: memref<1x128xf32, #tpu.memory_space<vmem>>, %arg12: memref<128x128xbf16, #tpu.memory_space<vmem>>, %arg13: memref<128x128xbf16, #tpu.memory_space<vmem>>, %arg14: memref<128x128xbf16, #tpu.memory_space<vmem>>, %arg15: memref<1x128xf32, #tpu.memory_space<vmem>>, %arg16: memref<128x128xbf16, #tpu.memory_space<vmem>>, %arg17: memref<1x128xf32, #tpu.memory_space<vmem>>, %arg18: memref<1x128x128xf32, #tpu.memory_space<vmem>>, %arg19: memref<1x128x128xbf16, #tpu.memory_space<vmem>>, %arg20: memref<1x128x128xbf16, #tpu.memory_space<vmem>>, %arg21: memref<1x1x128xf32, #tpu.memory_space<vmem>>, %arg22: memref<1x1x128xf32, #tpu.memory_space<vmem>>, %arg23: memref<1x1x128xf32, #tpu.memory_space<vmem>>, %arg24: memref<1x1x128xf32, #tpu.memory_space<vmem>>) attributes {dimension_semantics = [#tpu.dimension_semantics<parallel>, #tpu.dimension_semantics<arbitrary>], iteration_bounds = array<i64: 4, 2>, scalar_prefetch = 0 : i64, scratch_operands = 0 : i64, tpu.core_type = #tpu.core_type<tc>, window_params = [{transform_indices = @transform_0, window_bounds = array<i64: 1, 128, 8>}, {pipeline_mode = #tpu.pipeline_mode<synchronous>, transform_indices = @transform_1, window_bounds = array<i64: 8, 128>}, {pipeline_mode = #tpu.pipeline_mode<synchronous>, transform_indices = @transform_2, window_bounds = array<i64: 1, 128>}, {pipeline_mode = #tpu.pipeline_mode<synchronous>, transform_indices = @transform_3, window_bounds = array<i64: 128, 128>}, {pipeline_mode = #tpu.pipeline_mode<synchronous>, transform_indices = @transform_4, window_bounds = array<i64: 1, 128>}, {pipeline_mode = #tpu.pipeline_mode<synchronous>, transform_indices = @transform_5, window_bounds = array<i64: 128, 128>}, {pipeline_mode = #tpu.pipeline_mode<synchronous>, transform_indices = @transform_6, window_bounds = array<i64: 1, 128>}, {pipeline_mode = #tpu.pipeline_mode<synchronous>, transform_indices = @transform_7, window_bounds = array<i64: 128, 128>}, {pipeline_mode = #tpu.pipeline_mode<synchronous>, transform_indices = @transform_8, window_bounds = array<i64: 128, 128>}, {pipeline_mode = #tpu.pipeline_mode<synchronous>, transform_indices = @transform_9, window_bounds = array<i64: 1, 128>}, {pipeline_mode = #tpu.pipeline_mode<synchronous>, transform_indices = @transform_10, window_bounds = array<i64: 128, 128>}, {pipeline_mode = #tpu.pipeline_mode<synchronous>, transform_indices = @transform_11, window_bounds = array<i64: 128, 128>}, {pipeline_mode = #tpu.pipeline_mode<synchronous>, transform_indices = @transform_12, window_bounds = array<i64: 128, 128>}, {pipeline_mode = #tpu.pipeline_mode<synchronous>, transform_indices = @transform_13, window_bounds = array<i64: 1, 128>}, {pipeline_mode = #tpu.pipeline_mode<synchronous>, transform_indices = @transform_14, window_bounds = array<i64: 128, 128>}, {pipeline_mode = #tpu.pipeline_mode<synchronous>, transform_indices = @transform_15, window_bounds = array<i64: 1, 128>}, {transform_indices = @transform_16, window_bounds = array<i64: 1, 128, 128>}, {transform_indices = @transform_17, window_bounds = array<i64: 1, 128, 128>}, {transform_indices = @transform_18, window_bounds = array<i64: 1, 128, 128>}, {transform_indices = @transform_19, window_bounds = array<i64: 1, 1, 128>}, {transform_indices = @transform_20, window_bounds = array<i64: 1, 1, 128>}, {transform_indices = @transform_21, window_bounds = array<i64: 1, 1, 128>}, {transform_indices = @transform_22, window_bounds = array<i64: 1, 1, 128>}]} {
    %c0 = arith.constant 0 : index
    %c0_0 = arith.constant 0 : index
    %c0_1 = arith.constant 0 : index
    %0 = vector.load %arg2[%c0, %c0_0, %c0_1] : memref<1x128x8xf32, #tpu.memory_space<vmem>>, vector<1x128x8xf32>
    %1 = vector.shape_cast %0 : vector<1x128x8xf32> to vector<128x8xf32>
    %c0_2 = arith.constant 0 : index
    %c0_3 = arith.constant 0 : index
    %2 = vector.load %arg3[%c0_2, %c0_3] : memref<8x128xf32, #tpu.memory_space<vmem>>, vector<8x128xf32>
    %cst = arith.constant dense<0.000000e+00> : vector<128x128xf32>
    %3 = tpu.matmul %1, %2, %cst {dimension_numbers = #tpu.dot_dimension_numbers<[1], [0], [0], [1], [0, 0, 1, 1], [], []>} : vector<128x8xf32>, vector<8x128xf32>, vector<128x128xf32> -> vector<128x128xf32>
    %c0_4 = arith.constant 0 : index
    %c0_5 = arith.constant 0 : index
    %4 = vector.load %arg4[%c0_4, %c0_5] : memref<1x128xf32, #tpu.memory_space<vmem>>, vector<1x128xf32>
    %5 = vector.broadcast %4 : vector<1x128xf32> to vector<128x128xf32>
    %6 = arith.addf %3, %5 : vector<128x128xf32>
    %cst_6 = arith.constant 0.000000e+00 : f32
    %7 = vector.broadcast %cst_6 : f32 to vector<128x128xf32>
    %8 = arith.maximumf %6, %7 : vector<128x128xf32>
    %9 = arith.truncf %8 : vector<128x128xf32> to vector<128x128xbf16>
    %c0_7 = arith.constant 0 : index
    %c0_8 = arith.constant 0 : index
    %10 = vector.load %arg5[%c0_7, %c0_8] : memref<128x128xbf16, #tpu.memory_space<vmem>>, vector<128x128xbf16>
    %cst_9 = arith.constant dense<0.000000e+00> : vector<128x128xf32>
    %11 = tpu.matmul %9, %10, %cst_9 {dimension_numbers = #tpu.dot_dimension_numbers<[1], [0], [0], [1], [0, 0, 1, 1], [], []>} : vector<128x128xbf16>, vector<128x128xbf16>, vector<128x128xf32> -> vector<128x128xf32>
    %c0_10 = arith.constant 0 : index
    %c0_11 = arith.constant 0 : index
    %12 = vector.load %arg6[%c0_10, %c0_11] : memref<1x128xf32, #tpu.memory_space<vmem>>, vector<1x128xf32>
    %13 = vector.broadcast %12 : vector<1x128xf32> to vector<128x128xf32>
    %14 = arith.addf %11, %13 : vector<128x128xf32>
    %cst_12 = arith.constant 0.000000e+00 : f32
    %15 = vector.broadcast %cst_12 : f32 to vector<128x128xf32>
    %16 = arith.maximumf %14, %15 : vector<128x128xf32>
    %c0_13 = arith.constant 0 : index
    %c0_14 = arith.constant 0 : index
    %17 = vector.load %arg7[%c0_13, %c0_14] : memref<128x128xbf16, #tpu.memory_space<vmem>>, vector<128x128xbf16>
    %cst_15 = arith.constant dense<0.000000e+00> : vector<128x128xf32>
    %18 = tpu.matmul %9, %17, %cst_15 {dimension_numbers = #tpu.dot_dimension_numbers<[1], [0], [0], [1], [0, 0, 1, 1], [], []>} : vector<128x128xbf16>, vector<128x128xbf16>, vector<128x128xf32> -> vector<128x128xf32>
    %c0_16 = arith.constant 0 : index
    %c0_17 = arith.constant 0 : index
    %19 = vector.load %arg8[%c0_16, %c0_17] : memref<1x128xf32, #tpu.memory_space<vmem>>, vector<1x128xf32>
    %20 = vector.broadcast %19 : vector<1x128xf32> to vector<128x128xf32>
    %21 = arith.addf %18, %20 : vector<128x128xf32>
    %cst_18 = arith.constant 0.000000e+00 : f32
    %22 = vector.broadcast %cst_18 : f32 to vector<128x128xf32>
    %23 = arith.maximumf %21, %22 : vector<128x128xf32>
    %24 = arith.truncf %16 : vector<128x128xf32> to vector<128x128xbf16>
    %25 = arith.truncf %23 : vector<128x128xf32> to vector<128x128xbf16>
    %c0_19 = arith.constant 0 : index
    %c0_20 = arith.constant 0 : index
    %26 = vector.load %arg9[%c0_19, %c0_20] : memref<128x128xbf16, #tpu.memory_space<vmem>>, vector<128x128xbf16>
    %cst_21 = arith.constant dense<0.000000e+00> : vector<128x128xf32>
    %27 = tpu.matmul %24, %26, %cst_21 {dimension_numbers = #tpu.dot_dimension_numbers<[1], [0], [0], [1], [0, 0, 1, 1], [], []>} : vector<128x128xbf16>, vector<128x128xbf16>, vector<128x128xf32> -> vector<128x128xf32>
    %c0_22 = arith.constant 0 : index
    %c0_23 = arith.constant 0 : index
    %28 = vector.load %arg10[%c0_22, %c0_23] : memref<128x128xbf16, #tpu.memory_space<vmem>>, vector<128x128xbf16>
    %cst_24 = arith.constant dense<0.000000e+00> : vector<128x128xf32>
    %29 = tpu.matmul %25, %28, %cst_24 {dimension_numbers = #tpu.dot_dimension_numbers<[1], [0], [0], [1], [0, 0, 1, 1], [], []>} : vector<128x128xbf16>, vector<128x128xbf16>, vector<128x128xf32> -> vector<128x128xf32>
    %30 = arith.addf %27, %29 : vector<128x128xf32>
    %c0_25 = arith.constant 0 : index
    %c0_26 = arith.constant 0 : index
    %31 = vector.load %arg11[%c0_25, %c0_26] : memref<1x128xf32, #tpu.memory_space<vmem>>, vector<1x128xf32>
    %32 = vector.broadcast %31 : vector<1x128xf32> to vector<128x128xf32>
    %33 = arith.addf %30, %32 : vector<128x128xf32>
    %c0_27 = arith.constant 0 : index
    %c0_28 = arith.constant 0 : index
    %34 = vector.load %arg12[%c0_27, %c0_28] : memref<128x128xbf16, #tpu.memory_space<vmem>>, vector<128x128xbf16>
    %cst_29 = arith.constant dense<0.000000e+00> : vector<128x128xf32>
    %35 = tpu.matmul %9, %34, %cst_29 {dimension_numbers = #tpu.dot_dimension_numbers<[1], [0], [0], [1], [0, 0, 1, 1], [], []>} : vector<128x128xbf16>, vector<128x128xbf16>, vector<128x128xf32> -> vector<128x128xf32>
    %c0_30 = arith.constant 0 : index
    %c0_31 = arith.constant 0 : index
    %36 = vector.load %arg13[%c0_30, %c0_31] : memref<128x128xbf16, #tpu.memory_space<vmem>>, vector<128x128xbf16>
    %cst_32 = arith.constant dense<0.000000e+00> : vector<128x128xf32>
    %37 = tpu.matmul %24, %36, %cst_32 {dimension_numbers = #tpu.dot_dimension_numbers<[1], [0], [0], [1], [0, 0, 1, 1], [], []>} : vector<128x128xbf16>, vector<128x128xbf16>, vector<128x128xf32> -> vector<128x128xf32>
    %38 = arith.addf %35, %37 : vector<128x128xf32>
    %c0_33 = arith.constant 0 : index
    %c0_34 = arith.constant 0 : index
    %39 = vector.load %arg14[%c0_33, %c0_34] : memref<128x128xbf16, #tpu.memory_space<vmem>>, vector<128x128xbf16>
    %cst_35 = arith.constant dense<0.000000e+00> : vector<128x128xf32>
    %40 = tpu.matmul %25, %39, %cst_35 {dimension_numbers = #tpu.dot_dimension_numbers<[1], [0], [0], [1], [0, 0, 1, 1], [], []>} : vector<128x128xbf16>, vector<128x128xbf16>, vector<128x128xf32> -> vector<128x128xf32>
    %41 = arith.addf %38, %40 : vector<128x128xf32>
    %c0_36 = arith.constant 0 : index
    %c0_37 = arith.constant 0 : index
    %42 = vector.load %arg15[%c0_36, %c0_37] : memref<1x128xf32, #tpu.memory_space<vmem>>, vector<1x128xf32>
    %43 = vector.broadcast %42 : vector<1x128xf32> to vector<128x128xf32>
    %44 = arith.addf %41, %43 : vector<128x128xf32>
    %cst_38 = arith.constant 0.000000e+00 : f32
    %45 = vector.broadcast %cst_38 : f32 to vector<128x128xf32>
    %46 = arith.maximumf %44, %45 : vector<128x128xf32>
    %47 = arith.truncf %33 : vector<128x128xf32> to vector<128x128xbf16>
    %c0_39 = arith.constant 0 : index
    %c0_40 = arith.constant 0 : index
    %c0_41 = arith.constant 0 : index
    %48 = vector.load %arg19[%c0_39, %c0_40, %c0_41] : memref<1x128x128xbf16, #tpu.memory_space<vmem>>, vector<1x128x128xbf16>
    %49 = vector.shape_cast %48 : vector<1x128x128xbf16> to vector<128x128xbf16>
    %50 = vector.shape_cast %47 : vector<128x128xbf16> to vector<1x128x128xbf16>
    tpu.vector_store %arg19[%c0_39, %c0_40, %c0_41], %50 {strides = array<i32>} : memref<1x128x128xbf16, #tpu.memory_space<vmem>>, vector<1x128x128xbf16>,
    %51 = arith.truncf %46 : vector<128x128xf32> to vector<128x128xbf16>
    %c0_42 = arith.constant 0 : index
    %c0_43 = arith.constant 0 : index
    %c0_44 = arith.constant 0 : index
    %52 = vector.load %arg20[%c0_42, %c0_43, %c0_44] : memref<1x128x128xbf16, #tpu.memory_space<vmem>>, vector<1x128x128xbf16>
    %53 = vector.shape_cast %52 : vector<1x128x128xbf16> to vector<128x128xbf16>
    %54 = vector.shape_cast %51 : vector<128x128xbf16> to vector<1x128x128xbf16>
    tpu.vector_store %arg20[%c0_42, %c0_43, %c0_44], %54 {strides = array<i32>} : memref<1x128x128xbf16, #tpu.memory_space<vmem>>, vector<1x128x128xbf16>,
    %c0_i32 = arith.constant 0 : i32
    %55 = arith.cmpi eq, %arg1, %c0_i32 : i32
    %56 = arith.extui %55 : i1 to i32
    %c0_i32_45 = arith.constant 0 : i32
    %57 = arith.cmpi ne, %56, %c0_i32_45 : i32
    scf.if %57 {
      %cst_57 = arith.constant 0.000000e+00 : f32
      %75 = vector.broadcast %cst_57 : f32 to vector<1x1x128xf32>
      %c0_58 = arith.constant 0 : index
      %c0_59 = arith.constant 0 : index
      %c0_60 = arith.constant 0 : index
      %76 = vector.load %arg22[%c0_58, %c0_59, %c0_60] : memref<1x1x128xf32, #tpu.memory_space<vmem>>, vector<1x1x128xf32>
      tpu.vector_store %arg22[%c0_58, %c0_59, %c0_60], %75 {strides = array<i32>} : memref<1x1x128xf32, #tpu.memory_space<vmem>>, vector<1x1x128xf32>,
    } else {
    }
    %c0_46 = arith.constant 0 : index
    %c0_47 = arith.constant 0 : index
    %c0_48 = arith.constant 0 : index
    %58 = vector.load %arg22[%c0_46, %c0_47, %c0_48] : memref<1x1x128xf32, #tpu.memory_space<vmem>>, vector<1x1x128xf32>
    %59 = vector.shape_cast %58 : vector<1x1x128xf32> to vector<1x128xf32>
    %cst_49 = arith.constant dense<0.000000e+00> : vector<128xf32>
    %60 = vector.multi_reduction <add>, %46, %cst_49 [0] : vector<128x128xf32> to vector<128xf32>
    %61 = vector.shape_cast %60 : vector<128xf32> to vector<1x128xf32>
    %62 = arith.addf %59, %61 : vector<1x128xf32>
    %c0_50 = arith.constant 0 : index
    %c0_51 = arith.constant 0 : index
    %c0_52 = arith.constant 0 : index
    %63 = vector.load %arg22[%c0_50, %c0_51, %c0_52] : memref<1x1x128xf32, #tpu.memory_space<vmem>>, vector<1x1x128xf32>
    %64 = vector.shape_cast %63 : vector<1x1x128xf32> to vector<1x128xf32>
    %65 = vector.shape_cast %62 : vector<1x128xf32> to vector<1x1x128xf32>
    tpu.vector_store %arg22[%c0_50, %c0_51, %c0_52], %65 {strides = array<i32>} : memref<1x1x128xf32, #tpu.memory_space<vmem>>, vector<1x1x128xf32>,
    %c0_i32_53 = arith.constant 0 : i32
    %66 = arith.cmpi eq, %arg1, %c0_i32_53 : i32
    %67 = arith.extui %66 : i1 to i32
    %c0_i32_54 = arith.constant 0 : i32
    %68 = arith.cmpi ne, %67, %c0_i32_54 : i32
    scf.if %68 {
      %cst_57 = arith.constant 0.000000e+00 : f32
      %75 = vector.broadcast %cst_57 : f32 to vector<1x1x128xf32>
      %c0_58 = arith.constant 0 : index
      %c0_59 = arith.constant 0 : index
      %c0_60 = arith.constant 0 : index
      %76 = vector.load %arg23[%c0_58, %c0_59, %c0_60] : memref<1x1x128xf32, #tpu.memory_space<vmem>>, vector<1x1x128xf32>
      tpu.vector_store %arg23[%c0_58, %c0_59, %c0_60], %75 {strides = array<i32>} : memref<1x1x128xf32, #tpu.memory_space<vmem>>, vector<1x1x128xf32>,
      %cst_61 = arith.constant 0.000000e+00 : f32
      %77 = vector.broadcast %cst_61 : f32 to vector<1x1x128xf32>
      %c0_62 = arith.constant 0 : index
      %c0_63 = arith.constant 0 : index
      %c0_64 = arith.constant 0 : index
      %78 = vector.load %arg24[%c0_62, %c0_63, %c0_64] : memref<1x1x128xf32, #tpu.memory_space<vmem>>, vector<1x1x128xf32>
      tpu.vector_store %arg24[%c0_62, %c0_63, %c0_64], %77 {strides = array<i32>} : memref<1x1x128xf32, #tpu.memory_space<vmem>>, vector<1x1x128xf32>,
    } else {
    }
    %c2_i32 = arith.constant 2 : i32
    %69 = arith.cmpi slt, %arg0, %c2_i32 : i32
    %70 = arith.extui %69 : i1 to i32
    %c0_i32_55 = arith.constant 0 : i32
    %71 = arith.cmpi ne, %70, %c0_i32_55 : i32
    scf.if %71 {
      %c0_57 = arith.constant 0 : index
      %c0_58 = arith.constant 0 : index
      %c0_59 = arith.constant 0 : index
      %75 = vector.load %arg18[%c0_57, %c0_58, %c0_59] : memref<1x128x128xf32, #tpu.memory_space<vmem>>, vector<1x128x128xf32>
      %76 = vector.shape_cast %75 : vector<1x128x128xf32> to vector<128x128xf32>
      %77 = arith.subf %33, %76 : vector<128x128xf32>
      %c0_60 = arith.constant 0 : index
      %c0_61 = arith.constant 0 : index
      %c0_62 = arith.constant 0 : index
      %78 = vector.load %arg23[%c0_60, %c0_61, %c0_62] : memref<1x1x128xf32, #tpu.memory_space<vmem>>, vector<1x1x128xf32>
      %79 = vector.shape_cast %78 : vector<1x1x128xf32> to vector<1x128xf32>
      %80 = arith.mulf %77, %77 : vector<128x128xf32>
      %cst_63 = arith.constant dense<0.000000e+00> : vector<128xf32>
      %81 = vector.multi_reduction <add>, %80, %cst_63 [0] : vector<128x128xf32> to vector<128xf32>
      %82 = vector.shape_cast %81 : vector<128xf32> to vector<1x128xf32>
      %83 = arith.addf %79, %82 : vector<1x128xf32>
      %c0_64 = arith.constant 0 : index
      %c0_65 = arith.constant 0 : index
      %c0_66 = arith.constant 0 : index
      %84 = vector.load %arg23[%c0_64, %c0_65, %c0_66] : memref<1x1x128xf32, #tpu.memory_space<vmem>>, vector<1x1x128xf32>
      %85 = vector.shape_cast %84 : vector<1x1x128xf32> to vector<1x128xf32>
      %86 = vector.shape_cast %83 : vector<1x128xf32> to vector<1x1x128xf32>
      tpu.vector_store %arg23[%c0_64, %c0_65, %c0_66], %86 {strides = array<i32>} : memref<1x1x128xf32, #tpu.memory_space<vmem>>, vector<1x1x128xf32>,
      %c0_67 = arith.constant 0 : index
      %c0_68 = arith.constant 0 : index
      %c0_69 = arith.constant 0 : index
      %87 = vector.load %arg24[%c0_67, %c0_68, %c0_69] : memref<1x1x128xf32, #tpu.memory_space<vmem>>, vector<1x1x128xf32>
      %88 = vector.shape_cast %87 : vector<1x1x128xf32> to vector<1x128xf32>
      %89 = math.absf %77 : vector<128x128xf32>
      %cst_70 = arith.constant dense<0.000000e+00> : vector<128xf32>
      %90 = vector.multi_reduction <add>, %89, %cst_70 [0] : vector<128x128xf32> to vector<128xf32>
      %91 = vector.shape_cast %90 : vector<128xf32> to vector<1x128xf32>
      %92 = arith.addf %88, %91 : vector<1x128xf32>
      %c0_71 = arith.constant 0 : index
      %c0_72 = arith.constant 0 : index
      %c0_73 = arith.constant 0 : index
      %93 = vector.load %arg24[%c0_71, %c0_72, %c0_73] : memref<1x1x128xf32, #tpu.memory_space<vmem>>, vector<1x1x128xf32>
      %94 = vector.shape_cast %93 : vector<1x1x128xf32> to vector<1x128xf32>
      %95 = vector.shape_cast %92 : vector<1x128xf32> to vector<1x1x128xf32>
      tpu.vector_store %arg24[%c0_71, %c0_72, %c0_73], %95 {strides = array<i32>} : memref<1x1x128xf32, #tpu.memory_space<vmem>>, vector<1x1x128xf32>,
    } else {
    }
    %c1_i32 = arith.constant 1 : i32
    %72 = arith.cmpi eq, %arg1, %c1_i32 : i32
    %73 = arith.extui %72 : i1 to i32
    %c0_i32_56 = arith.constant 0 : i32
    %74 = arith.cmpi ne, %73, %c0_i32_56 : i32
    scf.if %74 {
      %c0_57 = arith.constant 0 : index
      %c0_58 = arith.constant 0 : index
      %c0_59 = arith.constant 0 : index
      %75 = vector.load %arg22[%c0_57, %c0_58, %c0_59] : memref<1x1x128xf32, #tpu.memory_space<vmem>>, vector<1x1x128xf32>
      %76 = vector.shape_cast %75 : vector<1x1x128xf32> to vector<1x128xf32>
      %cst_60 = arith.constant 3.906250e-03 : f32
      %77 = vector.broadcast %cst_60 : f32 to vector<1x128xf32>
      %78 = arith.mulf %76, %77 : vector<1x128xf32>
      %c0_61 = arith.constant 0 : index
      %c0_62 = arith.constant 0 : index
      %c0_63 = arith.constant 0 : index
      %79 = vector.load %arg22[%c0_61, %c0_62, %c0_63] : memref<1x1x128xf32, #tpu.memory_space<vmem>>, vector<1x1x128xf32>
      %80 = vector.shape_cast %79 : vector<1x1x128xf32> to vector<1x128xf32>
      %81 = vector.shape_cast %78 : vector<1x128xf32> to vector<1x1x128xf32>
      tpu.vector_store %arg22[%c0_61, %c0_62, %c0_63], %81 {strides = array<i32>} : memref<1x1x128xf32, #tpu.memory_space<vmem>>, vector<1x1x128xf32>,
      %82 = arith.truncf %78 : vector<1x128xf32> to vector<1x128xbf16>
      %c0_64 = arith.constant 0 : index
      %c0_65 = arith.constant 0 : index
      %83 = vector.load %arg16[%c0_64, %c0_65] : memref<128x128xbf16, #tpu.memory_space<vmem>>, vector<128x128xbf16>
      %cst_66 = arith.constant dense<0.000000e+00> : vector<1x128xf32>
      %84 = tpu.matmul %82, %83, %cst_66 {dimension_numbers = #tpu.dot_dimension_numbers<[1], [0], [0], [1], [0, 0, 1, 1], [], []>} : vector<1x128xbf16>, vector<128x128xbf16>, vector<1x128xf32> -> vector<1x128xf32>
      %c0_67 = arith.constant 0 : index
      %c0_68 = arith.constant 0 : index
      %85 = vector.load %arg17[%c0_67, %c0_68] : memref<1x128xf32, #tpu.memory_space<vmem>>, vector<1x128xf32>
      %86 = arith.addf %84, %85 : vector<1x128xf32>
      %cst_69 = arith.constant 0.000000e+00 : f32
      %87 = vector.broadcast %cst_69 : f32 to vector<1x128xf32>
      %88 = arith.maximumf %86, %87 : vector<1x128xf32>
      %c0_70 = arith.constant 0 : index
      %c0_71 = arith.constant 0 : index
      %c0_72 = arith.constant 0 : index
      %89 = vector.load %arg21[%c0_70, %c0_71, %c0_72] : memref<1x1x128xf32, #tpu.memory_space<vmem>>, vector<1x1x128xf32>
      %90 = vector.shape_cast %89 : vector<1x1x128xf32> to vector<1x128xf32>
      %91 = vector.shape_cast %88 : vector<1x128xf32> to vector<1x1x128xf32>
      tpu.vector_store %arg21[%c0_70, %c0_71, %c0_72], %91 {strides = array<i32>} : memref<1x1x128xf32, #tpu.memory_space<vmem>>, vector<1x1x128xf32>,
    } else {
    }
    return
  }
  func.func @transform_0(%arg0: i32, %arg1: i32) -> (i32, i32, i32) {
    %c0_i32 = arith.constant 0 : i32
    %c0_i32_0 = arith.constant 0 : i32
    return %arg0, %arg1, %c0_i32 : i32, i32, i32
  }
  func.func @transform_1(%arg0: i32, %arg1: i32) -> (i32, i32) {
    %c0_i32 = arith.constant 0 : i32
    %c0_i32_0 = arith.constant 0 : i32
    %c0_i32_1 = arith.constant 0 : i32
    return %c0_i32, %c0_i32_0 : i32, i32
  }
  func.func @transform_2(%arg0: i32, %arg1: i32) -> (i32, i32) {
    %c0_i32 = arith.constant 0 : i32
    %c0_i32_0 = arith.constant 0 : i32
    %c0_i32_1 = arith.constant 0 : i32
    return %c0_i32, %c0_i32_0 : i32, i32
  }
  func.func @transform_3(%arg0: i32, %arg1: i32) -> (i32, i32) {
    %c0_i32 = arith.constant 0 : i32
    %c0_i32_0 = arith.constant 0 : i32
    %c0_i32_1 = arith.constant 0 : i32
    return %c0_i32, %c0_i32_0 : i32, i32
  }
  func.func @transform_4(%arg0: i32, %arg1: i32) -> (i32, i32) {
    %c0_i32 = arith.constant 0 : i32
    %c0_i32_0 = arith.constant 0 : i32
    %c0_i32_1 = arith.constant 0 : i32
    return %c0_i32, %c0_i32_0 : i32, i32
  }
  func.func @transform_5(%arg0: i32, %arg1: i32) -> (i32, i32) {
    %c0_i32 = arith.constant 0 : i32
    %c0_i32_0 = arith.constant 0 : i32
    %c0_i32_1 = arith.constant 0 : i32
    return %c0_i32, %c0_i32_0 : i32, i32
  }
  func.func @transform_6(%arg0: i32, %arg1: i32) -> (i32, i32) {
    %c0_i32 = arith.constant 0 : i32
    %c0_i32_0 = arith.constant 0 : i32
    %c0_i32_1 = arith.constant 0 : i32
    return %c0_i32, %c0_i32_0 : i32, i32
  }
  func.func @transform_7(%arg0: i32, %arg1: i32) -> (i32, i32) {
    %c0_i32 = arith.constant 0 : i32
    %c0_i32_0 = arith.constant 0 : i32
    %c0_i32_1 = arith.constant 0 : i32
    return %c0_i32, %c0_i32_0 : i32, i32
  }
  func.func @transform_8(%arg0: i32, %arg1: i32) -> (i32, i32) {
    %c0_i32 = arith.constant 0 : i32
    %c0_i32_0 = arith.constant 0 : i32
    %c0_i32_1 = arith.constant 0 : i32
    return %c0_i32, %c0_i32_0 : i32, i32
  }
  func.func @transform_9(%arg0: i32, %arg1: i32) -> (i32, i32) {
    %c0_i32 = arith.constant 0 : i32
    %c0_i32_0 = arith.constant 0 : i32
    %c0_i32_1 = arith.constant 0 : i32
    return %c0_i32, %c0_i32_0 : i32, i32
  }
  func.func @transform_10(%arg0: i32, %arg1: i32) -> (i32, i32) {
    %c0_i32 = arith.constant 0 : i32
    %c0_i32_0 = arith.constant 0 : i32
    %c0_i32_1 = arith.constant 0 : i32
    return %c0_i32, %c0_i32_0 : i32, i32
  }
  func.func @transform_11(%arg0: i32, %arg1: i32) -> (i32, i32) {
    %c0_i32 = arith.constant 0 : i32
    %c0_i32_0 = arith.constant 0 : i32
    %c0_i32_1 = arith.constant 0 : i32
    return %c0_i32, %c0_i32_0 : i32, i32
  }
  func.func @transform_12(%arg0: i32, %arg1: i32) -> (i32, i32) {
    %c0_i32 = arith.constant 0 : i32
    %c0_i32_0 = arith.constant 0 : i32
    %c0_i32_1 = arith.constant 0 : i32
    return %c0_i32, %c0_i32_0 : i32, i32
  }
  func.func @transform_13(%arg0: i32, %arg1: i32) -> (i32, i32) {
    %c0_i32 = arith.constant 0 : i32
    %c0_i32_0 = arith.constant 0 : i32
    %c0_i32_1 = arith.constant 0 : i32
    return %c0_i32, %c0_i32_0 : i32, i32
  }
  func.func @transform_14(%arg0: i32, %arg1: i32) -> (i32, i32) {
    %c0_i32 = arith.constant 0 : i32
    %c0_i32_0 = arith.constant 0 : i32
    %c0_i32_1 = arith.constant 0 : i32
    return %c0_i32, %c0_i32_0 : i32, i32
  }
  func.func @transform_15(%arg0: i32, %arg1: i32) -> (i32, i32) {
    %c0_i32 = arith.constant 0 : i32
    %c0_i32_0 = arith.constant 0 : i32
    %c0_i32_1 = arith.constant 0 : i32
    return %c0_i32, %c0_i32_0 : i32, i32
  }
  func.func @transform_16(%arg0: i32, %arg1: i32) -> (i32, i32, i32) {
    %c0_i32 = arith.constant 0 : i32
    %c0_i32_0 = arith.constant 0 : i32
    return %arg0, %arg1, %c0_i32 : i32, i32, i32
  }
  func.func @transform_17(%arg0: i32, %arg1: i32) -> (i32, i32, i32) {
    %c0_i32 = arith.constant 0 : i32
    %c0_i32_0 = arith.constant 0 : i32
    return %arg0, %arg1, %c0_i32 : i32, i32, i32
  }
  func.func @transform_18(%arg0: i32, %arg1: i32) -> (i32, i32, i32) {
    %c0_i32 = arith.constant 0 : i32
    %c0_i32_0 = arith.constant 0 : i32
    return %arg0, %arg1, %c0_i32 : i32, i32, i32
  }
  func.func @transform_19(%arg0: i32, %arg1: i32) -> (i32, i32, i32) {
    %c0_i32 = arith.constant 0 : i32
    %c0_i32_0 = arith.constant 0 : i32
    %c0_i32_1 = arith.constant 0 : i32
    return %arg0, %c0_i32, %c0_i32_0 : i32, i32, i32
  }
  func.func @transform_20(%arg0: i32, %arg1: i32) -> (i32, i32, i32) {
    %c0_i32 = arith.constant 0 : i32
    %c0_i32_0 = arith.constant 0 : i32
    %c0_i32_1 = arith.constant 0 : i32
    return %arg0, %c0_i32, %c0_i32_0 : i32, i32, i32
  }
  func.func @transform_21(%arg0: i32, %arg1: i32) -> (i32, i32, i32) {
    %c0_i32 = arith.constant 0 : i32
    %c0_i32_0 = arith.constant 0 : i32
    %c0_i32_1 = arith.constant 0 : i32
    return %arg0, %c0_i32, %c0_i32_0 : i32, i32, i32
  }
  func.func @transform_22(%arg0: i32, %arg1: i32) -> (i32, i32, i32) {
    %c0_i32 = arith.constant 0 : i32
    %c0_i32_0 = arith.constant 0 : i32
    %c0_i32_1 = arith.constant 0 : i32
    return %arg0, %c0_i32, %c0_i32_0 : i32, i32, i32
  }
}

</mosaic_0001>

<llo_original>
// kernel: tpu_custom_call.1
$region0: #{tpu_custom_call.1}
  #allocation0 [shape = 'u32[]', space=smem, size = 0x4, offset = 0x4, fixed_abs, tag = 'smem constant byte address 0x4 - core index']
  #allocation1 [shape = 'u32[144,128]{1,0:T(1,128)}', space=vmem, size = 0x12000, scoped, tag = 'internal scratch']
  %s0 = inlined_call_operand.vmem [shape: f32[4,256,8], index: 0, kind: input, shape index: {}]
  %s1 = inlined_call_operand.vmem [shape: f32[8,128], index: 1, kind: input, shape index: {}]
  %s2 = inlined_call_operand.vmem [shape: f32[1,128], index: 2, kind: input, shape index: {}]
  %s3 = inlined_call_operand.vmem [shape: bf16[128,128], index: 3, kind: input, shape index: {}]
  %s4 = inlined_call_operand.vmem [shape: f32[1,128], index: 4, kind: input, shape index: {}]
  %s5 = inlined_call_operand.hbm [shape: bf16[128,128], index: 5, kind: input, shape index: {}]
  %s6 = inlined_call_operand.vmem [shape: f32[1,128], index: 6, kind: input, shape index: {}]
  %s7 = inlined_call_operand.hbm [shape: bf16[128,128], index: 7, kind: input, shape index: {}]
  %s8 = inlined_call_operand.hbm [shape: bf16[128,128], index: 8, kind: input, shape index: {}]
  %s9 = inlined_call_operand.vmem [shape: f32[1,128], index: 9, kind: input, shape index: {}]
  %s10 = inlined_call_operand.hbm [shape: bf16[128,128], index: 10, kind: input, shape index: {}]
  %s11 = inlined_call_operand.hbm [shape: bf16[128,128], index: 11, kind: input, shape index: {}]
  %s12 = inlined_call_operand.hbm [shape: bf16[128,128], index: 12, kind: input, shape index: {}]
  %s13 = inlined_call_operand.vmem [shape: f32[1,128], index: 13, kind: input, shape index: {}]
  %s14 = inlined_call_operand.hbm [shape: bf16[128,128], index: 14, kind: input, shape index: {}]
  %s15 = inlined_call_operand.vmem [shape: f32[1,128], index: 15, kind: input, shape index: {}]
  %s16 = inlined_call_operand.vmem [shape: f32[4,256,128], index: 16, kind: input, shape index: {}]
  %s17 = inlined_call_operand.hbm [shape: bf16[4,256,128], index: 17, kind: output, shape index: {0}]
  %s18 = inlined_call_operand.hbm [shape: bf16[4,256,128], index: 18, kind: output, shape index: {1}]
  %s19 = inlined_call_operand.hbm [shape: f32[4,1,128], index: 19, kind: output, shape index: {2}]
  %s20 = inlined_call_operand.hbm [shape: f32[4,1,128], index: 20, kind: output, shape index: {3}]
  %s21 = inlined_call_operand.hbm [shape: f32[4,1,128], index: 21, kind: output, shape index: {4}]
  %s22 = inlined_call_operand.hbm [shape: f32[4,1,128], index: 22, kind: output, shape index: {5}]
  %23 = xla_tuple %s17, %s18, %s19, %s20, %s21, %s22
  %s24 = sld [smem:[#allocation0]]
  $region185: #{tpu_custom_call.1} parent=0
    _
  %s26 = ssub.s32 1, %s24
  %s27 = scalar_select 0, %s26, %s24
  $region1: #{tpu_custom_call.1} parent=0
    #allocation2 [shape = 'u8[32768]{0}', space=vmem, size = 0x8000, scoped, tag = 'input window, operand 5, single buffered']
    #allocation3 [shape = 's32[2]{0}', space=sflag, size = 0x8, scoped, tag = 'scoped memory for tpu_custom_call.1']
    #allocation4 [shape = 's32[2]{0}', space=sflag, size = 0x8, scoped, tag = 'scoped memory for tpu_custom_call.1']
    #allocation5 [shape = 'u8[32768]{0}', space=vmem, size = 0x8000, scoped, tag = 'input window, operand 7, single buffered']
    #allocation6 [shape = 's32[1]{0}', space=sflag, size = 0x4, scoped, tag = 'scoped memory for tpu_custom_call.1']
    #allocation7 [shape = 'u8[32768]{0}', space=vmem, size = 0x8000, scoped, tag = 'input window, operand 8, single buffered']
    #allocation8 [shape = 'u8[32768]{0}', space=vmem, size = 0x8000, scoped, tag = 'input window, operand 10, single buffered']
    #allocation9 [shape = 's32[1]{0}', space=sflag, size = 0x4, scoped, tag = 'scoped memory for tpu_custom_call.1']
    #allocation10 [shape = 'u8[32768]{0}', space=vmem, size = 0x8000, scoped, tag = 'input window, operand 11, single buffered']
    #allocation11 [shape = 'u8[32768]{0}', space=vmem, size = 0x8000, scoped, tag = 'input window, operand 12, single buffered']
    #allocation12 [shape = 's32[1]{0}', space=sflag, size = 0x4, scoped, tag = 'scoped memory for tpu_custom_call.1']
    #allocation13 [shape = 'u8[32768]{0}', space=vmem, size = 0x8000, scoped, tag = 'input window, operand 14, single buffered']
    #allocation14 [shape = 'u8[65536]{0}', space=vmem, size = 0x10000, scoped, tag = 'output window, operand 0']
    #allocation15 [shape = 'u8[65536]{0}', space=vmem, size = 0x10000, scoped, tag = 'output window, operand 1']
    #allocation16 [shape = 's32[2]{0}', space=sflag, size = 0x8, scoped, tag = 'scoped memory for tpu_custom_call.1']
    #allocation17 [shape = 'u8[1024]{0}', space=vmem, size = 0x400, scoped, tag = 'output window, operand 2']
    #allocation18 [shape = 'u8[1024]{0}', space=vmem, size = 0x400, scoped, tag = 'output window, operand 3']
    #allocation19 [shape = 's32[2]{0}', space=sflag, size = 0x8, scoped, tag = 'scoped memory for tpu_custom_call.1']
    #allocation20 [shape = 'u8[1024]{0}', space=vmem, size = 0x400, scoped, tag = 'output window, operand 4']
    #allocation21 [shape = 'u8[1024]{0}', space=vmem, size = 0x400, scoped, tag = 'output window, operand 5']
    #allocation22 [shape = 's32[2]{0}', space=sflag, size = 0x8, scoped, tag = 'scoped memory for tpu_custom_call.1']
    %28 = vsyncpa [#allocation3], 0
    %29 = vsyncpa [#allocation6], 0
    %30 = vsyncpa [#allocation9], 0
    %31 = vsyncpa [#allocation12], 0
    %32 = vsyncpa [#allocation4], 0
    %s33 = scalar_lea.sflag [#allocation4], 1
    %34 = vsyncpa %s33, 0
    %35 = vsyncpa [#allocation16], 0
    %s36 = scalar_lea.sflag [#allocation16], 1
    %37 = vsyncpa %s36, 0
    %38 = vsyncpa [#allocation19], 0
    %s39 = scalar_lea.sflag [#allocation19], 1
    %40 = vsyncpa %s39, 0
    %41 = vsyncpa [#allocation22], 0
    %s42 = scalar_lea.sflag [#allocation22], 1
    %43 = vsyncpa %s42, 0
    loop: start=0, step=1, limit=10
    $region2: #{tpu_custom_call.1} parent=1 // loop_pre_header
      _
    $region3: #{tpu_custom_call.1} parent=1 // loop_header
      %s45 = sphi 0, %s49
      %p46 = scmp.ge.s32.totalorder %s45, 10
      %s52 = sphi 0, %s64
      %s53 = sphi 0, %s60
      %s54 = sphi 0, %s52
      %s55 = sphi 0, %s53
      %s56 = sphi 0, %s54
      %s57 = sphi 0, %s55
      %s69 = sphi 0, %s71
      %s72 = sphi 0, %s69
      %s73 = sphi 0, %s72
      %s89 = sphi 0, %s73
      %s93 = sphi 0, %s93
      %s95 = sphi 0, %s93
      %s96 = sphi 0, %s95
      %s110 = sphi 0, %s96
      %s114 = sphi 0, %s114
      %s116 = sphi 0, %s114
      %s117 = sphi 0, %s116
      %s131 = sphi 0, %s117
      %s135 = sphi 0, %s135
      %s137 = sphi 0, %s135
      %s138 = sphi 0, %s137
      %s152 = sphi 0, %s138
      %s156 = sphi 0, %s156
      %s158 = sphi 0, %s156
      %s159 = sphi 0, %s158
      %s173 = sphi 0, %s159
      %s177 = sphi 0, %s177
      %s179 = sphi 0, %s177
      %s180 = sphi 0, %s179
      %s194 = sphi 0, %s180
      %s198 = sphi 0, %s198
      %s200 = sphi 0, %s198
      %s201 = sphi 0, %s200
      %s215 = sphi 0, %s201
      %s219 = sphi 0, %s219
      %s221 = sphi 0, %s219
      %s222 = sphi 0, %s221
      %s236 = sphi 0, %s222
      %s240 = sphi 0, %s240
      %s242 = sphi 0, %s240
      %s243 = sphi 0, %s242
      %s257 = sphi 0, %s243
      %s261 = sphi 0, %s261
      %s263 = sphi 0, %s261
      %s264 = sphi 0, %s263
      %s278 = sphi 0, %s264
      %s282 = sphi 0, %s282
      %s284 = sphi 0, %s282
      %s285 = sphi 0, %s284
      %s299 = sphi 0, %s285
      %s303 = sphi 0, %s303
      %s305 = sphi 0, %s303
      %s306 = sphi 0, %s305
      %s320 = sphi 0, %s306
      %s324 = sphi 0, %s324
      %s326 = sphi 0, %s324
      %s327 = sphi 0, %s326
      %s341 = sphi 0, %s327
      %s345 = sphi 0, %s345
      %s347 = sphi 0, %s345
      %s348 = sphi 0, %s347
      %s362 = sphi 0, %s348
      %s366 = sphi 0, %s366
      %s368 = sphi 0, %s366
      %s369 = sphi 0, %s368
      %s383 = sphi 0, %s369
      %s387 = sphi 0, %s387
      %s389 = sphi 0, %s387
      %s390 = sphi 0, %s389
      %s404 = sphi 0, %s390
      %s412 = sphi 0, %s414
      %s415 = sphi 0, %s412
      %s416 = sphi 0, %s415
      %s432 = sphi 0, %s416
      %s440 = sphi 0, %s442
      %s443 = sphi 0, %s440
      %s444 = sphi 0, %s443
      %s460 = sphi 0, %s444
      %s468 = sphi 0, %s470
      %s471 = sphi 0, %s468
      %s472 = sphi 0, %s471
      %s488 = sphi 0, %s472
      %s494 = sphi 0, %s496
      %s497 = sphi 0, %s494
      %s498 = sphi 0, %s497
      %s514 = sphi 0, %s498
      %s520 = sphi 0, %s522
      %s523 = sphi 0, %s520
      %s524 = sphi 0, %s523
      %s540 = sphi 0, %s524
      %s546 = sphi 0, %s548
      %s549 = sphi 0, %s546
      %s550 = sphi 0, %s549
      %s566 = sphi 0, %s550
      %s572 = sphi 0, %s574
      %s575 = sphi 0, %s572
      %s576 = sphi 0, %s575
      %s592 = sphi 0, %s576
    $region4: #{tpu_custom_call.1} parent=1 // loop_header_branch
      %48 = sbr.rel (%p46) target = $region8
    $region5: #{tpu_custom_call.1} parent=1 // loop_body
      %s50 = ssub.s32 %s45, 1
      %s51 = ssub.s32 %s45, 2
      %s58 = sadd.s32 1, %s53
      %p59 = scmp.ge.s32.totalorder %s58, 2
      %s60 = scalar_select %p59, 0, %s58
      %s61 = sadd.s32 1, %s52
      %s62 = scalar_select %p59, %s61, %s52
      %p63 = scmp.ge.s32.totalorder %s62, 4
      %s64 = scalar_select %p63, 0, %s62
      %s65 = ssub.s32 %s52, %s64
      %s66 = ssub.s32 %s53, %s60
      %s67 = sor.u32 %s65, %s66
      %p68 = scmp.eq.s32.totalorder %s67, 0
      %s70 = sadd.s32 %s69, 1
      %s71 = scalar_select %p68, %s69, %s70
      %p74 = pneg %p68
      %p75 = scmp.eq.s32.totalorder %s45, 7
      %p76 = por %p74, %p75
      %p77 = scmp.ne.s32.totalorder %s69, %s72
      %p78 = scmp.eq.s32.totalorder %s45, 0
      %p79 = por %p77, %p78
      %p80 = scmp.ne.s32.totalorder %s69, %s72
      %p81 = scmp.eq.s32.totalorder %s50, 7
      %p82 = por %p80, %p81
      %p83 = scmp.ne.s32.totalorder %s72, %s73
      %p84 = scmp.eq.s32.totalorder %s50, 0
      %p85 = por %p83, %p84
      %p86 = scmp.ne.s32.totalorder %s72, %s73
      %p87 = scmp.eq.s32.totalorder %s51, 7
      %p88 = por %p86, %p87
      %p90 = scmp.ne.s32.totalorder %s73, %s89
      %p91 = scmp.eq.s32.totalorder %s51, 0
      %p92 = por %p90, %p91
      %s94 = sadd.s32 %s93, 1
      %p97 = scmp.eq.s32.totalorder %s45, 7
      %p98 = scmp.ne.s32.totalorder %s93, %s95
      %p99 = scmp.eq.s32.totalorder %s45, 0
      %p100 = por %p98, %p99
      %p101 = scmp.ne.s32.totalorder %s93, %s95
      %p102 = scmp.eq.s32.totalorder %s50, 7
      %p103 = por %p101, %p102
      %p104 = scmp.ne.s32.totalorder %s95, %s96
      %p105 = scmp.eq.s32.totalorder %s50, 0
      %p106 = por %p104, %p105
      %p107 = scmp.ne.s32.totalorder %s95, %s96
      %p108 = scmp.eq.s32.totalorder %s51, 7
      %p109 = por %p107, %p108
      %p111 = scmp.ne.s32.totalorder %s96, %s110
      %p112 = scmp.eq.s32.totalorder %s51, 0
      %p113 = por %p111, %p112
      %s115 = sadd.s32 %s114, 1
      %p118 = scmp.eq.s32.totalorder %s45, 7
      %p119 = scmp.ne.s32.totalorder %s114, %s116
      %p120 = scmp.eq.s32.totalorder %s45, 0
      %p121 = por %p119, %p120
      %p122 = scmp.ne.s32.totalorder %s114, %s116
      %p123 = scmp.eq.s32.totalorder %s50, 7
      %p124 = por %p122, %p123
      %p125 = scmp.ne.s32.totalorder %s116, %s117
      %p126 = scmp.eq.s32.totalorder %s50, 0
      %p127 = por %p125, %p126
      %p128 = scmp.ne.s32.totalorder %s116, %s117
      %p129 = scmp.eq.s32.totalorder %s51, 7
      %p130 = por %p128, %p129
      %p132 = scmp.ne.s32.totalorder %s117, %s131
      %p133 = scmp.eq.s32.totalorder %s51, 0
      %p134 = por %p132, %p133
      %s136 = sadd.s32 %s135, 1
      %p139 = scmp.eq.s32.totalorder %s45, 7
      %p140 = scmp.ne.s32.totalorder %s135, %s137
      %p141 = scmp.eq.s32.totalorder %s45, 0
      %p142 = por %p140, %p141
      %p143 = scmp.ne.s32.totalorder %s135, %s137
      %p144 = scmp.eq.s32.totalorder %s50, 7
      %p145 = por %p143, %p144
      %p146 = scmp.ne.s32.totalorder %s137, %s138
      %p147 = scmp.eq.s32.totalorder %s50, 0
      %p148 = por %p146, %p147
      %p149 = scmp.ne.s32.totalorder %s137, %s138
      %p150 = scmp.eq.s32.totalorder %s51, 7
      %p151 = por %p149, %p150
      %p153 = scmp.ne.s32.totalorder %s138, %s152
      %p154 = scmp.eq.s32.totalorder %s51, 0
      %p155 = por %p153, %p154
      %s157 = sadd.s32 %s156, 1
      %p160 = scmp.eq.s32.totalorder %s45, 7
      %p161 = scmp.ne.s32.totalorder %s156, %s158
      %p162 = scmp.eq.s32.totalorder %s45, 0
      %p163 = por %p161, %p162
      %p164 = scmp.ne.s32.totalorder %s156, %s158
      %p165 = scmp.eq.s32.totalorder %s50, 7
      %p166 = por %p164, %p165
      %p167 = scmp.ne.s32.totalorder %s158, %s159
      %p168 = scmp.eq.s32.totalorder %s50, 0
      %p169 = por %p167, %p168
      %p170 = scmp.ne.s32.totalorder %s158, %s159
      %p171 = scmp.eq.s32.totalorder %s51, 7
      %p172 = por %p170, %p171
      %p174 = scmp.ne.s32.totalorder %s159, %s173
      %p175 = scmp.eq.s32.totalorder %s51, 0
      %p176 = por %p174, %p175
      %s178 = sadd.s32 %s177, 1
      %p181 = scmp.eq.s32.totalorder %s45, 7
      %p182 = scmp.ne.s32.totalorder %s177, %s179
      %p183 = scmp.eq.s32.totalorder %s45, 0
      %p184 = por %p182, %p183
      %p185 = scmp.ne.s32.totalorder %s177, %s179
      %p186 = scmp.eq.s32.totalorder %s50, 7
      %p187 = por %p185, %p186
      %p188 = scmp.ne.s32.totalorder %s179, %s180
      %p189 = scmp.eq.s32.totalorder %s50, 0
      %p190 = por %p188, %p189
      %p191 = scmp.ne.s32.totalorder %s179, %s180
      %p192 = scmp.eq.s32.totalorder %s51, 7
      %p193 = por %p191, %p192
      %p195 = scmp.ne.s32.totalorder %s180, %s194
      %p196 = scmp.eq.s32.totalorder %s51, 0
      %p197 = por %p195, %p196
      %s199 = sadd.s32 %s198, 1
      %p202 = scmp.eq.s32.totalorder %s45, 7
      %p203 = scmp.ne.s32.totalorder %s198, %s200
      %p204 = scmp.eq.s32.totalorder %s45, 0
      %p205 = por %p203, %p204
      %p206 = scmp.ne.s32.totalorder %s198, %s200
      %p207 = scmp.eq.s32.totalorder %s50, 7
      %p208 = por %p206, %p207
      %p209 = scmp.ne.s32.totalorder %s200, %s201
      %p210 = scmp.eq.s32.totalorder %s50, 0
      %p211 = por %p209, %p210
      %p212 = scmp.ne.s32.totalorder %s200, %s201
      %p213 = scmp.eq.s32.totalorder %s51, 7
      %p214 = por %p212, %p213
      %p216 = scmp.ne.s32.totalorder %s201, %s215
      %p217 = scmp.eq.s32.totalorder %s51, 0
      %p218 = por %p216, %p217
      %s220 = sadd.s32 %s219, 1
      %p223 = scmp.eq.s32.totalorder %s45, 7
      %p224 = scmp.ne.s32.totalorder %s219, %s221
      %p225 = scmp.eq.s32.totalorder %s45, 0
      %p226 = por %p224, %p225
      %p227 = scmp.ne.s32.totalorder %s219, %s221
      %p228 = scmp.eq.s32.totalorder %s50, 7
      %p229 = por %p227, %p228
      %p230 = scmp.ne.s32.totalorder %s221, %s222
      %p231 = scmp.eq.s32.totalorder %s50, 0
      %p232 = por %p230, %p231
      %p233 = scmp.ne.s32.totalorder %s221, %s222
      %p234 = scmp.eq.s32.totalorder %s51, 7
      %p235 = por %p233, %p234
      %p237 = scmp.ne.s32.totalorder %s222, %s236
      %p238 = scmp.eq.s32.totalorder %s51, 0
      %p239 = por %p237, %p238
      %s241 = sadd.s32 %s240, 1
      %p244 = scmp.eq.s32.totalorder %s45, 7
      %p245 = scmp.ne.s32.totalorder %s240, %s242
      %p246 = scmp.eq.s32.totalorder %s45, 0
      %p247 = por %p245, %p246
      %p248 = scmp.ne.s32.totalorder %s240, %s242
      %p249 = scmp.eq.s32.totalorder %s50, 7
      %p250 = por %p248, %p249
      %p251 = scmp.ne.s32.totalorder %s242, %s243
      %p252 = scmp.eq.s32.totalorder %s50, 0
      %p253 = por %p251, %p252
      %p254 = scmp.ne.s32.totalorder %s242, %s243
      %p255 = scmp.eq.s32.totalorder %s51, 7
      %p256 = por %p254, %p255
      %p258 = scmp.ne.s32.totalorder %s243, %s257
      %p259 = scmp.eq.s32.totalorder %s51, 0
      %p260 = por %p258, %p259
      %s262 = sadd.s32 %s261, 1
      %p265 = scmp.eq.s32.totalorder %s45, 7
      %p266 = scmp.ne.s32.totalorder %s261, %s263
      %p267 = scmp.eq.s32.totalorder %s45, 0
      %p268 = por %p266, %p267
      %p269 = scmp.ne.s32.totalorder %s261, %s263
      %p270 = scmp.eq.s32.totalorder %s50, 7
      %p271 = por %p269, %p270
      %p272 = scmp.ne.s32.totalorder %s263, %s264
      %p273 = scmp.eq.s32.totalorder %s50, 0
      %p274 = por %p272, %p273
      %p275 = scmp.ne.s32.totalorder %s263, %s264
      %p276 = scmp.eq.s32.totalorder %s51, 7
      %p277 = por %p275, %p276
      %p279 = scmp.ne.s32.totalorder %s264, %s278
      %p280 = scmp.eq.s32.totalorder %s51, 0
      %p281 = por %p279, %p280
      %s283 = sadd.s32 %s282, 1
      %p286 = scmp.eq.s32.totalorder %s45, 7
      %p287 = scmp.ne.s32.totalorder %s282, %s284
      %p288 = scmp.eq.s32.totalorder %s45, 0
      %p289 = por %p287, %p288
      %p290 = scmp.ne.s32.totalorder %s282, %s284
      %p291 = scmp.eq.s32.totalorder %s50, 7
      %p292 = por %p290, %p291
      %p293 = scmp.ne.s32.totalorder %s284, %s285
      %p294 = scmp.eq.s32.totalorder %s50, 0
      %p295 = por %p293, %p294
      %p296 = scmp.ne.s32.totalorder %s284, %s285
      %p297 = scmp.eq.s32.totalorder %s51, 7
      %p298 = por %p296, %p297
      %p300 = scmp.ne.s32.totalorder %s285, %s299
      %p301 = scmp.eq.s32.totalorder %s51, 0
      %p302 = por %p300, %p301
      %s304 = sadd.s32 %s303, 1
      %p307 = scmp.eq.s32.totalorder %s45, 7
      %p308 = scmp.ne.s32.totalorder %s303, %s305
      %p309 = scmp.eq.s32.totalorder %s45, 0
      %p310 = por %p308, %p309
      %p311 = scmp.ne.s32.totalorder %s303, %s305
      %p312 = scmp.eq.s32.totalorder %s50, 7
      %p313 = por %p311, %p312
      %p314 = scmp.ne.s32.totalorder %s305, %s306
      %p315 = scmp.eq.s32.totalorder %s50, 0
      %p316 = por %p314, %p315
      %p317 = scmp.ne.s32.totalorder %s305, %s306
      %p318 = scmp.eq.s32.totalorder %s51, 7
      %p319 = por %p317, %p318
      %p321 = scmp.ne.s32.totalorder %s306, %s320
      %p322 = scmp.eq.s32.totalorder %s51, 0
      %p323 = por %p321, %p322
      %s325 = sadd.s32 %s324, 1
      %p328 = scmp.eq.s32.totalorder %s45, 7
      %p329 = scmp.ne.s32.totalorder %s324, %s326
      %p330 = scmp.eq.s32.totalorder %s45, 0
      %p331 = por %p329, %p330
      %p332 = scmp.ne.s32.totalorder %s324, %s326
      %p333 = scmp.eq.s32.totalorder %s50, 7
      %p334 = por %p332, %p333
      %p335 = scmp.ne.s32.totalorder %s326, %s327
      %p336 = scmp.eq.s32.totalorder %s50, 0
      %p337 = por %p335, %p336
      %p338 = scmp.ne.s32.totalorder %s326, %s327
      %p339 = scmp.eq.s32.totalorder %s51, 7
      %p340 = por %p338, %p339
      %p342 = scmp.ne.s32.totalorder %s327, %s341
      %p343 = scmp.eq.s32.totalorder %s51, 0
      %p344 = por %p342, %p343
      %s346 = sadd.s32 %s345, 1
      %p349 = scmp.eq.s32.totalorder %s45, 7
      %p350 = scmp.ne.s32.totalorder %s345, %s347
      %p351 = scmp.eq.s32.totalorder %s45, 0
      %p352 = por %p350, %p351
      %p353 = scmp.ne.s32.totalorder %s345, %s347
      %p354 = scmp.eq.s32.totalorder %s50, 7
      %p355 = por %p353, %p354
      %p356 = scmp.ne.s32.totalorder %s347, %s348
      %p357 = scmp.eq.s32.totalorder %s50, 0
      %p358 = por %p356, %p357
      %p359 = scmp.ne.s32.totalorder %s347, %s348
      %p360 = scmp.eq.s32.totalorder %s51, 7
      %p361 = por %p359, %p360
      %p363 = scmp.ne.s32.totalorder %s348, %s362
      %p364 = scmp.eq.s32.totalorder %s51, 0
      %p365 = por %p363, %p364
      %s367 = sadd.s32 %s366, 1
      %p370 = scmp.eq.s32.totalorder %s45, 7
      %p371 = scmp.ne.s32.totalorder %s366, %s368
      %p372 = scmp.eq.s32.totalorder %s45, 0
      %p373 = por %p371, %p372
      %p374 = scmp.ne.s32.totalorder %s366, %s368
      %p375 = scmp.eq.s32.totalorder %s50, 7
      %p376 = por %p374, %p375
      %p377 = scmp.ne.s32.totalorder %s368, %s369
      %p378 = scmp.eq.s32.totalorder %s50, 0
      %p379 = por %p377, %p378
      %p380 = scmp.ne.s32.totalorder %s368, %s369
      %p381 = scmp.eq.s32.totalorder %s51, 7
      %p382 = por %p380, %p381
      %p384 = scmp.ne.s32.totalorder %s369, %s383
      %p385 = scmp.eq.s32.totalorder %s51, 0
      %p386 = por %p384, %p385
      %s388 = sadd.s32 %s387, 1
      %p391 = scmp.eq.s32.totalorder %s45, 7
      %p392 = scmp.ne.s32.totalorder %s387, %s389
      %p393 = scmp.eq.s32.totalorder %s45, 0
      %p394 = por %p392, %p393
      %p395 = scmp.ne.s32.totalorder %s387, %s389
      %p396 = scmp.eq.s32.totalorder %s50, 7
      %p397 = por %p395, %p396
      %p398 = scmp.ne.s32.totalorder %s389, %s390
      %p399 = scmp.eq.s32.totalorder %s50, 0
      %p400 = por %p398, %p399
      %p401 = scmp.ne.s32.totalorder %s389, %s390
      %p402 = scmp.eq.s32.totalorder %s51, 7
      %p403 = por %p401, %p402
      %p405 = scmp.ne.s32.totalorder %s390, %s404
      %p406 = scmp.eq.s32.totalorder %s51, 0
      %p407 = por %p405, %p406
      %s408 = ssub.s32 %s52, %s64
      %s409 = ssub.s32 %s53, %s60
      %s410 = sor.u32 %s408, %s409
      %p411 = scmp.eq.s32.totalorder %s410, 0
      %s413 = sadd.s32 %s412, 1
      %s414 = scalar_select %p411, %s412, %s413
      %p417 = pneg %p411
      %p418 = scmp.eq.s32.totalorder %s45, 7
      %p419 = por %p417, %p418
      %p420 = scmp.ne.s32.totalorder %s412, %s415
      %p421 = scmp.eq.s32.totalorder %s45, 0
      %p422 = por %p420, %p421
      %p423 = scmp.ne.s32.totalorder %s412, %s415
      %p424 = scmp.eq.s32.totalorder %s50, 7
      %p425 = por %p423, %p424
      %p426 = scmp.ne.s32.totalorder %s415, %s416
      %p427 = scmp.eq.s32.totalorder %s50, 0
      %p428 = por %p426, %p427
      %p429 = scmp.ne.s32.totalorder %s415, %s416
      %p430 = scmp.eq.s32.totalorder %s51, 7
      %p431 = por %p429, %p430
      %p433 = scmp.ne.s32.totalorder %s416, %s432
      %p434 = scmp.eq.s32.totalorder %s51, 0
      %p435 = por %p433, %p434
      %s436 = ssub.s32 %s52, %s64
      %s437 = ssub.s32 %s53, %s60
      %s438 = sor.u32 %s436, %s437
      %p439 = scmp.eq.s32.totalorder %s438, 0
      %s441 = sadd.s32 %s440, 1
      %s442 = scalar_select %p439, %s440, %s441
      %p445 = pneg %p439
      %p446 = scmp.eq.s32.totalorder %s45, 7
      %p447 = por %p445, %p446
      %p448 = scmp.ne.s32.totalorder %s440, %s443
      %p449 = scmp.eq.s32.totalorder %s45, 0
      %p450 = por %p448, %p449
      %p451 = scmp.ne.s32.totalorder %s440, %s443
      %p452 = scmp.eq.s32.totalorder %s50, 7
      %p453 = por %p451, %p452
      %p454 = scmp.ne.s32.totalorder %s443, %s444
      %p455 = scmp.eq.s32.totalorder %s50, 0
      %p456 = por %p454, %p455
      %p457 = scmp.ne.s32.totalorder %s443, %s444
      %p458 = scmp.eq.s32.totalorder %s51, 7
      %p459 = por %p457, %p458
      %p461 = scmp.ne.s32.totalorder %s444, %s460
      %p462 = scmp.eq.s32.totalorder %s51, 0
      %p463 = por %p461, %p462
      %s464 = ssub.s32 %s52, %s64
      %s465 = ssub.s32 %s53, %s60
      %s466 = sor.u32 %s464, %s465
      %p467 = scmp.eq.s32.totalorder %s466, 0
      %s469 = sadd.s32 %s468, 1
      %s470 = scalar_select %p467, %s468, %s469
      %p473 = pneg %p467
      %p474 = scmp.eq.s32.totalorder %s45, 7
      %p475 = por %p473, %p474
      %p476 = scmp.ne.s32.totalorder %s468, %s471
      %p477 = scmp.eq.s32.totalorder %s45, 0
      %p478 = por %p476, %p477
      %p479 = scmp.ne.s32.totalorder %s468, %s471
      %p480 = scmp.eq.s32.totalorder %s50, 7
      %p481 = por %p479, %p480
      %p482 = scmp.ne.s32.totalorder %s471, %s472
      %p483 = scmp.eq.s32.totalorder %s50, 0
      %p484 = por %p482, %p483
      %p485 = scmp.ne.s32.totalorder %s471, %s472
      %p486 = scmp.eq.s32.totalorder %s51, 7
      %p487 = por %p485, %p486
      %p489 = scmp.ne.s32.totalorder %s472, %s488
      %p490 = scmp.eq.s32.totalorder %s51, 0
      %p491 = por %p489, %p490
      %s492 = ssub.s32 %s52, %s64
      %p493 = scmp.eq.s32.totalorder %s492, 0
      %s495 = sadd.s32 %s494, 1
      %s496 = scalar_select %p493, %s494, %s495
      %p499 = pneg %p493
      %p500 = scmp.eq.s32.totalorder %s45, 7
      %p501 = por %p499, %p500
      %p502 = scmp.ne.s32.totalorder %s494, %s497
      %p503 = scmp.eq.s32.totalorder %s45, 0
      %p504 = por %p502, %p503
      %p505 = scmp.ne.s32.totalorder %s494, %s497
      %p506 = scmp.eq.s32.totalorder %s50, 7
      %p507 = por %p505, %p506
      %p508 = scmp.ne.s32.totalorder %s497, %s498
      %p509 = scmp.eq.s32.totalorder %s50, 0
      %p510 = por %p508, %p509
      %p511 = scmp.ne.s32.totalorder %s497, %s498
      %p512 = scmp.eq.s32.totalorder %s51, 7
      %p513 = por %p511, %p512
      %p515 = scmp.ne.s32.totalorder %s498, %s514
      %p516 = scmp.eq.s32.totalorder %s51, 0
      %p517 = por %p515, %p516
      %s518 = ssub.s32 %s52, %s64
      %p519 = scmp.eq.s32.totalorder %s518, 0
      %s521 = sadd.s32 %s520, 1
      %s522 = scalar_select %p519, %s520, %s521
      %p525 = pneg %p519
      %p526 = scmp.eq.s32.totalorder %s45, 7
      %p527 = por %p525, %p526
      %p528 = scmp.ne.s32.totalorder %s520, %s523
      %p529 = scmp.eq.s32.totalorder %s45, 0
      %p530 = por %p528, %p529
      %p531 = scmp.ne.s32.totalorder %s520, %s523
      %p532 = scmp.eq.s32.totalorder %s50, 7
      %p533 = por %p531, %p532
      %p534 = scmp.ne.s32.totalorder %s523, %s524
      %p535 = scmp.eq.s32.totalorder %s50, 0
      %p536 = por %p534, %p535
      %p537 = scmp.ne.s32.totalorder %s523, %s524
      %p538 = scmp.eq.s32.totalorder %s51, 7
      %p539 = por %p537, %p538
      %p541 = scmp.ne.s32.totalorder %s524, %s540
      %p542 = scmp.eq.s32.totalorder %s51, 0
      %p543 = por %p541, %p542
      %s544 = ssub.s32 %s52, %s64
      %p545 = scmp.eq.s32.totalorder %s544, 0
      %s547 = sadd.s32 %s546, 1
      %s548 = scalar_select %p545, %s546, %s547
      %p551 = pneg %p545
      %p552 = scmp.eq.s32.totalorder %s45, 7
      %p553 = por %p551, %p552
      %p554 = scmp.ne.s32.totalorder %s546, %s549
      %p555 = scmp.eq.s32.totalorder %s45, 0
      %p556 = por %p554, %p555
      %p557 = scmp.ne.s32.totalorder %s546, %s549
      %p558 = scmp.eq.s32.totalorder %s50, 7
      %p559 = por %p557, %p558
      %p560 = scmp.ne.s32.totalorder %s549, %s550
      %p561 = scmp.eq.s32.totalorder %s50, 0
      %p562 = por %p560, %p561
      %p563 = scmp.ne.s32.totalorder %s549, %s550
      %p564 = scmp.eq.s32.totalorder %s51, 7
      %p565 = por %p563, %p564
      %p567 = scmp.ne.s32.totalorder %s550, %s566
      %p568 = scmp.eq.s32.totalorder %s51, 0
      %p569 = por %p567, %p568
      %s570 = ssub.s32 %s52, %s64
      %p571 = scmp.eq.s32.totalorder %s570, 0
      %s573 = sadd.s32 %s572, 1
      %s574 = scalar_select %p571, %s572, %s573
      %p577 = pneg %p571
      %p578 = scmp.eq.s32.totalorder %s45, 7
      %p579 = por %p577, %p578
      %p580 = scmp.ne.s32.totalorder %s572, %s575
      %p581 = scmp.eq.s32.totalorder %s45, 0
      %p582 = por %p580, %p581
      %p583 = scmp.ne.s32.totalorder %s572, %s575
      %p584 = scmp.eq.s32.totalorder %s50, 7
      %p585 = por %p583, %p584
      %p586 = scmp.ne.s32.totalorder %s575, %s576
      %p587 = scmp.eq.s32.totalorder %s50, 0
      %p588 = por %p586, %p587
      %p589 = scmp.ne.s32.totalorder %s575, %s576
      %p590 = scmp.eq.s32.totalorder %s51, 7
      %p591 = por %p589, %p590
      %p593 = scmp.ne.s32.totalorder %s576, %s592
      %p594 = scmp.eq.s32.totalorder %s51, 0
      %p595 = por %p593, %p594
      %p596 = scmp.le.s32.totalorder 1, %s45
      %p597 = scmp.lt.s32.totalorder %s45, 9
      %p598 = pnand %p596, %p597
      %p599 = pneg %p598
      // Predicated region
      $region9: #{tpu_custom_call.1} parent=5 // pred_check
        _
      $region10: #{tpu_custom_call.1} parent=5 // pred_check_branch
        %601 = sbr.rel (%p598) target = $region12
      $region11: #{tpu_custom_call.1} parent=5 // pred_region
        %s602 = ssub.s32 %s45, 1
        // Predicated region
        $region13: #{tpu_custom_call.1} parent=11 // pred_check
          %p603 = pneg %p106
        $region14: #{tpu_custom_call.1} parent=11 // pred_check_branch
          %605 = sbr.rel (%p603) target = $region16
        $region15: #{tpu_custom_call.1} parent=11 // pred_region
          _
        $region16: #{tpu_custom_call.1} parent=11 // pred_fallthru
          _
        // Predicated region
        $region17: #{tpu_custom_call.1} parent=11 // pred_check
          %p606 = pneg %p127
        $region18: #{tpu_custom_call.1} parent=11 // pred_check_branch
          %608 = sbr.rel (%p606) target = $region20
        $region19: #{tpu_custom_call.1} parent=11 // pred_region
          _
        $region20: #{tpu_custom_call.1} parent=11 // pred_fallthru
          _
        // Predicated region
        $region21: #{tpu_custom_call.1} parent=11 // pred_check
          %p609 = pneg %p148
        $region22: #{tpu_custom_call.1} parent=11 // pred_check_branch
          %611 = sbr.rel (%p609) target = $region24
        $region23: #{tpu_custom_call.1} parent=11 // pred_region
          _
        $region24: #{tpu_custom_call.1} parent=11 // pred_fallthru
          _
        // Predicated region
        $region25: #{tpu_custom_call.1} parent=11 // pred_check
          %p612 = pneg %p169
        $region26: #{tpu_custom_call.1} parent=11 // pred_check_branch
          %614 = sbr.rel (%p612) target = $region28
        $region27: #{tpu_custom_call.1} parent=11 // pred_region
          _
        $region28: #{tpu_custom_call.1} parent=11 // pred_fallthru
          _
        // Predicated region
        $region29: #{tpu_custom_call.1} parent=11 // pred_check
          %p615 = pneg %p190
        $region30: #{tpu_custom_call.1} parent=11 // pred_check_branch
          %617 = sbr.rel (%p615) target = $region32
        $region31: #{tpu_custom_call.1} parent=11 // pred_region
          %s619 = ssub.s32 1024, 1024
          %620 = vsyncadd [#allocation3], %s619
          %s621 = sshll.u32 [#allocation2], 4
          %s622 = int_to_ptr.vmem [resolvable:$true] %s621
          %627 = dma.hbm_to_vmem [thread:$0]  %s5, 1024, %s622, [#allocation3], 64, 64, 4
        $region32: #{tpu_custom_call.1} parent=11 // pred_fallthru
          _
        // Predicated region
        $region33: #{tpu_custom_call.1} parent=11 // pred_check
          %p628 = pneg %p211
        $region34: #{tpu_custom_call.1} parent=11 // pred_check_branch
          %630 = sbr.rel (%p628) target = $region36
        $region35: #{tpu_custom_call.1} parent=11 // pred_region
          _
        $region36: #{tpu_custom_call.1} parent=11 // pred_fallthru
          _
        // Predicated region
        $region37: #{tpu_custom_call.1} parent=11 // pred_check
          %p631 = pneg %p232
        $region38: #{tpu_custom_call.1} parent=11 // pred_check_branch
          %633 = sbr.rel (%p631) target = $region40
        $region39: #{tpu_custom_call.1} parent=11 // pred_region
          %s635 = ssub.s32 1024, 1024
          %636 = vsyncadd [#allocation6], %s635
          %s637 = sshll.u32 [#allocation5], 4
          %s638 = int_to_ptr.vmem [resolvable:$true] %s637
          %643 = dma.hbm_to_vmem [thread:$0]  %s7, 1024, %s638, [#allocation6], 64, 64, 4
        $region40: #{tpu_custom_call.1} parent=11 // pred_fallthru
          _
        // Predicated region
        $region41: #{tpu_custom_call.1} parent=11 // pred_check
          %p644 = pneg %p253
        $region42: #{tpu_custom_call.1} parent=11 // pred_check_branch
          %646 = sbr.rel (%p644) target = $region44
        $region43: #{tpu_custom_call.1} parent=11 // pred_region
          %s648 = ssub.s32 1024, 1024
          %649 = vsyncadd [#allocation6], %s648
          %s650 = sshll.u32 [#allocation7], 4
          %s651 = int_to_ptr.vmem [resolvable:$true] %s650
          %656 = dma.hbm_to_vmem [thread:$0]  %s8, 1024, %s651, [#allocation6], 64, 64, 4
        $region44: #{tpu_custom_call.1} parent=11 // pred_fallthru
          _
        // Predicated region
        $region45: #{tpu_custom_call.1} parent=11 // pred_check
          %p657 = pneg %p274
        $region46: #{tpu_custom_call.1} parent=11 // pred_check_branch
          %659 = sbr.rel (%p657) target = $region48
        $region47: #{tpu_custom_call.1} parent=11 // pred_region
          _
        $region48: #{tpu_custom_call.1} parent=11 // pred_fallthru
          _
        // Predicated region
        $region49: #{tpu_custom_call.1} parent=11 // pred_check
          %p660 = pneg %p295
        $region50: #{tpu_custom_call.1} parent=11 // pred_check_branch
          %662 = sbr.rel (%p660) target = $region52
        $region51: #{tpu_custom_call.1} parent=11 // pred_region
          %s664 = ssub.s32 1024, 1024
          %665 = vsyncadd [#allocation9], %s664
          %s666 = sshll.u32 [#allocation8], 4
          %s667 = int_to_ptr.vmem [resolvable:$true] %s666
          %672 = dma.hbm_to_vmem [thread:$0]  %s10, 1024, %s667, [#allocation9], 64, 64, 4
        $region52: #{tpu_custom_call.1} parent=11 // pred_fallthru
          _
        // Predicated region
        $region53: #{tpu_custom_call.1} parent=11 // pred_check
          %p673 = pneg %p316
        $region54: #{tpu_custom_call.1} parent=11 // pred_check_branch
          %675 = sbr.rel (%p673) target = $region56
        $region55: #{tpu_custom_call.1} parent=11 // pred_region
          %s677 = ssub.s32 1024, 1024
          %678 = vsyncadd [#allocation9], %s677
          %s679 = sshll.u32 [#allocation10], 4
          %s680 = int_to_ptr.vmem [resolvable:$true] %s679
          %685 = dma.hbm_to_vmem [thread:$0]  %s11, 1024, %s680, [#allocation9], 64, 64, 4
        $region56: #{tpu_custom_call.1} parent=11 // pred_fallthru
          _
        // Predicated region
        $region57: #{tpu_custom_call.1} parent=11 // pred_check
          %p686 = pneg %p337
        $region58: #{tpu_custom_call.1} parent=11 // pred_check_branch
          %688 = sbr.rel (%p686) target = $region60
        $region59: #{tpu_custom_call.1} parent=11 // pred_region
          %s690 = ssub.s32 1024, 1024
          %691 = vsyncadd [#allocation12], %s690
          %s692 = sshll.u32 [#allocation11], 4
          %s693 = int_to_ptr.vmem [resolvable:$true] %s692
          %698 = dma.hbm_to_vmem [thread:$0]  %s12, 1024, %s693, [#allocation12], 64, 64, 4
        $region60: #{tpu_custom_call.1} parent=11 // pred_fallthru
          _
        // Predicated region
        $region61: #{tpu_custom_call.1} parent=11 // pred_check
          %p699 = pneg %p358
        $region62: #{tpu_custom_call.1} parent=11 // pred_check_branch
          %701 = sbr.rel (%p699) target = $region64
        $region63: #{tpu_custom_call.1} parent=11 // pred_region
          _
        $region64: #{tpu_custom_call.1} parent=11 // pred_fallthru
          _
        // Predicated region
        $region65: #{tpu_custom_call.1} parent=11 // pred_check
          %p702 = pneg %p379
        $region66: #{tpu_custom_call.1} parent=11 // pred_check_branch
          %704 = sbr.rel (%p702) target = $region68
        $region67: #{tpu_custom_call.1} parent=11 // pred_region
          %s706 = ssub.s32 1024, 1024
          %707 = vsyncadd [#allocation12], %s706
          %s708 = sshll.u32 [#allocation13], 4
          %s709 = int_to_ptr.vmem [resolvable:$true] %s708
          %714 = dma.hbm_to_vmem [thread:$0]  %s14, 1024, %s709, [#allocation12], 64, 64, 4
        $region68: #{tpu_custom_call.1} parent=11 // pred_fallthru
          _
        // Predicated region
        $region69: #{tpu_custom_call.1} parent=11 // pred_check
          %p715 = pneg %p400
        $region70: #{tpu_custom_call.1} parent=11 // pred_check_branch
          %717 = sbr.rel (%p715) target = $region72
        $region71: #{tpu_custom_call.1} parent=11 // pred_region
          _
        $region72: #{tpu_custom_call.1} parent=11 // pred_fallthru
          _
      $region12: #{tpu_custom_call.1} parent=5 // pred_fallthru
        _
      %p718 = scmp.lt.s32.totalorder %s45, 8
      // Predicated region
      $region73: #{tpu_custom_call.1} parent=5 // pred_check
        %p719 = pneg %p718
      $region74: #{tpu_custom_call.1} parent=5 // pred_check_branch
        %721 = sbr.rel (%p719) target = $region76
      $region75: #{tpu_custom_call.1} parent=5 // pred_region
        // Predicated region
        $region77: #{tpu_custom_call.1} parent=75 // pred_check
          %p722 = pneg %p79
        $region78: #{tpu_custom_call.1} parent=75 // pred_check_branch
          %724 = sbr.rel (%p722) target = $region80
        $region79: #{tpu_custom_call.1} parent=75 // pred_region
          %s725 = smul.u32 16, %s53
          %p726 = scmp.lt.s32.totalorder %s52, 3
          %s727 = scalar_select %p726, %s52, 3
          %p728 = scmp.lt.s32.totalorder %s725, 31
          %s729 = scalar_select %p728, %s725, 31
          %s730 = smul.addr %s727, 32
          %s731 = sadd.s32 %s729, %s730
          %s732 = smul.addr %s731, 8
          %s733 = scalar_lea.vmem %s0, %s732
          %s734 = smul.u32 16, %s53
        $region80: #{tpu_custom_call.1} parent=75 // pred_fallthru
          _
        // Predicated region
        $region81: #{tpu_custom_call.1} parent=75 // pred_check
          %p735 = pneg %p422
        $region82: #{tpu_custom_call.1} parent=75 // pred_check_branch
          %737 = sbr.rel (%p735) target = $region84
        $region83: #{tpu_custom_call.1} parent=75 // pred_region
          %s738 = smul.u32 16, %s53
          %p739 = scmp.lt.s32.totalorder %s52, 3
          %s740 = scalar_select %p739, %s52, 3
          %p741 = scmp.lt.s32.totalorder %s738, 31
          %s742 = scalar_select %p741, %s738, 31
          %s743 = smul.addr %s740, 32
          %s744 = sadd.s32 %s742, %s743
          %s745 = smul.addr %s744, 8
          %s746 = scalar_lea.vmem %s16, %s745
          %s747 = smul.u32 16, %s53
        $region84: #{tpu_custom_call.1} parent=75 // pred_fallthru
          _
      $region76: #{tpu_custom_call.1} parent=5 // pred_fallthru
        _
      %p748 = scmp.le.s32.totalorder 1, %s45
      %p749 = scmp.lt.s32.totalorder %s45, 9
      %p750 = pnand %p748, %p749
      %p751 = pneg %p750
      // Predicated region
      $region85: #{tpu_custom_call.1} parent=5 // pred_check
        _
      $region86: #{tpu_custom_call.1} parent=5 // pred_check_branch
        %753 = sbr.rel (%p750) target = $region88
      $region87: #{tpu_custom_call.1} parent=5 // pred_region
        %s754 = ssub.s32 %s45, 1
        // Predicated region
        $region89: #{tpu_custom_call.1} parent=87 // pred_check
          %p755 = pneg %p190
        $region90: #{tpu_custom_call.1} parent=87 // pred_check_branch
          %757 = sbr.rel (%p755) target = $region92
        $region91: #{tpu_custom_call.1} parent=87 // pred_region
          %758 = dma.done [#allocation3], 1024
        $region92: #{tpu_custom_call.1} parent=87 // pred_fallthru
          _
        // Predicated region
        $region93: #{tpu_custom_call.1} parent=87 // pred_check
          %p759 = pneg %p232
        $region94: #{tpu_custom_call.1} parent=87 // pred_check_branch
          %761 = sbr.rel (%p759) target = $region96
        $region95: #{tpu_custom_call.1} parent=87 // pred_region
          %762 = dma.done [#allocation6], 1024
        $region96: #{tpu_custom_call.1} parent=87 // pred_fallthru
          _
        // Predicated region
        $region97: #{tpu_custom_call.1} parent=87 // pred_check
          %p763 = pneg %p253
        $region98: #{tpu_custom_call.1} parent=87 // pred_check_branch
          %765 = sbr.rel (%p763) target = $region100
        $region99: #{tpu_custom_call.1} parent=87 // pred_region
          %766 = dma.done [#allocation6], 1024
        $region100: #{tpu_custom_call.1} parent=87 // pred_fallthru
          _
        // Predicated region
        $region101: #{tpu_custom_call.1} parent=87 // pred_check
          %p767 = pneg %p295
        $region102: #{tpu_custom_call.1} parent=87 // pred_check_branch
          %769 = sbr.rel (%p767) target = $region104
        $region103: #{tpu_custom_call.1} parent=87 // pred_region
          %770 = dma.done [#allocation9], 1024
        $region104: #{tpu_custom_call.1} parent=87 // pred_fallthru
          _
        // Predicated region
        $region105: #{tpu_custom_call.1} parent=87 // pred_check
          %p771 = pneg %p316
        $region106: #{tpu_custom_call.1} parent=87 // pred_check_branch
          %773 = sbr.rel (%p771) target = $region108
        $region107: #{tpu_custom_call.1} parent=87 // pred_region
          %774 = dma.done [#allocation9], 1024
        $region108: #{tpu_custom_call.1} parent=87 // pred_fallthru
          _
        // Predicated region
        $region109: #{tpu_custom_call.1} parent=87 // pred_check
          %p775 = pneg %p337
        $region110: #{tpu_custom_call.1} parent=87 // pred_check_branch
          %777 = sbr.rel (%p775) target = $region112
        $region111: #{tpu_custom_call.1} parent=87 // pred_region
          %778 = dma.done [#allocation12], 1024
        $region112: #{tpu_custom_call.1} parent=87 // pred_fallthru
          _
        // Predicated region
        $region113: #{tpu_custom_call.1} parent=87 // pred_check
          %p779 = pneg %p379
        $region114: #{tpu_custom_call.1} parent=87 // pred_check_branch
          %781 = sbr.rel (%p779) target = $region116
        $region115: #{tpu_custom_call.1} parent=87 // pred_region
          %782 = dma.done [#allocation12], 1024
        $region116: #{tpu_custom_call.1} parent=87 // pred_fallthru
          _
        %s783 = smul.u32 16, %s55
        %p784 = scmp.lt.s32.totalorder %s54, 3
        %s785 = scalar_select %p784, %s54, 3
        %p786 = scmp.lt.s32.totalorder %s783, 31
        %s787 = scalar_select %p786, %s783, 31
        %s788 = smul.addr %s785, 32
        %s789 = sadd.s32 %s787, %s788
        %s790 = smul.addr %s789, 8
        %s791 = scalar_lea.vmem %s0, %s790
        %p792 = pneg %p85
        %p793 = pneg %p82
        %p794 = pneg %p106
        %p795 = pneg %p103
        %p796 = pneg %p127
        %p797 = pneg %p124
        %p798 = pneg %p148
        %p799 = pneg %p145
        %p800 = pneg %p169
        %p801 = pneg %p166
        %p802 = pneg %p190
        %p803 = pneg %p187
        %p804 = pneg %p211
        %p805 = pneg %p208
        %p806 = pneg %p232
        %p807 = pneg %p229
        %p808 = pneg %p253
        %p809 = pneg %p250
        %p810 = pneg %p274
        %p811 = pneg %p271
        %p812 = pneg %p295
        %p813 = pneg %p292
        %p814 = pneg %p316
        %p815 = pneg %p313
        %p816 = pneg %p337
        %p817 = pneg %p334
        %p818 = pneg %p358
        %p819 = pneg %p355
        %p820 = pneg %p379
        %p821 = pneg %p376
        %p822 = pneg %p400
        %p823 = pneg %p397
        %s824 = smul.u32 16, %s55
        %p825 = scmp.lt.s32.totalorder %s54, 3
        %s826 = scalar_select %p825, %s54, 3
        %p827 = scmp.lt.s32.totalorder %s824, 31
        %s828 = scalar_select %p827, %s824, 31
        %s829 = smul.addr %s826, 32
        %s830 = sadd.s32 %s828, %s829
        %s831 = smul.addr %s830, 8
        %s832 = scalar_lea.vmem %s16, %s831
        %p833 = pneg %p428
        %p834 = pneg %p425
        %p835 = pneg %p456
        %p836 = pneg %p453
        %s837 = sand.u32 %s443, 1
        %s838 = scalar_lea.sflag [#allocation4], %s837
        %s839 = sand.u32 %s443, 1
        %s840 = smul.addr %s839, 64
        %s841 = scalar_lea.vmem [#allocation14], %s840
        %p842 = pneg %p484
        %p843 = pneg %p481
        %s844 = sand.u32 %s50, 1
        %s845 = scalar_lea.sflag [#allocation16], %s844
        %s846 = sand.u32 %s471, 1
        %s847 = smul.addr %s846, 64
        %s848 = scalar_lea.vmem [#allocation15], %s847
        %p849 = pneg %p510
        %p850 = pneg %p507
        %s851 = sand.u32 %s50, 1
        %s852 = scalar_lea.sflag [#allocation16], %s851
        %s853 = sand.u32 %s497, 1
        %s854 = scalar_lea.vmem [#allocation17], %s853
        %p855 = pneg %p536
        %p856 = pneg %p533
        %s857 = sand.u32 %s50, 1
        %s858 = scalar_lea.sflag [#allocation19], %s857
        %s859 = sand.u32 %s523, 1
        %s860 = scalar_lea.vmem [#allocation18], %s859
        %p861 = pneg %p562
        %p862 = pneg %p559
        %s863 = sand.u32 %s50, 1
        %s864 = scalar_lea.sflag [#allocation19], %s863
        %s865 = sand.u32 %s549, 1
        %s866 = scalar_lea.vmem [#allocation20], %s865
        %p867 = pneg %p588
        %p868 = pneg %p585
        %s869 = sand.u32 %s575, 1
        %s870 = scalar_lea.sflag [#allocation22], %s869
        %s871 = sand.u32 %s575, 1
        %s872 = scalar_lea.vmem [#allocation21], %s871
        %s873 = smul.u32 16, %s55
        %p874 = scmp.lt.s32.totalorder %s54, 3
        %s875 = scalar_select %p874, %s54, 3
        %p876 = scmp.lt.s32.totalorder %s873, 31
        %s877 = scalar_select %p876, %s873, 31
        %s878 = smul.addr %s875, 32
        %s879 = sadd.s32 %s877, %s878
        %s880 = smul.addr %s879, 8
        %s881 = scalar_lea.vmem %s0, %s880
        %s882 = smul.u32 16, %s55
        %s883 = smul.u32 16, %s55
        %p884 = scmp.lt.s32.totalorder %s54, 3
        %s885 = scalar_select %p884, %s54, 3
        %p886 = scmp.lt.s32.totalorder %s883, 31
        %s887 = scalar_select %p886, %s883, 31
        %s888 = smul.addr %s885, 32
        %s889 = sadd.s32 %s887, %s888
        %s890 = smul.addr %s889, 8
        %s891 = scalar_lea.vmem %s16, %s890
        %s892 = smul.u32 16, %s55
        %s893 = smul.u32 16, %s55
        %s894 = smul.u32 16, %s55
        %v896 = vld [vmem:[%s881] sm:$0xff]
        %v897 = vld [vmem:[%s881 + $0x8] sm:$0xff]
        %v898 = vld [vmem:[%s881 + $0x10] sm:$0xff]
        %v899 = vld [vmem:[%s881 + $0x18] sm:$0xff]
        %v900 = vld [vmem:[%s881 + $0x20] sm:$0xff]
        %v901 = vld [vmem:[%s881 + $0x28] sm:$0xff]
        %v902 = vld [vmem:[%s881 + $0x30] sm:$0xff]
        %v903 = vld [vmem:[%s881 + $0x38] sm:$0xff]
        %v904 = vld [vmem:[%s881 + $0x40] sm:$0xff]
        %v905 = vld [vmem:[%s881 + $0x48] sm:$0xff]
        %v906 = vld [vmem:[%s881 + $0x50] sm:$0xff]
        %v907 = vld [vmem:[%s881 + $0x58] sm:$0xff]
        %v908 = vld [vmem:[%s881 + $0x60] sm:$0xff]
        %v909 = vld [vmem:[%s881 + $0x68] sm:$0xff]
        %v910 = vld [vmem:[%s881 + $0x70] sm:$0xff]
        %v911 = vld [vmem:[%s881 + $0x78] sm:$0xff]
        %v912 = vld [vmem:[%s1] sm:$0xff]
        %v913 = vld [vmem:[%s2] sm:$0x1]
        %v915 = vlaneseq
        %v916 = vshrl.u32 %v915, 7
        %v917 = vsub.s32 0, %v916
        %v918 = vrot.slane %v913, %v917
        %vm920 = vcmask 64512
        %v922 = vsel %vm920, %v896, 0
        %v925 = vsel %vm920, %v897, 0
        %v928 = vsel %vm920, %v898, 0
        %v931 = vsel %vm920, %v899, 0
        %v934 = vsel %vm920, %v900, 0
        %v937 = vsel %vm920, %v901, 0
        %v940 = vsel %vm920, %v902, 0
        %v943 = vsel %vm920, %v903, 0
        %v946 = vsel %vm920, %v904, 0
        %v949 = vsel %vm920, %v905, 0
        %v952 = vsel %vm920, %v906, 0
        %v955 = vsel %vm920, %v907, 0
        %v958 = vsel %vm920, %v908, 0
        %v961 = vsel %vm920, %v909, 0
        %v964 = vsel %vm920, %v910, 0
        %v967 = vsel %vm920, %v911, 0
        %969 = vmatprep.subr.mxu0 0.0
        %970 = vmatpush1.msra.mxu0 %v912
        %971 = vmatprep.subr.mxu0 0.0
        %972 = vmatpush1.msra.mxu0 0.0
        %973 = vmatprep.subr.mxu0 0.0
        %974 = vmatpush1.msra.mxu0 0.0
        %975 = vmatprep.subr.mxu0 0.0
        %976 = vmatpush1.msra.mxu0 0.0
        %977 = vmatprep.subr.mxu0 0.0
        %978 = vmatpush1.msra.mxu0 0.0
        %979 = vmatprep.subr.mxu0 0.0
        %980 = vmatpush1.msra.mxu0 0.0
        %981 = vmatprep.subr.mxu0 0.0
        %982 = vmatpush1.msra.mxu0 0.0
        %983 = vmatprep.subr.mxu0 0.0
        %984 = vmatpush1.msra.mxu0 0.0
        %985 = vmatprep.subr.mxu0 0.0
        %986 = vmatpush1.msra.mxu0 0.0
        %987 = vmatprep.subr.mxu0 0.0
        %988 = vmatpush1.msra.mxu0 0.0
        %989 = vmatprep.subr.mxu0 0.0
        %990 = vmatpush1.msra.mxu0 0.0
        %991 = vmatprep.subr.mxu0 0.0
        %992 = vmatpush1.msra.mxu0 0.0
        %993 = vmatprep.subr.mxu0 0.0
        %994 = vmatpush1.msra.mxu0 0.0
        %995 = vmatprep.subr.mxu0 0.0
        %996 = vmatpush1.msra.mxu0 0.0
        %997 = vmatprep.subr.mxu0 0.0
        %998 = vmatpush1.msra.mxu0 0.0
        %999 = vmatprep.subr.mxu0 0.0
        %1000 = vmatpush1.msra.mxu0 0.0
        %1001 = vmatprep.subr.mxu0 0.0
        %1002 = vmatpush1.msra.mxu0 0.0
        %1003 = vmatprep.subr.mxu0 0.0
        %1004 = vmatpush1.msra.mxu0 0.0
        %1005 = vmatprep.subr.mxu0 0.0
        %1006 = vmatpush1.msra.mxu0 0.0
        %1007 = vmatprep.subr.mxu0 0.0
        %1008 = vmatpush1.msra.mxu0 0.0
        %1009 = vmatprep.subr.mxu0 0.0
        %1010 = vmatpush1.msra.mxu0 0.0
        %1011 = vmatprep.subr.mxu0 0.0
        %1012 = vmatpush1.msra.mxu0 0.0
        %1013 = vmatprep.subr.mxu0 0.0
        %1014 = vmatpush1.msra.mxu0 0.0
        %1015 = vmatprep.subr.mxu0 0.0
        %1016 = vmatpush1.msra.mxu0 0.0
        %1017 = vmatprep.subr.mxu0 0.0
        %1018 = vmatpush1.msra.mxu0 0.0
        %1019 = vmatprep.subr.mxu0 0.0
        %1020 = vmatpush1.msra.mxu0 0.0
        %1021 = vmatprep.subr.mxu0 0.0
        %1022 = vmatpush1.msra.mxu0 0.0
        %1023 = vmatprep.subr.mxu0 0.0
        %1024 = vmatpush1.msra.mxu0 0.0
        %1025 = vmatprep.subr.mxu0 0.0
        %1026 = vmatpush1.msra.mxu0 0.0
        %1027 = vmatprep.subr.mxu0 0.0
        %1028 = vmatpush1.msra.mxu0 0.0
        %1029 = vmatprep.subr.mxu0 0.0
        %1030 = vmatpush1.msra.mxu0 0.0
        %1031 = vmatprep.subr.mxu0 0.0
        %1032 = vmatpush1.msra.mxu0 0.0
        %1033 = vmatprep.mubr.f32.mxu0 0.0
        %1034 = vmatmul.mubr.f32.gmra.mrb[0].mxu0 %v922
        %v1035 = vpop.f32.mrb[0].mxu0
        %v1036 = vadd.f32 %v918, %v1035
        %v1037 = vpop.f32.mrb[0].mxu0
        %1038 = vmatprep.mubr.f32.mxu0 0.0
        %1039 = vmatmul.mubr.f32.gmra.mrb[0].mxu0 %v925
        %v1040 = vpop.f32.mrb[0].mxu0
        %v1041 = vadd.f32 %v918, %v1040
        %v1042 = vpop.f32.mrb[0].mxu0
        %1043 = vmatprep.mubr.f32.mxu0 0.0
        %1044 = vmatmul.mubr.f32.gmra.mrb[0].mxu0 %v928
        %v1045 = vpop.f32.mrb[0].mxu0
        %v1046 = vadd.f32 %v918, %v1045
        %v1047 = vpop.f32.mrb[0].mxu0
        %1048 = vmatprep.mubr.f32.mxu0 0.0
        %1049 = vmatmul.mubr.f32.gmra.mrb[0].mxu0 %v931
        %v1050 = vpop.f32.mrb[0].mxu0
        %v1051 = vadd.f32 %v918, %v1050
        %v1052 = vpop.f32.mrb[0].mxu0
        %1053 = vmatprep.mubr.f32.mxu0 0.0
        %1054 = vmatmul.mubr.f32.gmra.mrb[0].mxu0 %v934
        %v1055 = vpop.f32.mrb[0].mxu0
        %v1056 = vadd.f32 %v918, %v1055
        %v1057 = vpop.f32.mrb[0].mxu0
        %1058 = vmatprep.mubr.f32.mxu0 0.0
        %1059 = vmatmul.mubr.f32.gmra.mrb[0].mxu0 %v937
        %v1060 = vpop.f32.mrb[0].mxu0
        %v1061 = vadd.f32 %v918, %v1060
        %v1062 = vpop.f32.mrb[0].mxu0
        %1063 = vmatprep.mubr.f32.mxu0 0.0
        %1064 = vmatmul.mubr.f32.gmra.mrb[0].mxu0 %v940
        %v1065 = vpop.f32.mrb[0].mxu0
        %v1066 = vadd.f32 %v918, %v1065
        %v1067 = vpop.f32.mrb[0].mxu0
        %1068 = vmatprep.mubr.f32.mxu0 0.0
        %1069 = vmatmul.mubr.f32.gmra.mrb[0].mxu0 %v943
        %v1070 = vpop.f32.mrb[0].mxu0
        %v1071 = vadd.f32 %v918, %v1070
        %v1072 = vpop.f32.mrb[0].mxu0
        %1073 = vmatprep.mubr.f32.mxu0 0.0
        %1074 = vmatmul.mubr.f32.gmra.mrb[0].mxu0 %v946
        %v1075 = vpop.f32.mrb[0].mxu0
        %v1076 = vadd.f32 %v918, %v1075
        %v1077 = vpop.f32.mrb[0].mxu0
        %1078 = vmatprep.mubr.f32.mxu0 0.0
        %1079 = vmatmul.mubr.f32.gmra.mrb[0].mxu0 %v949
        %v1080 = vpop.f32.mrb[0].mxu0
        %v1081 = vadd.f32 %v918, %v1080
        %v1082 = vpop.f32.mrb[0].mxu0
        %1083 = vmatprep.mubr.f32.mxu0 0.0
        %1084 = vmatmul.mubr.f32.gmra.mrb[0].mxu0 %v952
        %v1085 = vpop.f32.mrb[0].mxu0
        %v1086 = vadd.f32 %v918, %v1085
        %v1087 = vpop.f32.mrb[0].mxu0
        %1088 = vmatprep.mubr.f32.mxu0 0.0
        %1089 = vmatmul.mubr.f32.gmra.mrb[0].mxu0 %v955
        %v1090 = vpop.f32.mrb[0].mxu0
        %v1091 = vadd.f32 %v918, %v1090
        %v1092 = vpop.f32.mrb[0].mxu0
        %1093 = vmatprep.mubr.f32.mxu0 0.0
        %1094 = vmatmul.mubr.f32.gmra.mrb[0].mxu0 %v958
        %v1095 = vpop.f32.mrb[0].mxu0
        %v1096 = vadd.f32 %v918, %v1095
        %v1097 = vpop.f32.mrb[0].mxu0
        %1098 = vmatprep.mubr.f32.mxu0 0.0
        %1099 = vmatmul.mubr.f32.gmra.mrb[0].mxu0 %v961
        %v1100 = vpop.f32.mrb[0].mxu0
        %v1101 = vadd.f32 %v918, %v1100
        %v1102 = vpop.f32.mrb[0].mxu0
        %1103 = vmatprep.mubr.f32.mxu0 0.0
        %1104 = vmatmul.mubr.f32.gmra.mrb[0].mxu0 %v964
        %v1105 = vpop.f32.mrb[0].mxu0
        %v1106 = vadd.f32 %v918, %v1105
        %v1107 = vpop.f32.mrb[0].mxu0
        %1108 = vmatprep.mubr.f32.mxu0 0.0
        %1109 = vmatmul.mubr.f32.gmra.mrb[0].mxu0 %v967
        %v1110 = vpop.f32.mrb[0].mxu0
        %v1111 = vadd.f32 %v918, %v1110
        %v1112 = vpop.f32.mrb[0].mxu0
        %1113 = vdwg.mxu0
        %v1114 = vmax.f32 %v1036, 0.0
        %v1115 = vmax.f32 %v1041, 0.0
        %v1116 = vmax.f32 %v1046, 0.0
        %v1117 = vmax.f32 %v1051, 0.0
        %v1118 = vmax.f32 %v1056, 0.0
        %v1119 = vmax.f32 %v1061, 0.0
        %v1120 = vmax.f32 %v1066, 0.0
        %v1121 = vmax.f32 %v1071, 0.0
        %v1122 = vmax.f32 %v1076, 0.0
        %v1123 = vmax.f32 %v1081, 0.0
        %v1124 = vmax.f32 %v1086, 0.0
        %v1125 = vmax.f32 %v1091, 0.0
        %v1126 = vmax.f32 %v1096, 0.0
        %v1127 = vmax.f32 %v1101, 0.0
        %v1128 = vmax.f32 %v1106, 0.0
        %v1129 = vmax.f32 %v1111, 0.0
        %v1130 = vpack.c.bf16 %v1115, %v1114
        %v1131 = vpack.c.bf16 %v1117, %v1116
        %v1132 = vpack.c.bf16 %v1119, %v1118
        %v1133 = vpack.c.bf16 %v1121, %v1120
        %v1134 = vpack.c.bf16 %v1123, %v1122
        %v1135 = vpack.c.bf16 %v1125, %v1124
        %v1136 = vpack.c.bf16 %v1127, %v1126
        %v1137 = vpack.c.bf16 %v1129, %v1128
        %v1138 = vld [vmem:[%s3] sm:$0xf]
        %v1139 = vld [vmem:[%s3 + $0x4] sm:$0xf]
        %v1140 = vld [vmem:[%s3 + $0x8] sm:$0xf]
        %v1141 = vld [vmem:[%s3 + $0xc] sm:$0xf]
        %v1142 = vld [vmem:[%s3 + $0x10] sm:$0xf]
        %v1143 = vld [vmem:[%s3 + $0x14] sm:$0xf]
        %v1144 = vld [vmem:[%s3 + $0x18] sm:$0xf]
        %v1145 = vld [vmem:[%s3 + $0x1c] sm:$0xf]
        %v1146 = vld [vmem:[%s3 + $0x20] sm:$0xf]
        %v1147 = vld [vmem:[%s3 + $0x24] sm:$0xf]
        %v1148 = vld [vmem:[%s3 + $0x28] sm:$0xf]
        %v1149 = vld [vmem:[%s3 + $0x2c] sm:$0xf]
        %v1150 = vld [vmem:[%s3 + $0x30] sm:$0xf]
        %v1151 = vld [vmem:[%s3 + $0x34] sm:$0xf]
        %v1152 = vld [vmem:[%s3 + $0x38] sm:$0xf]
        %v1153 = vld [vmem:[%s3 + $0x3c] sm:$0xf]
        %v1154 = vld [vmem:[%s4] sm:$0x1]
        %v1156 = vlaneseq
        %v1157 = vshrl.u32 %v1156, 7
        %v1158 = vsub.s32 0, %v1157
        %v1159 = vrot.slane %v1154, %v1158
        %v1177 = vunpack.c.l.b16 %v1138
        %v1178 = vunpack.c.l.b16 %v1139
        %v1179 = vunpack.c.l.b16 %v1140
        %v1180 = vunpack.c.l.b16 %v1141
        %v1181 = vunpack.c.l.b16 %v1142
        %v1182 = vunpack.c.l.b16 %v1143
        %v1183 = vunpack.c.l.b16 %v1144
        %v1184 = vunpack.c.l.b16 %v1145
        %v1185 = vunpack.c.l.b16 %v1146
        %v1186 = vunpack.c.l.b16 %v1147
        %v1187 = vunpack.c.l.b16 %v1148
        %v1188 = vunpack.c.l.b16 %v1149
        %v1189 = vunpack.c.l.b16 %v1150
        %v1190 = vunpack.c.l.b16 %v1151
        %v1191 = vunpack.c.l.b16 %v1152
        %v1192 = vunpack.c.l.b16 %v1153
        %v1193 = vpack.c.b16 %v1178, %v1177
        %v1194 = vpack.c.b16 %v1180, %v1179
        %v1195 = vpack.c.b16 %v1182, %v1181
        %v1196 = vpack.c.b16 %v1184, %v1183
        %v1197 = vpack.c.b16 %v1186, %v1185
        %v1198 = vpack.c.b16 %v1188, %v1187
        %v1199 = vpack.c.b16 %v1190, %v1189
        %v1200 = vpack.c.b16 %v1192, %v1191
        %1209 = vmatprep.subr.bf16.mxu0 0
        %1210 = vmatpush1.bf16.msra.mxu0 %v1193
        %1211 = vmatprep.subr.bf16.mxu0 0
        %1212 = vmatpush1.bf16.msra.mxu0 %v1194
        %1213 = vmatprep.subr.bf16.mxu0 0
        %1214 = vmatpush1.bf16.msra.mxu0 %v1195
        %1215 = vmatprep.subr.bf16.mxu0 0
        %1216 = vmatpush1.bf16.msra.mxu0 %v1196
        %1217 = vmatprep.subr.bf16.mxu0 0
        %1218 = vmatpush1.bf16.msra.mxu0 %v1197
        %1219 = vmatprep.subr.bf16.mxu0 0
        %1220 = vmatpush1.bf16.msra.mxu0 %v1198
        %1221 = vmatprep.subr.bf16.mxu0 0
        %1222 = vmatpush1.bf16.msra.mxu0 %v1199
        %1223 = vmatprep.subr.bf16.mxu0 0
        %1224 = vmatpush1.bf16.msra.mxu0 %v1200
        %1225 = vmatprep.subr.bf16.mxu0 0
        %1226 = vmatpush1.bf16.msra.mxu0 0
        %1227 = vmatprep.subr.bf16.mxu0 0
        %1228 = vmatpush1.bf16.msra.mxu0 0
        %1229 = vmatprep.subr.bf16.mxu0 0
        %1230 = vmatpush1.bf16.msra.mxu0 0
        %1231 = vmatprep.subr.bf16.mxu0 0
        %1232 = vmatpush1.bf16.msra.mxu0 0
        %1233 = vmatprep.subr.bf16.mxu0 0
        %1234 = vmatpush1.bf16.msra.mxu0 0
        %1235 = vmatprep.subr.bf16.mxu0 0
        %1236 = vmatpush1.bf16.msra.mxu0 0
        %1237 = vmatprep.subr.bf16.mxu0 0
        %1238 = vmatpush1.bf16.msra.mxu0 0
        %1239 = vmatprep.subr.bf16.mxu0 0
        %1240 = vmatpush1.bf16.msra.mxu0 0
        %1241 = vmatprep.mubr.bf16.mxu0 0
        %1242 = vmatmul.mubr.bf16.gmra.mrb[0].mxu0 %v1130
        %v1243 = vpop.f32.mrb[0].mxu0
        %v1244 = vadd.f32 %v1159, %v1243
        %v1245 = vpop.f32.mrb[0].mxu0
        %v1246 = vpop.f32.mrb[0].mxu0
        %v1247 = vadd.f32 %v1159, %v1246
        %v1248 = vpop.f32.mrb[0].mxu0
        %1249 = vmatprep.mubr.bf16.mxu0 0
        %1250 = vmatmul.mubr.bf16.gmra.mrb[0].mxu0 %v1131
        %v1251 = vpop.f32.mrb[0].mxu0
        %v1252 = vadd.f32 %v1159, %v1251
        %v1253 = vpop.f32.mrb[0].mxu0
        %v1254 = vpop.f32.mrb[0].mxu0
        %v1255 = vadd.f32 %v1159, %v1254
        %v1256 = vpop.f32.mrb[0].mxu0
        %1257 = vmatprep.mubr.bf16.mxu0 0
        %1258 = vmatmul.mubr.bf16.gmra.mrb[0].mxu0 %v1132
        %v1259 = vpop.f32.mrb[0].mxu0
        %v1260 = vadd.f32 %v1159, %v1259
        %v1261 = vpop.f32.mrb[0].mxu0
        %v1262 = vpop.f32.mrb[0].mxu0
        %v1263 = vadd.f32 %v1159, %v1262
        %v1264 = vpop.f32.mrb[0].mxu0
        %1265 = vmatprep.mubr.bf16.mxu0 0
        %1266 = vmatmul.mubr.bf16.gmra.mrb[0].mxu0 %v1133
        %v1267 = vpop.f32.mrb[0].mxu0
        %v1268 = vadd.f32 %v1159, %v1267
        %v1269 = vpop.f32.mrb[0].mxu0
        %v1270 = vpop.f32.mrb[0].mxu0
        %v1271 = vadd.f32 %v1159, %v1270
        %v1272 = vpop.f32.mrb[0].mxu0
        %1273 = vmatprep.mubr.bf16.mxu0 0
        %1274 = vmatmul.mubr.bf16.gmra.mrb[0].mxu0 %v1134
        %v1275 = vpop.f32.mrb[0].mxu0
        %v1276 = vadd.f32 %v1159, %v1275
        %v1277 = vpop.f32.mrb[0].mxu0
        %v1278 = vpop.f32.mrb[0].mxu0
        %v1279 = vadd.f32 %v1159, %v1278
        %v1280 = vpop.f32.mrb[0].mxu0
        %1281 = vmatprep.mubr.bf16.mxu0 0
        %1282 = vmatmul.mubr.bf16.gmra.mrb[0].mxu0 %v1135
        %v1283 = vpop.f32.mrb[0].mxu0
        %v1284 = vadd.f32 %v1159, %v1283
        %v1285 = vpop.f32.mrb[0].mxu0
        %v1286 = vpop.f32.mrb[0].mxu0
        %v1287 = vadd.f32 %v1159, %v1286
        %v1288 = vpop.f32.mrb[0].mxu0
        %1289 = vmatprep.mubr.bf16.mxu0 0
        %1290 = vmatmul.mubr.bf16.gmra.mrb[0].mxu0 %v1136
        %v1291 = vpop.f32.mrb[0].mxu0
        %v1292 = vadd.f32 %v1159, %v1291
        %v1293 = vpop.f32.mrb[0].mxu0
        %v1294 = vpop.f32.mrb[0].mxu0
        %v1295 = vadd.f32 %v1159, %v1294
        %v1296 = vpop.f32.mrb[0].mxu0
        %1297 = vmatprep.mubr.bf16.mxu0 0
        %1298 = vmatmul.mubr.bf16.gmra.mrb[0].mxu0 %v1137
        %v1299 = vpop.f32.mrb[0].mxu0
        %v1300 = vadd.f32 %v1159, %v1299
        %v1301 = vpop.f32.mrb[0].mxu0
        %v1302 = vpop.f32.mrb[0].mxu0
        %v1303 = vadd.f32 %v1159, %v1302
        %v1304 = vpop.f32.mrb[0].mxu0
        %1305 = vdwg.mxu0
        %v1306 = vmax.f32 %v1244, 0.0
        %v1307 = vmax.f32 %v1247, 0.0
        %v1308 = vmax.f32 %v1252, 0.0
        %v1309 = vmax.f32 %v1255, 0.0
        %v1310 = vmax.f32 %v1260, 0.0
        %v1311 = vmax.f32 %v1263, 0.0
        %v1312 = vmax.f32 %v1268, 0.0
        %v1313 = vmax.f32 %v1271, 0.0
        %v1314 = vmax.f32 %v1276, 0.0
        %v1315 = vmax.f32 %v1279, 0.0
        %v1316 = vmax.f32 %v1284, 0.0
        %v1317 = vmax.f32 %v1287, 0.0
        %v1318 = vmax.f32 %v1292, 0.0
        %v1319 = vmax.f32 %v1295, 0.0
        %v1320 = vmax.f32 %v1300, 0.0
        %v1321 = vmax.f32 %v1303, 0.0
        %v1322 = vld [vmem:[#allocation2] sm:$0xf]
        %v1323 = vld [vmem:[#allocation2 + $0x4] sm:$0xf]
        %v1324 = vld [vmem:[#allocation2 + $0x8] sm:$0xf]
        %v1325 = vld [vmem:[#allocation2 + $0xc] sm:$0xf]
        %v1326 = vld [vmem:[#allocation2 + $0x10] sm:$0xf]
        %v1327 = vld [vmem:[#allocation2 + $0x14] sm:$0xf]
        %v1328 = vld [vmem:[#allocation2 + $0x18] sm:$0xf]
        %v1329 = vld [vmem:[#allocation2 + $0x1c] sm:$0xf]
        %v1330 = vld [vmem:[#allocation2 + $0x20] sm:$0xf]
        %v1331 = vld [vmem:[#allocation2 + $0x24] sm:$0xf]
        %v1332 = vld [vmem:[#allocation2 + $0x28] sm:$0xf]
        %v1333 = vld [vmem:[#allocation2 + $0x2c] sm:$0xf]
        %v1334 = vld [vmem:[#allocation2 + $0x30] sm:$0xf]
        %v1335 = vld [vmem:[#allocation2 + $0x34] sm:$0xf]
        %v1336 = vld [vmem:[#allocation2 + $0x38] sm:$0xf]
        %v1337 = vld [vmem:[#allocation2 + $0x3c] sm:$0xf]
        %v1338 = vld [vmem:[%s6] sm:$0x1]
        %v1340 = vlaneseq
        %v1341 = vshrl.u32 %v1340, 7
        %v1342 = vsub.s32 0, %v1341
        %v1343 = vrot.slane %v1338, %v1342
        %v1361 = vunpack.c.l.b16 %v1322
        %v1362 = vunpack.c.l.b16 %v1323
        %v1363 = vunpack.c.l.b16 %v1324
        %v1364 = vunpack.c.l.b16 %v1325
        %v1365 = vunpack.c.l.b16 %v1326
        %v1366 = vunpack.c.l.b16 %v1327
        %v1367 = vunpack.c.l.b16 %v1328
        %v1368 = vunpack.c.l.b16 %v1329
        %v1369 = vunpack.c.l.b16 %v1330
        %v1370 = vunpack.c.l.b16 %v1331
        %v1371 = vunpack.c.l.b16 %v1332
        %v1372 = vunpack.c.l.b16 %v1333
        %v1373 = vunpack.c.l.b16 %v1334
        %v1374 = vunpack.c.l.b16 %v1335
        %v1375 = vunpack.c.l.b16 %v1336
        %v1376 = vunpack.c.l.b16 %v1337
        %v1377 = vpack.c.b16 %v1362, %v1361
        %v1378 = vpack.c.b16 %v1364, %v1363
        %v1379 = vpack.c.b16 %v1366, %v1365
        %v1380 = vpack.c.b16 %v1368, %v1367
        %v1381 = vpack.c.b16 %v1370, %v1369
        %v1382 = vpack.c.b16 %v1372, %v1371
        %v1383 = vpack.c.b16 %v1374, %v1373
        %v1384 = vpack.c.b16 %v1376, %v1375
        %1393 = vmatprep.subr.bf16.mxu0 0
        %1394 = vmatpush1.bf16.msra.mxu0 %v1377
        %1395 = vmatprep.subr.bf16.mxu0 0
        %1396 = vmatpush1.bf16.msra.mxu0 %v1378
        %1397 = vmatprep.subr.bf16.mxu0 0
        %1398 = vmatpush1.bf16.msra.mxu0 %v1379
        %1399 = vmatprep.subr.bf16.mxu0 0
        %1400 = vmatpush1.bf16.msra.mxu0 %v1380
        %1401 = vmatprep.subr.bf16.mxu0 0
        %1402 = vmatpush1.bf16.msra.mxu0 %v1381
        %1403 = vmatprep.subr.bf16.mxu0 0
        %1404 = vmatpush1.bf16.msra.mxu0 %v1382
        %1405 = vmatprep.subr.bf16.mxu0 0
        %1406 = vmatpush1.bf16.msra.mxu0 %v1383
        %1407 = vmatprep.subr.bf16.mxu0 0
        %1408 = vmatpush1.bf16.msra.mxu0 %v1384
        %1409 = vmatprep.subr.bf16.mxu0 0
        %1410 = vmatpush1.bf16.msra.mxu0 0
        %1411 = vmatprep.subr.bf16.mxu0 0
        %1412 = vmatpush1.bf16.msra.mxu0 0
        %1413 = vmatprep.subr.bf16.mxu0 0
        %1414 = vmatpush1.bf16.msra.mxu0 0
        %1415 = vmatprep.subr.bf16.mxu0 0
        %1416 = vmatpush1.bf16.msra.mxu0 0
        %1417 = vmatprep.subr.bf16.mxu0 0
        %1418 = vmatpush1.bf16.msra.mxu0 0
        %1419 = vmatprep.subr.bf16.mxu0 0
        %1420 = vmatpush1.bf16.msra.mxu0 0
        %1421 = vmatprep.subr.bf16.mxu0 0
        %1422 = vmatpush1.bf16.msra.mxu0 0
        %1423 = vmatprep.subr.bf16.mxu0 0
        %1424 = vmatpush1.bf16.msra.mxu0 0
        %1425 = vmatprep.mubr.bf16.mxu0 0
        %1426 = vmatmul.mubr.bf16.gmra.mrb[0].mxu0 %v1130
        %v1427 = vpop.f32.mrb[0].mxu0
        %v1428 = vadd.f32 %v1343, %v1427
        %v1429 = vpop.f32.mrb[0].mxu0
        %v1430 = vpop.f32.mrb[0].mxu0
        %v1431 = vadd.f32 %v1343, %v1430
        %v1432 = vpop.f32.mrb[0].mxu0
        %1433 = vmatprep.mubr.bf16.mxu0 0
        %1434 = vmatmul.mubr.bf16.gmra.mrb[0].mxu0 %v1131
        %v1435 = vpop.f32.mrb[0].mxu0
        %v1436 = vadd.f32 %v1343, %v1435
        %v1437 = vpop.f32.mrb[0].mxu0
        %v1438 = vpop.f32.mrb[0].mxu0
        %v1439 = vadd.f32 %v1343, %v1438
        %v1440 = vpop.f32.mrb[0].mxu0
        %1441 = vmatprep.mubr.bf16.mxu0 0
        %1442 = vmatmul.mubr.bf16.gmra.mrb[0].mxu0 %v1132
        %v1443 = vpop.f32.mrb[0].mxu0
        %v1444 = vadd.f32 %v1343, %v1443
        %v1445 = vpop.f32.mrb[0].mxu0
        %v1446 = vpop.f32.mrb[0].mxu0
        %v1447 = vadd.f32 %v1343, %v1446
        %v1448 = vpop.f32.mrb[0].mxu0
        %1449 = vmatprep.mubr.bf16.mxu0 0
        %1450 = vmatmul.mubr.bf16.gmra.mrb[0].mxu0 %v1133
        %v1451 = vpop.f32.mrb[0].mxu0
        %v1452 = vadd.f32 %v1343, %v1451
        %v1453 = vpop.f32.mrb[0].mxu0
        %v1454 = vpop.f32.mrb[0].mxu0
        %v1455 = vadd.f32 %v1343, %v1454
        %v1456 = vpop.f32.mrb[0].mxu0
        %1457 = vmatprep.mubr.bf16.mxu0 0
        %1458 = vmatmul.mubr.bf16.gmra.mrb[0].mxu0 %v1134
        %v1459 = vpop.f32.mrb[0].mxu0
        %v1460 = vadd.f32 %v1343, %v1459
        %v1461 = vpop.f32.mrb[0].mxu0
        %v1462 = vpop.f32.mrb[0].mxu0
        %v1463 = vadd.f32 %v1343, %v1462
        %v1464 = vpop.f32.mrb[0].mxu0
        %1465 = vmatprep.mubr.bf16.mxu0 0
        %1466 = vmatmul.mubr.bf16.gmra.mrb[0].mxu0 %v1135
        %v1467 = vpop.f32.mrb[0].mxu0
        %v1468 = vadd.f32 %v1343, %v1467
        %v1469 = vpop.f32.mrb[0].mxu0
        %v1470 = vpop.f32.mrb[0].mxu0
        %v1471 = vadd.f32 %v1343, %v1470
        %v1472 = vpop.f32.mrb[0].mxu0
        %1473 = vmatprep.mubr.bf16.mxu0 0
        %1474 = vmatmul.mubr.bf16.gmra.mrb[0].mxu0 %v1136
        %v1475 = vpop.f32.mrb[0].mxu0
        %v1476 = vadd.f32 %v1343, %v1475
        %v1477 = vpop.f32.mrb[0].mxu0
        %v1478 = vpop.f32.mrb[0].mxu0
        %v1479 = vadd.f32 %v1343, %v1478
        %v1480 = vpop.f32.mrb[0].mxu0
        %1481 = vmatprep.mubr.bf16.mxu0 0
        %1482 = vmatmul.mubr.bf16.gmra.mrb[0].mxu0 %v1137
        %v1483 = vpop.f32.mrb[0].mxu0
        %v1484 = vadd.f32 %v1343, %v1483
        %v1485 = vpop.f32.mrb[0].mxu0
        %v1486 = vpop.f32.mrb[0].mxu0
        %v1487 = vadd.f32 %v1343, %v1486
        %v1488 = vpop.f32.mrb[0].mxu0
        %1489 = vdwg.mxu0
        %v1490 = vmax.f32 %v1428, 0.0
        %v1491 = vmax.f32 %v1431, 0.0
        %v1492 = vmax.f32 %v1436, 0.0
        %v1493 = vmax.f32 %v1439, 0.0
        %v1494 = vmax.f32 %v1444, 0.0
        %v1495 = vmax.f32 %v1447, 0.0
        %v1496 = vmax.f32 %v1452, 0.0
        %v1497 = vmax.f32 %v1455, 0.0
        %v1498 = vmax.f32 %v1460, 0.0
        %v1499 = vmax.f32 %v1463, 0.0
        %v1500 = vmax.f32 %v1468, 0.0
        %v1501 = vmax.f32 %v1471, 0.0
        %v1502 = vmax.f32 %v1476, 0.0
        %v1503 = vmax.f32 %v1479, 0.0
        %v1504 = vmax.f32 %v1484, 0.0
        %v1505 = vmax.f32 %v1487, 0.0
        %v1506 = vpack.c.bf16 %v1307, %v1306
        %v1507 = vpack.c.bf16 %v1309, %v1308
        %v1508 = vpack.c.bf16 %v1311, %v1310
        %v1509 = vpack.c.bf16 %v1313, %v1312
        %v1510 = vpack.c.bf16 %v1315, %v1314
        %v1511 = vpack.c.bf16 %v1317, %v1316
        %v1512 = vpack.c.bf16 %v1319, %v1318
        %v1513 = vpack.c.bf16 %v1321, %v1320
        %v1514 = vpack.c.bf16 %v1491, %v1490
        %v1515 = vpack.c.bf16 %v1493, %v1492
        %v1516 = vpack.c.bf16 %v1495, %v1494
        %v1517 = vpack.c.bf16 %v1497, %v1496
        %v1518 = vpack.c.bf16 %v1499, %v1498
        %v1519 = vpack.c.bf16 %v1501, %v1500
        %v1520 = vpack.c.bf16 %v1503, %v1502
        %v1521 = vpack.c.bf16 %v1505, %v1504
        %v1522 = vld [vmem:[#allocation5] sm:$0xf]
        %v1523 = vld [vmem:[#allocation5 + $0x4] sm:$0xf]
        %v1524 = vld [vmem:[#allocation5 + $0x8] sm:$0xf]
        %v1525 = vld [vmem:[#allocation5 + $0xc] sm:$0xf]
        %v1526 = vld [vmem:[#allocation5 + $0x10] sm:$0xf]
        %v1527 = vld [vmem:[#allocation5 + $0x14] sm:$0xf]
        %v1528 = vld [vmem:[#allocation5 + $0x18] sm:$0xf]
        %v1529 = vld [vmem:[#allocation5 + $0x1c] sm:$0xf]
        %v1530 = vld [vmem:[#allocation5 + $0x20] sm:$0xf]
        %v1531 = vld [vmem:[#allocation5 + $0x24] sm:$0xf]
        %v1532 = vld [vmem:[#allocation5 + $0x28] sm:$0xf]
        %v1533 = vld [vmem:[#allocation5 + $0x2c] sm:$0xf]
        %v1534 = vld [vmem:[#allocation5 + $0x30] sm:$0xf]
        %v1535 = vld [vmem:[#allocation5 + $0x34] sm:$0xf]
        %v1536 = vld [vmem:[#allocation5 + $0x38] sm:$0xf]
        %v1537 = vld [vmem:[#allocation5 + $0x3c] sm:$0xf]
        %v1538 = vld [vmem:[#allocation7] sm:$0xf]
        %v1539 = vld [vmem:[#allocation7 + $0x4] sm:$0xf]
        %v1540 = vld [vmem:[#allocation7 + $0x8] sm:$0xf]
        %v1541 = vld [vmem:[#allocation7 + $0xc] sm:$0xf]
        %v1542 = vld [vmem:[#allocation7 + $0x10] sm:$0xf]
        %v1543 = vld [vmem:[#allocation7 + $0x14] sm:$0xf]
        %v1544 = vld [vmem:[#allocation7 + $0x18] sm:$0xf]
        %v1545 = vld [vmem:[#allocation7 + $0x1c] sm:$0xf]
        %v1546 = vld [vmem:[#allocation7 + $0x20] sm:$0xf]
        %v1547 = vld [vmem:[#allocation7 + $0x24] sm:$0xf]
        %v1548 = vld [vmem:[#allocation7 + $0x28] sm:$0xf]
        %v1549 = vld [vmem:[#allocation7 + $0x2c] sm:$0xf]
        %v1550 = vld [vmem:[#allocation7 + $0x30] sm:$0xf]
        %v1551 = vld [vmem:[#allocation7 + $0x34] sm:$0xf]
        %v1552 = vld [vmem:[#allocation7 + $0x38] sm:$0xf]
        %v1553 = vld [vmem:[#allocation7 + $0x3c] sm:$0xf]
        %v1570 = vunpack.c.l.b16 %v1538
        %v1571 = vunpack.c.l.b16 %v1539
        %v1572 = vunpack.c.l.b16 %v1540
        %v1573 = vunpack.c.l.b16 %v1541
        %v1574 = vunpack.c.l.b16 %v1542
        %v1575 = vunpack.c.l.b16 %v1543
        %v1576 = vunpack.c.l.b16 %v1544
        %v1577 = vunpack.c.l.b16 %v1545
        %v1578 = vunpack.c.l.b16 %v1546
        %v1579 = vunpack.c.l.b16 %v1547
        %v1580 = vunpack.c.l.b16 %v1548
        %v1581 = vunpack.c.l.b16 %v1549
        %v1582 = vunpack.c.l.b16 %v1550
        %v1583 = vunpack.c.l.b16 %v1551
        %v1584 = vunpack.c.l.b16 %v1552
        %v1585 = vunpack.c.l.b16 %v1553
        %v1586 = vpack.c.b16 %v1571, %v1570
        %v1587 = vpack.c.b16 %v1573, %v1572
        %v1588 = vpack.c.b16 %v1575, %v1574
        %v1589 = vpack.c.b16 %v1577, %v1576
        %v1590 = vpack.c.b16 %v1579, %v1578
        %v1591 = vpack.c.b16 %v1581, %v1580
        %v1592 = vpack.c.b16 %v1583, %v1582
        %v1593 = vpack.c.b16 %v1585, %v1584
        %1602 = vmatprep.subr.bf16.mxu0 0
        %1603 = vmatpush1.bf16.msra.mxu0 %v1586
        %1604 = vmatprep.subr.bf16.mxu0 0
        %1605 = vmatpush1.bf16.msra.mxu0 %v1587
        %1606 = vmatprep.subr.bf16.mxu0 0
        %1607 = vmatpush1.bf16.msra.mxu0 %v1588
        %1608 = vmatprep.subr.bf16.mxu0 0
        %1609 = vmatpush1.bf16.msra.mxu0 %v1589
        %1610 = vmatprep.subr.bf16.mxu0 0
        %1611 = vmatpush1.bf16.msra.mxu0 %v1590
        %1612 = vmatprep.subr.bf16.mxu0 0
        %1613 = vmatpush1.bf16.msra.mxu0 %v1591
        %1614 = vmatprep.subr.bf16.mxu0 0
        %1615 = vmatpush1.bf16.msra.mxu0 %v1592
        %1616 = vmatprep.subr.bf16.mxu0 0
        %1617 = vmatpush1.bf16.msra.mxu0 %v1593
        %1618 = vmatprep.subr.bf16.mxu0 0
        %1619 = vmatpush1.bf16.msra.mxu0 0
        %1620 = vmatprep.subr.bf16.mxu0 0
        %1621 = vmatpush1.bf16.msra.mxu0 0
        %1622 = vmatprep.subr.bf16.mxu0 0
        %1623 = vmatpush1.bf16.msra.mxu0 0
        %1624 = vmatprep.subr.bf16.mxu0 0
        %1625 = vmatpush1.bf16.msra.mxu0 0
        %1626 = vmatprep.subr.bf16.mxu0 0
        %1627 = vmatpush1.bf16.msra.mxu0 0
        %1628 = vmatprep.subr.bf16.mxu0 0
        %1629 = vmatpush1.bf16.msra.mxu0 0
        %1630 = vmatprep.subr.bf16.mxu0 0
        %1631 = vmatpush1.bf16.msra.mxu0 0
        %1632 = vmatprep.subr.bf16.mxu0 0
        %1633 = vmatpush1.bf16.msra.mxu0 0
        %1634 = vmatprep.mubr.bf16.mxu0 0
        %1635 = vmatmul.mubr.bf16.gmra.mrb[0].mxu0 %v1514
        %v1636 = vpop.f32.mrb[0].mxu0
        %v1637 = vadd.f32 0.0, %v1636
        %v1638 = vpop.f32.mrb[0].mxu0
        %v1639 = vpop.f32.mrb[0].mxu0
        %v1640 = vadd.f32 0.0, %v1639
        %v1641 = vpop.f32.mrb[0].mxu0
        %1642 = vmatprep.mubr.bf16.mxu0 0
        %1643 = vmatmul.mubr.bf16.gmra.mrb[0].mxu0 %v1515
        %v1644 = vpop.f32.mrb[0].mxu0
        %v1645 = vadd.f32 0.0, %v1644
        %v1646 = vpop.f32.mrb[0].mxu0
        %v1647 = vpop.f32.mrb[0].mxu0
        %v1648 = vadd.f32 0.0, %v1647
        %v1649 = vpop.f32.mrb[0].mxu0
        %1650 = vmatprep.mubr.bf16.mxu0 0
        %1651 = vmatmul.mubr.bf16.gmra.mrb[0].mxu0 %v1516
        %v1652 = vpop.f32.mrb[0].mxu0
        %v1653 = vadd.f32 0.0, %v1652
        %v1654 = vpop.f32.mrb[0].mxu0
        %v1655 = vpop.f32.mrb[0].mxu0
        %v1656 = vadd.f32 0.0, %v1655
        %v1657 = vpop.f32.mrb[0].mxu0
        %1658 = vmatprep.mubr.bf16.mxu0 0
        %1659 = vmatmul.mubr.bf16.gmra.mrb[0].mxu0 %v1517
        %v1660 = vpop.f32.mrb[0].mxu0
        %v1661 = vadd.f32 0.0, %v1660
        %v1662 = vpop.f32.mrb[0].mxu0
        %v1663 = vpop.f32.mrb[0].mxu0
        %v1664 = vadd.f32 0.0, %v1663
        %v1665 = vpop.f32.mrb[0].mxu0
        %1666 = vmatprep.mubr.bf16.mxu0 0
        %1667 = vmatmul.mubr.bf16.gmra.mrb[0].mxu0 %v1518
        %v1668 = vpop.f32.mrb[0].mxu0
        %v1669 = vadd.f32 0.0, %v1668
        %v1670 = vpop.f32.mrb[0].mxu0
        %v1671 = vpop.f32.mrb[0].mxu0
        %v1672 = vadd.f32 0.0, %v1671
        %v1673 = vpop.f32.mrb[0].mxu0
        %1674 = vmatprep.mubr.bf16.mxu0 0
        %1675 = vmatmul.mubr.bf16.gmra.mrb[0].mxu0 %v1519
        %v1676 = vpop.f32.mrb[0].mxu0
        %v1677 = vadd.f32 0.0, %v1676
        %v1678 = vpop.f32.mrb[0].mxu0
        %v1679 = vpop.f32.mrb[0].mxu0
        %v1680 = vadd.f32 0.0, %v1679
        %v1681 = vpop.f32.mrb[0].mxu0
        %1682 = vmatprep.mubr.bf16.mxu0 0
        %1683 = vmatmul.mubr.bf16.gmra.mrb[0].mxu0 %v1520
        %v1684 = vpop.f32.mrb[0].mxu0
        %v1685 = vadd.f32 0.0, %v1684
        %v1686 = vpop.f32.mrb[0].mxu0
        %v1687 = vpop.f32.mrb[0].mxu0
        %v1688 = vadd.f32 0.0, %v1687
        %v1689 = vpop.f32.mrb[0].mxu0
        %1690 = vmatprep.mubr.bf16.mxu0 0
        %1691 = vmatmul.mubr.bf16.gmra.mrb[0].mxu0 %v1521
        %v1692 = vpop.f32.mrb[0].mxu0
        %v1693 = vadd.f32 0.0, %v1692
        %v1694 = vpop.f32.mrb[0].mxu0
        %v1695 = vpop.f32.mrb[0].mxu0
        %v1696 = vadd.f32 0.0, %v1695
        %v1697 = vpop.f32.mrb[0].mxu0
        %1698 = vdwg.mxu0
        %v1715 = vunpack.c.l.b16 %v1522
        %v1716 = vunpack.c.l.b16 %v1523
        %v1717 = vunpack.c.l.b16 %v1524
        %v1718 = vunpack.c.l.b16 %v1525
        %v1719 = vunpack.c.l.b16 %v1526
        %v1720 = vunpack.c.l.b16 %v1527
        %v1721 = vunpack.c.l.b16 %v1528
        %v1722 = vunpack.c.l.b16 %v1529
        %v1723 = vunpack.c.l.b16 %v1530
        %v1724 = vunpack.c.l.b16 %v1531
        %v1725 = vunpack.c.l.b16 %v1532
        %v1726 = vunpack.c.l.b16 %v1533
        %v1727 = vunpack.c.l.b16 %v1534
        %v1728 = vunpack.c.l.b16 %v1535
        %v1729 = vunpack.c.l.b16 %v1536
        %v1730 = vunpack.c.l.b16 %v1537
        %v1731 = vpack.c.b16 %v1716, %v1715
        %v1732 = vpack.c.b16 %v1718, %v1717
        %v1733 = vpack.c.b16 %v1720, %v1719
        %v1734 = vpack.c.b16 %v1722, %v1721
        %v1735 = vpack.c.b16 %v1724, %v1723
        %v1736 = vpack.c.b16 %v1726, %v1725
        %v1737 = vpack.c.b16 %v1728, %v1727
        %v1738 = vpack.c.b16 %v1730, %v1729
        %1747 = vmatprep.subr.bf16.mxu0 0
        %1748 = vmatpush1.bf16.msra.mxu0 %v1731
        %1749 = vmatprep.subr.bf16.mxu0 0
        %1750 = vmatpush1.bf16.msra.mxu0 %v1732
        %1751 = vmatprep.subr.bf16.mxu0 0
        %1752 = vmatpush1.bf16.msra.mxu0 %v1733
        %1753 = vmatprep.subr.bf16.mxu0 0
        %1754 = vmatpush1.bf16.msra.mxu0 %v1734
        %1755 = vmatprep.subr.bf16.mxu0 0
        %1756 = vmatpush1.bf16.msra.mxu0 %v1735
        %1757 = vmatprep.subr.bf16.mxu0 0
        %1758 = vmatpush1.bf16.msra.mxu0 %v1736
        %1759 = vmatprep.subr.bf16.mxu0 0
        %1760 = vmatpush1.bf16.msra.mxu0 %v1737
        %1761 = vmatprep.subr.bf16.mxu0 0
        %1762 = vmatpush1.bf16.msra.mxu0 %v1738
        %1763 = vmatprep.subr.bf16.mxu0 0
        %1764 = vmatpush1.bf16.msra.mxu0 0
        %1765 = vmatprep.subr.bf16.mxu0 0
        %1766 = vmatpush1.bf16.msra.mxu0 0
        %1767 = vmatprep.subr.bf16.mxu0 0
        %1768 = vmatpush1.bf16.msra.mxu0 0
        %1769 = vmatprep.subr.bf16.mxu0 0
        %1770 = vmatpush1.bf16.msra.mxu0 0
        %1771 = vmatprep.subr.bf16.mxu0 0
        %1772 = vmatpush1.bf16.msra.mxu0 0
        %1773 = vmatprep.subr.bf16.mxu0 0
        %1774 = vmatpush1.bf16.msra.mxu0 0
        %1775 = vmatprep.subr.bf16.mxu0 0
        %1776 = vmatpush1.bf16.msra.mxu0 0
        %1777 = vmatprep.subr.bf16.mxu0 0
        %1778 = vmatpush1.bf16.msra.mxu0 0
        %1779 = vmatprep.mubr.bf16.mxu0 0
        %1780 = vmatmul.mubr.bf16.gmra.mrb[0].mxu0 %v1506
        %v1781 = vpop.f32.mrb[0].mxu0
        %v1782 = vadd.f32 %v1637, %v1781
        %v1783 = vpop.f32.mrb[0].mxu0
        %v1784 = vpop.f32.mrb[0].mxu0
        %v1785 = vadd.f32 %v1640, %v1784
        %v1786 = vpop.f32.mrb[0].mxu0
        %1787 = vmatprep.mubr.bf16.mxu0 0
        %1788 = vmatmul.mubr.bf16.gmra.mrb[0].mxu0 %v1507
        %v1789 = vpop.f32.mrb[0].mxu0
        %v1790 = vadd.f32 %v1645, %v1789
        %v1791 = vpop.f32.mrb[0].mxu0
        %v1792 = vpop.f32.mrb[0].mxu0
        %v1793 = vadd.f32 %v1648, %v1792
        %v1794 = vpop.f32.mrb[0].mxu0
        %1795 = vmatprep.mubr.bf16.mxu0 0
        %1796 = vmatmul.mubr.bf16.gmra.mrb[0].mxu0 %v1508
        %v1797 = vpop.f32.mrb[0].mxu0
        %v1798 = vadd.f32 %v1653, %v1797
        %v1799 = vpop.f32.mrb[0].mxu0
        %v1800 = vpop.f32.mrb[0].mxu0
        %v1801 = vadd.f32 %v1656, %v1800
        %v1802 = vpop.f32.mrb[0].mxu0
        %1803 = vmatprep.mubr.bf16.mxu0 0
        %1804 = vmatmul.mubr.bf16.gmra.mrb[0].mxu0 %v1509
        %v1805 = vpop.f32.mrb[0].mxu0
        %v1806 = vadd.f32 %v1661, %v1805
        %v1807 = vpop.f32.mrb[0].mxu0
        %v1808 = vpop.f32.mrb[0].mxu0
        %v1809 = vadd.f32 %v1664, %v1808
        %v1810 = vpop.f32.mrb[0].mxu0
        %1811 = vmatprep.mubr.bf16.mxu0 0
        %1812 = vmatmul.mubr.bf16.gmra.mrb[0].mxu0 %v1510
        %v1813 = vpop.f32.mrb[0].mxu0
        %v1814 = vadd.f32 %v1669, %v1813
        %v1815 = vpop.f32.mrb[0].mxu0
        %v1816 = vpop.f32.mrb[0].mxu0
        %v1817 = vadd.f32 %v1672, %v1816
        %v1818 = vpop.f32.mrb[0].mxu0
        %1819 = vmatprep.mubr.bf16.mxu0 0
        %1820 = vmatmul.mubr.bf16.gmra.mrb[0].mxu0 %v1511
        %v1821 = vpop.f32.mrb[0].mxu0
        %v1822 = vadd.f32 %v1677, %v1821
        %v1823 = vpop.f32.mrb[0].mxu0
        %v1824 = vpop.f32.mrb[0].mxu0
        %v1825 = vadd.f32 %v1680, %v1824
        %v1826 = vpop.f32.mrb[0].mxu0
        %1827 = vmatprep.mubr.bf16.mxu0 0
        %1828 = vmatmul.mubr.bf16.gmra.mrb[0].mxu0 %v1512
        %v1829 = vpop.f32.mrb[0].mxu0
        %v1830 = vadd.f32 %v1685, %v1829
        %v1831 = vpop.f32.mrb[0].mxu0
        %v1832 = vpop.f32.mrb[0].mxu0
        %v1833 = vadd.f32 %v1688, %v1832
        %v1834 = vpop.f32.mrb[0].mxu0
        %1835 = vmatprep.mubr.bf16.mxu0 0
        %1836 = vmatmul.mubr.bf16.gmra.mrb[0].mxu0 %v1513
        %v1837 = vpop.f32.mrb[0].mxu0
        %v1838 = vadd.f32 %v1693, %v1837
        %v1839 = vpop.f32.mrb[0].mxu0
        %v1840 = vpop.f32.mrb[0].mxu0
        %v1841 = vadd.f32 %v1696, %v1840
        %v1842 = vpop.f32.mrb[0].mxu0
        %1843 = vdwg.mxu0
        %v1844 = vld [vmem:[%s9] sm:$0x1]
        %v1846 = vlaneseq
        %v1847 = vshrl.u32 %v1846, 7
        %v1848 = vsub.s32 0, %v1847
        %v1849 = vrot.slane %v1844, %v1848
        %v1851 = vadd.f32 %v1782, %v1849
        %v1852 = vadd.f32 %v1785, %v1849
        %v1853 = vadd.f32 %v1790, %v1849
        %v1854 = vadd.f32 %v1793, %v1849
        %v1855 = vadd.f32 %v1798, %v1849
        %v1856 = vadd.f32 %v1801, %v1849
        %v1857 = vadd.f32 %v1806, %v1849
        %v1858 = vadd.f32 %v1809, %v1849
        %v1859 = vadd.f32 %v1814, %v1849
        %v1860 = vadd.f32 %v1817, %v1849
        %v1861 = vadd.f32 %v1822, %v1849
        %v1862 = vadd.f32 %v1825, %v1849
        %v1863 = vadd.f32 %v1830, %v1849
        %v1864 = vadd.f32 %v1833, %v1849
        %v1865 = vadd.f32 %v1838, %v1849
        %v1866 = vadd.f32 %v1841, %v1849
        %v1867 = vld [vmem:[#allocation8] sm:$0xf]
        %v1868 = vld [vmem:[#allocation8 + $0x4] sm:$0xf]
        %v1869 = vld [vmem:[#allocation8 + $0x8] sm:$0xf]
        %v1870 = vld [vmem:[#allocation8 + $0xc] sm:$0xf]
        %v1871 = vld [vmem:[#allocation8 + $0x10] sm:$0xf]
        %v1872 = vld [vmem:[#allocation8 + $0x14] sm:$0xf]
        %v1873 = vld [vmem:[#allocation8 + $0x18] sm:$0xf]
        %v1874 = vld [vmem:[#allocation8 + $0x1c] sm:$0xf]
        %v1875 = vld [vmem:[#allocation8 + $0x20] sm:$0xf]
        %v1876 = vld [vmem:[#allocation8 + $0x24] sm:$0xf]
        %v1877 = vld [vmem:[#allocation8 + $0x28] sm:$0xf]
        %v1878 = vld [vmem:[#allocation8 + $0x2c] sm:$0xf]
        %v1879 = vld [vmem:[#allocation8 + $0x30] sm:$0xf]
        %v1880 = vld [vmem:[#allocation8 + $0x34] sm:$0xf]
        %v1881 = vld [vmem:[#allocation8 + $0x38] sm:$0xf]
        %v1882 = vld [vmem:[#allocation8 + $0x3c] sm:$0xf]
        %v1883 = vld [vmem:[#allocation10] sm:$0xf]
        %v1884 = vld [vmem:[#allocation10 + $0x4] sm:$0xf]
        %v1885 = vld [vmem:[#allocation10 + $0x8] sm:$0xf]
        %v1886 = vld [vmem:[#allocation10 + $0xc] sm:$0xf]
        %v1887 = vld [vmem:[#allocation10 + $0x10] sm:$0xf]
        %v1888 = vld [vmem:[#allocation10 + $0x14] sm:$0xf]
        %v1889 = vld [vmem:[#allocation10 + $0x18] sm:$0xf]
        %v1890 = vld [vmem:[#allocation10 + $0x1c] sm:$0xf]
        %v1891 = vld [vmem:[#allocation10 + $0x20] sm:$0xf]
        %v1892 = vld [vmem:[#allocation10 + $0x24] sm:$0xf]
        %v1893 = vld [vmem:[#allocation10 + $0x28] sm:$0xf]
        %v1894 = vld [vmem:[#allocation10 + $0x2c] sm:$0xf]
        %v1895 = vld [vmem:[#allocation10 + $0x30] sm:$0xf]
        %v1896 = vld [vmem:[#allocation10 + $0x34] sm:$0xf]
        %v1897 = vld [vmem:[#allocation10 + $0x38] sm:$0xf]
        %v1898 = vld [vmem:[#allocation10 + $0x3c] sm:$0xf]
        %v1915 = vunpack.c.l.b16 %v1883
        %v1916 = vunpack.c.l.b16 %v1884
        %v1917 = vunpack.c.l.b16 %v1885
        %v1918 = vunpack.c.l.b16 %v1886
        %v1919 = vunpack.c.l.b16 %v1887
        %v1920 = vunpack.c.l.b16 %v1888
        %v1921 = vunpack.c.l.b16 %v1889
        %v1922 = vunpack.c.l.b16 %v1890
        %v1923 = vunpack.c.l.b16 %v1891
        %v1924 = vunpack.c.l.b16 %v1892
        %v1925 = vunpack.c.l.b16 %v1893
        %v1926 = vunpack.c.l.b16 %v1894
        %v1927 = vunpack.c.l.b16 %v1895
        %v1928 = vunpack.c.l.b16 %v1896
        %v1929 = vunpack.c.l.b16 %v1897
        %v1930 = vunpack.c.l.b16 %v1898
        %v1931 = vpack.c.b16 %v1916, %v1915
        %v1932 = vpack.c.b16 %v1918, %v1917
        %v1933 = vpack.c.b16 %v1920, %v1919
        %v1934 = vpack.c.b16 %v1922, %v1921
        %v1935 = vpack.c.b16 %v1924, %v1923
        %v1936 = vpack.c.b16 %v1926, %v1925
        %v1937 = vpack.c.b16 %v1928, %v1927
        %v1938 = vpack.c.b16 %v1930, %v1929
        %1947 = vmatprep.subr.bf16.mxu0 0
        %1948 = vmatpush1.bf16.msra.mxu0 %v1931
        %1949 = vmatprep.subr.bf16.mxu0 0
        %1950 = vmatpush1.bf16.msra.mxu0 %v1932
        %1951 = vmatprep.subr.bf16.mxu0 0
        %1952 = vmatpush1.bf16.msra.mxu0 %v1933
        %1953 = vmatprep.subr.bf16.mxu0 0
        %1954 = vmatpush1.bf16.msra.mxu0 %v1934
        %1955 = vmatprep.subr.bf16.mxu0 0
        %1956 = vmatpush1.bf16.msra.mxu0 %v1935
        %1957 = vmatprep.subr.bf16.mxu0 0
        %1958 = vmatpush1.bf16.msra.mxu0 %v1936
        %1959 = vmatprep.subr.bf16.mxu0 0
        %1960 = vmatpush1.bf16.msra.mxu0 %v1937
        %1961 = vmatprep.subr.bf16.mxu0 0
        %1962 = vmatpush1.bf16.msra.mxu0 %v1938
        %1963 = vmatprep.subr.bf16.mxu0 0
        %1964 = vmatpush1.bf16.msra.mxu0 0
        %1965 = vmatprep.subr.bf16.mxu0 0
        %1966 = vmatpush1.bf16.msra.mxu0 0
        %1967 = vmatprep.subr.bf16.mxu0 0
        %1968 = vmatpush1.bf16.msra.mxu0 0
        %1969 = vmatprep.subr.bf16.mxu0 0
        %1970 = vmatpush1.bf16.msra.mxu0 0
        %1971 = vmatprep.subr.bf16.mxu0 0
        %1972 = vmatpush1.bf16.msra.mxu0 0
        %1973 = vmatprep.subr.bf16.mxu0 0
        %1974 = vmatpush1.bf16.msra.mxu0 0
        %1975 = vmatprep.subr.bf16.mxu0 0
        %1976 = vmatpush1.bf16.msra.mxu0 0
        %1977 = vmatprep.subr.bf16.mxu0 0
        %1978 = vmatpush1.bf16.msra.mxu0 0
        %1979 = vmatprep.mubr.bf16.mxu0 0
        %1980 = vmatmul.mubr.bf16.gmra.mrb[0].mxu0 %v1506
        %v1981 = vpop.f32.mrb[0].mxu0
        %v1982 = vadd.f32 0.0, %v1981
        %v1983 = vpop.f32.mrb[0].mxu0
        %v1984 = vpop.f32.mrb[0].mxu0
        %v1985 = vadd.f32 0.0, %v1984
        %v1986 = vpop.f32.mrb[0].mxu0
        %1987 = vmatprep.mubr.bf16.mxu0 0
        %1988 = vmatmul.mubr.bf16.gmra.mrb[0].mxu0 %v1507
        %v1989 = vpop.f32.mrb[0].mxu0
        %v1990 = vadd.f32 0.0, %v1989
        %v1991 = vpop.f32.mrb[0].mxu0
        %v1992 = vpop.f32.mrb[0].mxu0
        %v1993 = vadd.f32 0.0, %v1992
        %v1994 = vpop.f32.mrb[0].mxu0
        %1995 = vmatprep.mubr.bf16.mxu0 0
        %1996 = vmatmul.mubr.bf16.gmra.mrb[0].mxu0 %v1508
        %v1997 = vpop.f32.mrb[0].mxu0
        %v1998 = vadd.f32 0.0, %v1997
        %v1999 = vpop.f32.mrb[0].mxu0
        %v2000 = vpop.f32.mrb[0].mxu0
        %v2001 = vadd.f32 0.0, %v2000
        %v2002 = vpop.f32.mrb[0].mxu0
        %2003 = vmatprep.mubr.bf16.mxu0 0
        %2004 = vmatmul.mubr.bf16.gmra.mrb[0].mxu0 %v1509
        %v2005 = vpop.f32.mrb[0].mxu0
        %v2006 = vadd.f32 0.0, %v2005
        %v2007 = vpop.f32.mrb[0].mxu0
        %v2008 = vpop.f32.mrb[0].mxu0
        %v2009 = vadd.f32 0.0, %v2008
        %v2010 = vpop.f32.mrb[0].mxu0
        %2011 = vmatprep.mubr.bf16.mxu0 0
        %2012 = vmatmul.mubr.bf16.gmra.mrb[0].mxu0 %v1510
        %v2013 = vpop.f32.mrb[0].mxu0
        %v2014 = vadd.f32 0.0, %v2013
        %v2015 = vpop.f32.mrb[0].mxu0
        %v2016 = vpop.f32.mrb[0].mxu0
        %v2017 = vadd.f32 0.0, %v2016
        %v2018 = vpop.f32.mrb[0].mxu0
        %2019 = vmatprep.mubr.bf16.mxu0 0
        %2020 = vmatmul.mubr.bf16.gmra.mrb[0].mxu0 %v1511
        %v2021 = vpop.f32.mrb[0].mxu0
        %v2022 = vadd.f32 0.0, %v2021
        %v2023 = vpop.f32.mrb[0].mxu0
        %v2024 = vpop.f32.mrb[0].mxu0
        %v2025 = vadd.f32 0.0, %v2024
        %v2026 = vpop.f32.mrb[0].mxu0
        %2027 = vmatprep.mubr.bf16.mxu0 0
        %2028 = vmatmul.mubr.bf16.gmra.mrb[0].mxu0 %v1512
        %v2029 = vpop.f32.mrb[0].mxu0
        %v2030 = vadd.f32 0.0, %v2029
        %v2031 = vpop.f32.mrb[0].mxu0
        %v2032 = vpop.f32.mrb[0].mxu0
        %v2033 = vadd.f32 0.0, %v2032
        %v2034 = vpop.f32.mrb[0].mxu0
        %2035 = vmatprep.mubr.bf16.mxu0 0
        %2036 = vmatmul.mubr.bf16.gmra.mrb[0].mxu0 %v1513
        %v2037 = vpop.f32.mrb[0].mxu0
        %v2038 = vadd.f32 0.0, %v2037
        %v2039 = vpop.f32.mrb[0].mxu0
        %v2040 = vpop.f32.mrb[0].mxu0
        %v2041 = vadd.f32 0.0, %v2040
        %v2042 = vpop.f32.mrb[0].mxu0
        %2043 = vdwg.mxu0
        %v2060 = vunpack.c.l.b16 %v1867
        %v2061 = vunpack.c.l.b16 %v1868
        %v2062 = vunpack.c.l.b16 %v1869
        %v2063 = vunpack.c.l.b16 %v1870
        %v2064 = vunpack.c.l.b16 %v1871
        %v2065 = vunpack.c.l.b16 %v1872
        %v2066 = vunpack.c.l.b16 %v1873
        %v2067 = vunpack.c.l.b16 %v1874
        %v2068 = vunpack.c.l.b16 %v1875
        %v2069 = vunpack.c.l.b16 %v1876
        %v2070 = vunpack.c.l.b16 %v1877
        %v2071 = vunpack.c.l.b16 %v1878
        %v2072 = vunpack.c.l.b16 %v1879
        %v2073 = vunpack.c.l.b16 %v1880
        %v2074 = vunpack.c.l.b16 %v1881
        %v2075 = vunpack.c.l.b16 %v1882
        %v2076 = vpack.c.b16 %v2061, %v2060
        %v2077 = vpack.c.b16 %v2063, %v2062
        %v2078 = vpack.c.b16 %v2065, %v2064
        %v2079 = vpack.c.b16 %v2067, %v2066
        %v2080 = vpack.c.b16 %v2069, %v2068
        %v2081 = vpack.c.b16 %v2071, %v2070
        %v2082 = vpack.c.b16 %v2073, %v2072
        %v2083 = vpack.c.b16 %v2075, %v2074
        %2092 = vmatprep.subr.bf16.mxu0 0
        %2093 = vmatpush1.bf16.msra.mxu0 %v2076
        %2094 = vmatprep.subr.bf16.mxu0 0
        %2095 = vmatpush1.bf16.msra.mxu0 %v2077
        %2096 = vmatprep.subr.bf16.mxu0 0
        %2097 = vmatpush1.bf16.msra.mxu0 %v2078
        %2098 = vmatprep.subr.bf16.mxu0 0
        %2099 = vmatpush1.bf16.msra.mxu0 %v2079
        %2100 = vmatprep.subr.bf16.mxu0 0
        %2101 = vmatpush1.bf16.msra.mxu0 %v2080
        %2102 = vmatprep.subr.bf16.mxu0 0
        %2103 = vmatpush1.bf16.msra.mxu0 %v2081
        %2104 = vmatprep.subr.bf16.mxu0 0
        %2105 = vmatpush1.bf16.msra.mxu0 %v2082
        %2106 = vmatprep.subr.bf16.mxu0 0
        %2107 = vmatpush1.bf16.msra.mxu0 %v2083
        %2108 = vmatprep.subr.bf16.mxu0 0
        %2109 = vmatpush1.bf16.msra.mxu0 0
        %2110 = vmatprep.subr.bf16.mxu0 0
        %2111 = vmatpush1.bf16.msra.mxu0 0
        %2112 = vmatprep.subr.bf16.mxu0 0
        %2113 = vmatpush1.bf16.msra.mxu0 0
        %2114 = vmatprep.subr.bf16.mxu0 0
        %2115 = vmatpush1.bf16.msra.mxu0 0
        %2116 = vmatprep.subr.bf16.mxu0 0
        %2117 = vmatpush1.bf16.msra.mxu0 0
        %2118 = vmatprep.subr.bf16.mxu0 0
        %2119 = vmatpush1.bf16.msra.mxu0 0
        %2120 = vmatprep.subr.bf16.mxu0 0
        %2121 = vmatpush1.bf16.msra.mxu0 0
        %2122 = vmatprep.subr.bf16.mxu0 0
        %2123 = vmatpush1.bf16.msra.mxu0 0
        %2124 = vmatprep.mubr.bf16.mxu0 0
        %2125 = vmatmul.mubr.bf16.gmra.mrb[0].mxu0 %v1130
        %v2126 = vpop.f32.mrb[0].mxu0
        %v2127 = vadd.f32 %v1982, %v2126
        %v2128 = vpop.f32.mrb[0].mxu0
        %v2129 = vpop.f32.mrb[0].mxu0
        %v2130 = vadd.f32 %v1985, %v2129
        %v2131 = vpop.f32.mrb[0].mxu0
        %2132 = vmatprep.mubr.bf16.mxu0 0
        %2133 = vmatmul.mubr.bf16.gmra.mrb[0].mxu0 %v1131
        %v2134 = vpop.f32.mrb[0].mxu0
        %v2135 = vadd.f32 %v1990, %v2134
        %v2136 = vpop.f32.mrb[0].mxu0
        %v2137 = vpop.f32.mrb[0].mxu0
        %v2138 = vadd.f32 %v1993, %v2137
        %v2139 = vpop.f32.mrb[0].mxu0
        %2140 = vmatprep.mubr.bf16.mxu0 0
        %2141 = vmatmul.mubr.bf16.gmra.mrb[0].mxu0 %v1132
        %v2142 = vpop.f32.mrb[0].mxu0
        %v2143 = vadd.f32 %v1998, %v2142
        %v2144 = vpop.f32.mrb[0].mxu0
        %v2145 = vpop.f32.mrb[0].mxu0
        %v2146 = vadd.f32 %v2001, %v2145
        %v2147 = vpop.f32.mrb[0].mxu0
        %2148 = vmatprep.mubr.bf16.mxu0 0
        %2149 = vmatmul.mubr.bf16.gmra.mrb[0].mxu0 %v1133
        %v2150 = vpop.f32.mrb[0].mxu0
        %v2151 = vadd.f32 %v2006, %v2150
        %v2152 = vpop.f32.mrb[0].mxu0
        %v2153 = vpop.f32.mrb[0].mxu0
        %v2154 = vadd.f32 %v2009, %v2153
        %v2155 = vpop.f32.mrb[0].mxu0
        %2156 = vmatprep.mubr.bf16.mxu0 0
        %2157 = vmatmul.mubr.bf16.gmra.mrb[0].mxu0 %v1134
        %v2158 = vpop.f32.mrb[0].mxu0
        %v2159 = vadd.f32 %v2014, %v2158
        %v2160 = vpop.f32.mrb[0].mxu0
        %v2161 = vpop.f32.mrb[0].mxu0
        %v2162 = vadd.f32 %v2017, %v2161
        %v2163 = vpop.f32.mrb[0].mxu0
        %2164 = vmatprep.mubr.bf16.mxu0 0
        %2165 = vmatmul.mubr.bf16.gmra.mrb[0].mxu0 %v1135
        %v2166 = vpop.f32.mrb[0].mxu0
        %v2167 = vadd.f32 %v2022, %v2166
        %v2168 = vpop.f32.mrb[0].mxu0
        %v2169 = vpop.f32.mrb[0].mxu0
        %v2170 = vadd.f32 %v2025, %v2169
        %v2171 = vpop.f32.mrb[0].mxu0
        %2172 = vmatprep.mubr.bf16.mxu0 0
        %2173 = vmatmul.mubr.bf16.gmra.mrb[0].mxu0 %v1136
        %v2174 = vpop.f32.mrb[0].mxu0
        %v2175 = vadd.f32 %v2030, %v2174
        %v2176 = vpop.f32.mrb[0].mxu0
        %v2177 = vpop.f32.mrb[0].mxu0
        %v2178 = vadd.f32 %v2033, %v2177
        %v2179 = vpop.f32.mrb[0].mxu0
        %2180 = vmatprep.mubr.bf16.mxu0 0
        %2181 = vmatmul.mubr.bf16.gmra.mrb[0].mxu0 %v1137
        %v2182 = vpop.f32.mrb[0].mxu0
        %v2183 = vadd.f32 %v2038, %v2182
        %v2184 = vpop.f32.mrb[0].mxu0
        %v2185 = vpop.f32.mrb[0].mxu0
        %v2186 = vadd.f32 %v2041, %v2185
        %v2187 = vpop.f32.mrb[0].mxu0
        %2188 = vdwg.mxu0
        %v2189 = vld [vmem:[#allocation11] sm:$0xf]
        %v2190 = vld [vmem:[#allocation11 + $0x4] sm:$0xf]
        %v2191 = vld [vmem:[#allocation11 + $0x8] sm:$0xf]
        %v2192 = vld [vmem:[#allocation11 + $0xc] sm:$0xf]
        %v2193 = vld [vmem:[#allocation11 + $0x10] sm:$0xf]
        %v2194 = vld [vmem:[#allocation11 + $0x14] sm:$0xf]
        %v2195 = vld [vmem:[#allocation11 + $0x18] sm:$0xf]
        %v2196 = vld [vmem:[#allocation11 + $0x1c] sm:$0xf]
        %v2197 = vld [vmem:[#allocation11 + $0x20] sm:$0xf]
        %v2198 = vld [vmem:[#allocation11 + $0x24] sm:$0xf]
        %v2199 = vld [vmem:[#allocation11 + $0x28] sm:$0xf]
        %v2200 = vld [vmem:[#allocation11 + $0x2c] sm:$0xf]
        %v2201 = vld [vmem:[#allocation11 + $0x30] sm:$0xf]
        %v2202 = vld [vmem:[#allocation11 + $0x34] sm:$0xf]
        %v2203 = vld [vmem:[#allocation11 + $0x38] sm:$0xf]
        %v2204 = vld [vmem:[#allocation11 + $0x3c] sm:$0xf]
        %v2221 = vunpack.c.l.b16 %v2189
        %v2222 = vunpack.c.l.b16 %v2190
        %v2223 = vunpack.c.l.b16 %v2191
        %v2224 = vunpack.c.l.b16 %v2192
        %v2225 = vunpack.c.l.b16 %v2193
        %v2226 = vunpack.c.l.b16 %v2194
        %v2227 = vunpack.c.l.b16 %v2195
        %v2228 = vunpack.c.l.b16 %v2196
        %v2229 = vunpack.c.l.b16 %v2197
        %v2230 = vunpack.c.l.b16 %v2198
        %v2231 = vunpack.c.l.b16 %v2199
        %v2232 = vunpack.c.l.b16 %v2200
        %v2233 = vunpack.c.l.b16 %v2201
        %v2234 = vunpack.c.l.b16 %v2202
        %v2235 = vunpack.c.l.b16 %v2203
        %v2236 = vunpack.c.l.b16 %v2204
        %v2237 = vpack.c.b16 %v2222, %v2221
        %v2238 = vpack.c.b16 %v2224, %v2223
        %v2239 = vpack.c.b16 %v2226, %v2225
        %v2240 = vpack.c.b16 %v2228, %v2227
        %v2241 = vpack.c.b16 %v2230, %v2229
        %v2242 = vpack.c.b16 %v2232, %v2231
        %v2243 = vpack.c.b16 %v2234, %v2233
        %v2244 = vpack.c.b16 %v2236, %v2235
        %2253 = vmatprep.subr.bf16.mxu0 0
        %2254 = vmatpush1.bf16.msra.mxu0 %v2237
        %2255 = vmatprep.subr.bf16.mxu0 0
        %2256 = vmatpush1.bf16.msra.mxu0 %v2238
        %2257 = vmatprep.subr.bf16.mxu0 0
        %2258 = vmatpush1.bf16.msra.mxu0 %v2239
        %2259 = vmatprep.subr.bf16.mxu0 0
        %2260 = vmatpush1.bf16.msra.mxu0 %v2240
        %2261 = vmatprep.subr.bf16.mxu0 0
        %2262 = vmatpush1.bf16.msra.mxu0 %v2241
        %2263 = vmatprep.subr.bf16.mxu0 0
        %2264 = vmatpush1.bf16.msra.mxu0 %v2242
        %2265 = vmatprep.subr.bf16.mxu0 0
        %2266 = vmatpush1.bf16.msra.mxu0 %v2243
        %2267 = vmatprep.subr.bf16.mxu0 0
        %2268 = vmatpush1.bf16.msra.mxu0 %v2244
        %2269 = vmatprep.subr.bf16.mxu0 0
        %2270 = vmatpush1.bf16.msra.mxu0 0
        %2271 = vmatprep.subr.bf16.mxu0 0
        %2272 = vmatpush1.bf16.msra.mxu0 0
        %2273 = vmatprep.subr.bf16.mxu0 0
        %2274 = vmatpush1.bf16.msra.mxu0 0
        %2275 = vmatprep.subr.bf16.mxu0 0
        %2276 = vmatpush1.bf16.msra.mxu0 0
        %2277 = vmatprep.subr.bf16.mxu0 0
        %2278 = vmatpush1.bf16.msra.mxu0 0
        %2279 = vmatprep.subr.bf16.mxu0 0
        %2280 = vmatpush1.bf16.msra.mxu0 0
        %2281 = vmatprep.subr.bf16.mxu0 0
        %2282 = vmatpush1.bf16.msra.mxu0 0
        %2283 = vmatprep.subr.bf16.mxu0 0
        %2284 = vmatpush1.bf16.msra.mxu0 0
        %2285 = vmatprep.mubr.bf16.mxu0 0
        %2286 = vmatmul.mubr.bf16.gmra.mrb[0].mxu0 %v1514
        %v2287 = vpop.f32.mrb[0].mxu0
        %v2288 = vadd.f32 0.0, %v2287
        %v2289 = vpop.f32.mrb[0].mxu0
        %v2290 = vpop.f32.mrb[0].mxu0
        %v2291 = vadd.f32 0.0, %v2290
        %v2292 = vpop.f32.mrb[0].mxu0
        %2293 = vmatprep.mubr.bf16.mxu0 0
        %2294 = vmatmul.mubr.bf16.gmra.mrb[0].mxu0 %v1515
        %v2295 = vpop.f32.mrb[0].mxu0
        %v2296 = vadd.f32 0.0, %v2295
        %v2297 = vpop.f32.mrb[0].mxu0
        %v2298 = vpop.f32.mrb[0].mxu0
        %v2299 = vadd.f32 0.0, %v2298
        %v2300 = vpop.f32.mrb[0].mxu0
        %2301 = vmatprep.mubr.bf16.mxu0 0
        %2302 = vmatmul.mubr.bf16.gmra.mrb[0].mxu0 %v1516
        %v2303 = vpop.f32.mrb[0].mxu0
        %v2304 = vadd.f32 0.0, %v2303
        %v2305 = vpop.f32.mrb[0].mxu0
        %v2306 = vpop.f32.mrb[0].mxu0
        %v2307 = vadd.f32 0.0, %v2306
        %v2308 = vpop.f32.mrb[0].mxu0
        %2309 = vmatprep.mubr.bf16.mxu0 0
        %2310 = vmatmul.mubr.bf16.gmra.mrb[0].mxu0 %v1517
        %v2311 = vpop.f32.mrb[0].mxu0
        %v2312 = vadd.f32 0.0, %v2311
        %v2313 = vpop.f32.mrb[0].mxu0
        %v2314 = vpop.f32.mrb[0].mxu0
        %v2315 = vadd.f32 0.0, %v2314
        %v2316 = vpop.f32.mrb[0].mxu0
        %2317 = vmatprep.mubr.bf16.mxu0 0
        %2318 = vmatmul.mubr.bf16.gmra.mrb[0].mxu0 %v1518
        %v2319 = vpop.f32.mrb[0].mxu0
        %v2320 = vadd.f32 0.0, %v2319
        %v2321 = vpop.f32.mrb[0].mxu0
        %v2322 = vpop.f32.mrb[0].mxu0
        %v2323 = vadd.f32 0.0, %v2322
        %v2324 = vpop.f32.mrb[0].mxu0
        %2325 = vmatprep.mubr.bf16.mxu0 0
        %2326 = vmatmul.mubr.bf16.gmra.mrb[0].mxu0 %v1519
        %v2327 = vpop.f32.mrb[0].mxu0
        %v2328 = vadd.f32 0.0, %v2327
        %v2329 = vpop.f32.mrb[0].mxu0
        %v2330 = vpop.f32.mrb[0].mxu0
        %v2331 = vadd.f32 0.0, %v2330
        %v2332 = vpop.f32.mrb[0].mxu0
        %2333 = vmatprep.mubr.bf16.mxu0 0
        %2334 = vmatmul.mubr.bf16.gmra.mrb[0].mxu0 %v1520
        %v2335 = vpop.f32.mrb[0].mxu0
        %v2336 = vadd.f32 0.0, %v2335
        %v2337 = vpop.f32.mrb[0].mxu0
        %v2338 = vpop.f32.mrb[0].mxu0
        %v2339 = vadd.f32 0.0, %v2338
        %v2340 = vpop.f32.mrb[0].mxu0
        %2341 = vmatprep.mubr.bf16.mxu0 0
        %2342 = vmatmul.mubr.bf16.gmra.mrb[0].mxu0 %v1521
        %v2343 = vpop.f32.mrb[0].mxu0
        %v2344 = vadd.f32 0.0, %v2343
        %v2345 = vpop.f32.mrb[0].mxu0
        %v2346 = vpop.f32.mrb[0].mxu0
        %v2347 = vadd.f32 0.0, %v2346
        %v2348 = vpop.f32.mrb[0].mxu0
        %2349 = vdwg.mxu0
        %v2350 = vadd.f32 %v2127, %v2288
        %v2351 = vadd.f32 %v2130, %v2291
        %v2352 = vadd.f32 %v2135, %v2296
        %v2353 = vadd.f32 %v2138, %v2299
        %v2354 = vadd.f32 %v2143, %v2304
        %v2355 = vadd.f32 %v2146, %v2307
        %v2356 = vadd.f32 %v2151, %v2312
        %v2357 = vadd.f32 %v2154, %v2315
        %v2358 = vadd.f32 %v2159, %v2320
        %v2359 = vadd.f32 %v2162, %v2323
        %v2360 = vadd.f32 %v2167, %v2328
        %v2361 = vadd.f32 %v2170, %v2331
        %v2362 = vadd.f32 %v2175, %v2336
        %v2363 = vadd.f32 %v2178, %v2339
        %v2364 = vadd.f32 %v2183, %v2344
        %v2365 = vadd.f32 %v2186, %v2347
        %v2366 = vld [vmem:[%s13] sm:$0x1]
        %v2368 = vlaneseq
        %v2369 = vshrl.u32 %v2368, 7
        %v2370 = vsub.s32 0, %v2369
        %v2371 = vrot.slane %v2366, %v2370
        %v2373 = vadd.f32 %v2350, %v2371
        %v2374 = vadd.f32 %v2351, %v2371
        %v2375 = vadd.f32 %v2352, %v2371
        %v2376 = vadd.f32 %v2353, %v2371
        %v2377 = vadd.f32 %v2354, %v2371
        %v2378 = vadd.f32 %v2355, %v2371
        %v2379 = vadd.f32 %v2356, %v2371
        %v2380 = vadd.f32 %v2357, %v2371
        %v2381 = vadd.f32 %v2358, %v2371
        %v2382 = vadd.f32 %v2359, %v2371
        %v2383 = vadd.f32 %v2360, %v2371
        %v2384 = vadd.f32 %v2361, %v2371
        %v2385 = vadd.f32 %v2362, %v2371
        %v2386 = vadd.f32 %v2363, %v2371
        %v2387 = vadd.f32 %v2364, %v2371
        %v2388 = vadd.f32 %v2365, %v2371
        %v2389 = vmax.f32 %v2373, 0.0
        %v2390 = vmax.f32 %v2374, 0.0
        %v2391 = vmax.f32 %v2375, 0.0
        %v2392 = vmax.f32 %v2376, 0.0
        %v2393 = vmax.f32 %v2377, 0.0
        %v2394 = vmax.f32 %v2378, 0.0
        %v2395 = vmax.f32 %v2379, 0.0
        %v2396 = vmax.f32 %v2380, 0.0
        %v2397 = vmax.f32 %v2381, 0.0
        %v2398 = vmax.f32 %v2382, 0.0
        %v2399 = vmax.f32 %v2383, 0.0
        %v2400 = vmax.f32 %v2384, 0.0
        %v2401 = vmax.f32 %v2385, 0.0
        %v2402 = vmax.f32 %v2386, 0.0
        %v2403 = vmax.f32 %v2387, 0.0
        %v2404 = vmax.f32 %v2388, 0.0
        %v2405 = vpack.c.bf16 %v1852, %v1851
        %v2406 = vpack.c.bf16 %v1854, %v1853
        %v2407 = vpack.c.bf16 %v1856, %v1855
        %v2408 = vpack.c.bf16 %v1858, %v1857
        %v2409 = vpack.c.bf16 %v1860, %v1859
        %v2410 = vpack.c.bf16 %v1862, %v1861
        %v2411 = vpack.c.bf16 %v1864, %v1863
        %v2412 = vpack.c.bf16 %v1866, %v1865
        %v2421 = vunpack.c.l.b16 %v2405
        %v2422 = vunpack.c.h.b16 %v2405
        %v2423 = vunpack.c.l.b16 %v2406
        %v2424 = vunpack.c.h.b16 %v2406
        %v2425 = vunpack.c.l.b16 %v2407
        %v2426 = vunpack.c.h.b16 %v2407
        %v2427 = vunpack.c.l.b16 %v2408
        %v2428 = vunpack.c.h.b16 %v2408
        %v2429 = vunpack.c.l.b16 %v2409
        %v2430 = vunpack.c.h.b16 %v2409
        %v2431 = vunpack.c.l.b16 %v2410
        %v2432 = vunpack.c.h.b16 %v2410
        %v2433 = vunpack.c.l.b16 %v2411
        %v2434 = vunpack.c.h.b16 %v2411
        %v2435 = vunpack.c.l.b16 %v2412
        %v2436 = vunpack.c.h.b16 %v2412
        %v2437 = vpack.c.b16 %v2421, %v2421
        %v2438 = vpack.c.b16 %v2422, %v2422
        %v2439 = vpack.c.b16 %v2423, %v2423
        %v2440 = vpack.c.b16 %v2424, %v2424
        %v2441 = vpack.c.b16 %v2425, %v2425
        %v2442 = vpack.c.b16 %v2426, %v2426
        %v2443 = vpack.c.b16 %v2427, %v2427
        %v2444 = vpack.c.b16 %v2428, %v2428
        %v2445 = vpack.c.b16 %v2429, %v2429
        %v2446 = vpack.c.b16 %v2430, %v2430
        %v2447 = vpack.c.b16 %v2431, %v2431
        %v2448 = vpack.c.b16 %v2432, %v2432
        %v2449 = vpack.c.b16 %v2433, %v2433
        %v2450 = vpack.c.b16 %v2434, %v2434
        %v2451 = vpack.c.b16 %v2435, %v2435
        %v2452 = vpack.c.b16 %v2436, %v2436
        %2469 = vst [vmem:[%s841] sm:$0xf] %v2437
        %2470 = vst [vmem:[%s841 + $0x4] sm:$0xf] %v2438
        %2471 = vst [vmem:[%s841 + $0x8] sm:$0xf] %v2439
        %2472 = vst [vmem:[%s841 + $0xc] sm:$0xf] %v2440
        %2473 = vst [vmem:[%s841 + $0x10] sm:$0xf] %v2441
        %2474 = vst [vmem:[%s841 + $0x14] sm:$0xf] %v2442
        %2475 = vst [vmem:[%s841 + $0x18] sm:$0xf] %v2443
        %2476 = vst [vmem:[%s841 + $0x1c] sm:$0xf] %v2444
        %2477 = vst [vmem:[%s841 + $0x20] sm:$0xf] %v2445
        %2478 = vst [vmem:[%s841 + $0x24] sm:$0xf] %v2446
        %2479 = vst [vmem:[%s841 + $0x28] sm:$0xf] %v2447
        %2480 = vst [vmem:[%s841 + $0x2c] sm:$0xf] %v2448
        %2481 = vst [vmem:[%s841 + $0x30] sm:$0xf] %v2449
        %2482 = vst [vmem:[%s841 + $0x34] sm:$0xf] %v2450
        %2483 = vst [vmem:[%s841 + $0x38] sm:$0xf] %v2451
        %2484 = vst [vmem:[%s841 + $0x3c] sm:$0xf] %v2452
        %v2485 = vpack.c.bf16 %v2390, %v2389
        %v2486 = vpack.c.bf16 %v2392, %v2391
        %v2487 = vpack.c.bf16 %v2394, %v2393
        %v2488 = vpack.c.bf16 %v2396, %v2395
        %v2489 = vpack.c.bf16 %v2398, %v2397
        %v2490 = vpack.c.bf16 %v2400, %v2399
        %v2491 = vpack.c.bf16 %v2402, %v2401
        %v2492 = vpack.c.bf16 %v2404, %v2403
        %v2501 = vunpack.c.l.b16 %v2485
        %v2502 = vunpack.c.h.b16 %v2485
        %v2503 = vunpack.c.l.b16 %v2486
        %v2504 = vunpack.c.h.b16 %v2486
        %v2505 = vunpack.c.l.b16 %v2487
        %v2506 = vunpack.c.h.b16 %v2487
        %v2507 = vunpack.c.l.b16 %v2488
        %v2508 = vunpack.c.h.b16 %v2488
        %v2509 = vunpack.c.l.b16 %v2489
        %v2510 = vunpack.c.h.b16 %v2489
        %v2511 = vunpack.c.l.b16 %v2490
        %v2512 = vunpack.c.h.b16 %v2490
        %v2513 = vunpack.c.l.b16 %v2491
        %v2514 = vunpack.c.h.b16 %v2491
        %v2515 = vunpack.c.l.b16 %v2492
        %v2516 = vunpack.c.h.b16 %v2492
        %v2517 = vpack.c.b16 %v2501, %v2501
        %v2518 = vpack.c.b16 %v2502, %v2502
        %v2519 = vpack.c.b16 %v2503, %v2503
        %v2520 = vpack.c.b16 %v2504, %v2504
        %v2521 = vpack.c.b16 %v2505, %v2505
        %v2522 = vpack.c.b16 %v2506, %v2506
        %v2523 = vpack.c.b16 %v2507, %v2507
        %v2524 = vpack.c.b16 %v2508, %v2508
        %v2525 = vpack.c.b16 %v2509, %v2509
        %v2526 = vpack.c.b16 %v2510, %v2510
        %v2527 = vpack.c.b16 %v2511, %v2511
        %v2528 = vpack.c.b16 %v2512, %v2512
        %v2529 = vpack.c.b16 %v2513, %v2513
        %v2530 = vpack.c.b16 %v2514, %v2514
        %v2531 = vpack.c.b16 %v2515, %v2515
        %v2532 = vpack.c.b16 %v2516, %v2516
        %2549 = vst [vmem:[%s848] sm:$0xf] %v2517
        %2550 = vst [vmem:[%s848 + $0x4] sm:$0xf] %v2518
        %2551 = vst [vmem:[%s848 + $0x8] sm:$0xf] %v2519
        %2552 = vst [vmem:[%s848 + $0xc] sm:$0xf] %v2520
        %2553 = vst [vmem:[%s848 + $0x10] sm:$0xf] %v2521
        %2554 = vst [vmem:[%s848 + $0x14] sm:$0xf] %v2522
        %2555 = vst [vmem:[%s848 + $0x18] sm:$0xf] %v2523
        %2556 = vst [vmem:[%s848 + $0x1c] sm:$0xf] %v2524
        %2557 = vst [vmem:[%s848 + $0x20] sm:$0xf] %v2525
        %2558 = vst [vmem:[%s848 + $0x24] sm:$0xf] %v2526
        %2559 = vst [vmem:[%s848 + $0x28] sm:$0xf] %v2527
        %2560 = vst [vmem:[%s848 + $0x2c] sm:$0xf] %v2528
        %2561 = vst [vmem:[%s848 + $0x30] sm:$0xf] %v2529
        %2562 = vst [vmem:[%s848 + $0x34] sm:$0xf] %v2530
        %2563 = vst [vmem:[%s848 + $0x38] sm:$0xf] %v2531
        %2564 = vst [vmem:[%s848 + $0x3c] sm:$0xf] %v2532
        %p2565 = scmp.eq.s32.totalorder %s55, 0
        // Predicated region
        $region117: #{tpu_custom_call.1} parent=87 // pred_check
          %p2566 = pneg %p2565
        $region118: #{tpu_custom_call.1} parent=87 // pred_check_branch
          %2568 = sbr.rel (%p2566) target = $region120
        $region119: #{tpu_custom_call.1} parent=87 // pred_region
          %2569 = vst [vmem:[%s860] sm:$0x1] 0.0
        $region120: #{tpu_custom_call.1} parent=87 // pred_fallthru
          _
        %v2570 = vld [vmem:[%s860] sm:$0x1]
        %v2571 = vadd.f32 %v2389, %v2390
        %v2572 = vadd.f32 %v2571, %v2391
        %v2573 = vadd.f32 %v2572, %v2392
        %v2574 = vadd.f32 %v2573, %v2393
        %v2575 = vadd.f32 %v2574, %v2394
        %v2576 = vadd.f32 %v2575, %v2395
        %v2577 = vadd.f32 %v2576, %v2396
        %v2578 = vadd.f32 %v2577, %v2397
        %v2579 = vadd.f32 %v2578, %v2398
        %v2580 = vadd.f32 %v2579, %v2399
        %v2581 = vadd.f32 %v2580, %v2400
        %v2582 = vadd.f32 %v2581, %v2401
        %v2583 = vadd.f32 %v2582, %v2402
        %v2584 = vadd.f32 %v2583, %v2403
        %v2585 = vadd.f32 %v2584, %v2404
        %v2586 = vrot.slane %v2585, 4
        %v2587 = vadd.f32 %v2585, %v2586
        %v2588 = vrot.slane %v2587, 2
        %v2589 = vadd.f32 %v2587, %v2588
        %v2590 = vrot.slane %v2589, 1
        %v2591 = vadd.f32 %v2589, %v2590
        %v2592 = vadd.f32 %v2570, %v2591
        %2593 = vst [vmem:[%s860] sm:$0x1] %v2592
        // Predicated region
        $region121: #{tpu_custom_call.1} parent=87 // pred_check
          %p2594 = pneg %p2565
        $region122: #{tpu_custom_call.1} parent=87 // pred_check_branch
          %2596 = sbr.rel (%p2594) target = $region124
        $region123: #{tpu_custom_call.1} parent=87 // pred_region
          %2597 = vst [vmem:[%s866] sm:$0x1] 0.0
          %2598 = vst [vmem:[%s872] sm:$0x1] 0.0
        $region124: #{tpu_custom_call.1} parent=87 // pred_fallthru
          _
        %p2599 = scmp.lt.s32.totalorder %s54, 2
        // Predicated region
        $region125: #{tpu_custom_call.1} parent=87 // pred_check
          %p2600 = pneg %p2599
        $region126: #{tpu_custom_call.1} parent=87 // pred_check_branch
          %2602 = sbr.rel (%p2600) target = $region128
        $region127: #{tpu_custom_call.1} parent=87 // pred_region
          %v2603 = vld [vmem:[%s891] sm:$0xff]
          %v2604 = vld [vmem:[%s891 + $0x8] sm:$0xff]
          %v2605 = vld [vmem:[%s891 + $0x10] sm:$0xff]
          %v2606 = vld [vmem:[%s891 + $0x18] sm:$0xff]
          %v2607 = vld [vmem:[%s891 + $0x20] sm:$0xff]
          %v2608 = vld [vmem:[%s891 + $0x28] sm:$0xff]
          %v2609 = vld [vmem:[%s891 + $0x30] sm:$0xff]
          %v2610 = vld [vmem:[%s891 + $0x38] sm:$0xff]
          %v2611 = vld [vmem:[%s891 + $0x40] sm:$0xff]
          %v2612 = vld [vmem:[%s891 + $0x48] sm:$0xff]
          %v2613 = vld [vmem:[%s891 + $0x50] sm:$0xff]
          %v2614 = vld [vmem:[%s891 + $0x58] sm:$0xff]
          %v2615 = vld [vmem:[%s891 + $0x60] sm:$0xff]
          %v2616 = vld [vmem:[%s891 + $0x68] sm:$0xff]
          %v2617 = vld [vmem:[%s891 + $0x70] sm:$0xff]
          %v2618 = vld [vmem:[%s891 + $0x78] sm:$0xff]
          %v2619 = vsub.f32 %v1851, %v2603
          %v2620 = vsub.f32 %v1852, %v2604
          %v2621 = vsub.f32 %v1853, %v2605
          %v2622 = vsub.f32 %v1854, %v2606
          %v2623 = vsub.f32 %v1855, %v2607
          %v2624 = vsub.f32 %v1856, %v2608
          %v2625 = vsub.f32 %v1857, %v2609
          %v2626 = vsub.f32 %v1858, %v2610
          %v2627 = vsub.f32 %v1859, %v2611
          %v2628 = vsub.f32 %v1860, %v2612
          %v2629 = vsub.f32 %v1861, %v2613
          %v2630 = vsub.f32 %v1862, %v2614
          %v2631 = vsub.f32 %v1863, %v2615
          %v2632 = vsub.f32 %v1864, %v2616
          %v2633 = vsub.f32 %v1865, %v2617
          %v2634 = vsub.f32 %v1866, %v2618
          %v2635 = vld [vmem:[%s866] sm:$0x1]
          %v2636 = vmul.f32 %v2619, %v2619
          %v2637 = vmul.f32 %v2620, %v2620
          %v2638 = vmul.f32 %v2621, %v2621
          %v2639 = vmul.f32 %v2622, %v2622
          %v2640 = vmul.f32 %v2623, %v2623
          %v2641 = vmul.f32 %v2624, %v2624
          %v2642 = vmul.f32 %v2625, %v2625
          %v2643 = vmul.f32 %v2626, %v2626
          %v2644 = vmul.f32 %v2627, %v2627
          %v2645 = vmul.f32 %v2628, %v2628
          %v2646 = vmul.f32 %v2629, %v2629
          %v2647 = vmul.f32 %v2630, %v2630
          %v2648 = vmul.f32 %v2631, %v2631
          %v2649 = vmul.f32 %v2632, %v2632
          %v2650 = vmul.f32 %v2633, %v2633
          %v2651 = vmul.f32 %v2634, %v2634
          %v2652 = vadd.f32 %v2636, %v2637
          %v2653 = vadd.f32 %v2652, %v2638
          %v2654 = vadd.f32 %v2653, %v2639
          %v2655 = vadd.f32 %v2654, %v2640
          %v2656 = vadd.f32 %v2655, %v2641
          %v2657 = vadd.f32 %v2656, %v2642
          %v2658 = vadd.f32 %v2657, %v2643
          %v2659 = vadd.f32 %v2658, %v2644
          %v2660 = vadd.f32 %v2659, %v2645
          %v2661 = vadd.f32 %v2660, %v2646
          %v2662 = vadd.f32 %v2661, %v2647
          %v2663 = vadd.f32 %v2662, %v2648
          %v2664 = vadd.f32 %v2663, %v2649
          %v2665 = vadd.f32 %v2664, %v2650
          %v2666 = vadd.f32 %v2665, %v2651
          %v2667 = vrot.slane %v2666, 4
          %v2668 = vadd.f32 %v2666, %v2667
          %v2669 = vrot.slane %v2668, 2
          %v2670 = vadd.f32 %v2668, %v2669
          %v2671 = vrot.slane %v2670, 1
          %v2672 = vadd.f32 %v2670, %v2671
          %v2673 = vadd.f32 %v2635, %v2672
          %2674 = vst [vmem:[%s866] sm:$0x1] %v2673
          %v2675 = vld [vmem:[%s872] sm:$0x1]
          %v2676 = vand.u32 2147483647, %v2619
          %v2677 = vand.u32 2147483647, %v2620
          %v2678 = vand.u32 2147483647, %v2621
          %v2679 = vand.u32 2147483647, %v2622
          %v2680 = vand.u32 2147483647, %v2623
          %v2681 = vand.u32 2147483647, %v2624
          %v2682 = vand.u32 2147483647, %v2625
          %v2683 = vand.u32 2147483647, %v2626
          %v2684 = vand.u32 2147483647, %v2627
          %v2685 = vand.u32 2147483647, %v2628
          %v2686 = vand.u32 2147483647, %v2629
          %v2687 = vand.u32 2147483647, %v2630
          %v2688 = vand.u32 2147483647, %v2631
          %v2689 = vand.u32 2147483647, %v2632
          %v2690 = vand.u32 2147483647, %v2633
          %v2691 = vand.u32 2147483647, %v2634
          %v2692 = vadd.f32 %v2676, %v2677
          %v2693 = vadd.f32 %v2692, %v2678
          %v2694 = vadd.f32 %v2693, %v2679
          %v2695 = vadd.f32 %v2694, %v2680
          %v2696 = vadd.f32 %v2695, %v2681
          %v2697 = vadd.f32 %v2696, %v2682
          %v2698 = vadd.f32 %v2697, %v2683
          %v2699 = vadd.f32 %v2698, %v2684
          %v2700 = vadd.f32 %v2699, %v2685
          %v2701 = vadd.f32 %v2700, %v2686
          %v2702 = vadd.f32 %v2701, %v2687
          %v2703 = vadd.f32 %v2702, %v2688
          %v2704 = vadd.f32 %v2703, %v2689
          %v2705 = vadd.f32 %v2704, %v2690
          %v2706 = vadd.f32 %v2705, %v2691
          %v2707 = vrot.slane %v2706, 4
          %v2708 = vadd.f32 %v2706, %v2707
          %v2709 = vrot.slane %v2708, 2
          %v2710 = vadd.f32 %v2708, %v2709
          %v2711 = vrot.slane %v2710, 1
          %v2712 = vadd.f32 %v2710, %v2711
          %v2713 = vadd.f32 %v2675, %v2712
          %2714 = vst [vmem:[%s872] sm:$0x1] %v2713
        $region128: #{tpu_custom_call.1} parent=87 // pred_fallthru
          _
        %p2715 = scmp.eq.s32.totalorder %s55, 1
        // Predicated region
        $region129: #{tpu_custom_call.1} parent=87 // pred_check
          %p2716 = pneg %p2715
        $region130: #{tpu_custom_call.1} parent=87 // pred_check_branch
          %2718 = sbr.rel (%p2716) target = $region132
        $region131: #{tpu_custom_call.1} parent=87 // pred_region
          %v2719 = vld [vmem:[%s860] sm:$0x1]
          %v2720 = vmul.f32 %v2719, 0.00390625
          %2721 = vst [vmem:[%s860] sm:$0x1] %v2720
          %v2722 = vpack.c.bf16 %v2720, %v2720
          %v2723 = vld [vmem:[#allocation13] sm:$0xf]
          %v2724 = vld [vmem:[#allocation13 + $0x4] sm:$0xf]
          %v2725 = vld [vmem:[#allocation13 + $0x8] sm:$0xf]
          %v2726 = vld [vmem:[#allocation13 + $0xc] sm:$0xf]
          %v2727 = vld [vmem:[#allocation13 + $0x10] sm:$0xf]
          %v2728 = vld [vmem:[#allocation13 + $0x14] sm:$0xf]
          %v2729 = vld [vmem:[#allocation13 + $0x18] sm:$0xf]
          %v2730 = vld [vmem:[#allocation13 + $0x1c] sm:$0xf]
          %v2731 = vld [vmem:[#allocation13 + $0x20] sm:$0xf]
          %v2732 = vld [vmem:[#allocation13 + $0x24] sm:$0xf]
          %v2733 = vld [vmem:[#allocation13 + $0x28] sm:$0xf]
          %v2734 = vld [vmem:[#allocation13 + $0x2c] sm:$0xf]
          %v2735 = vld [vmem:[#allocation13 + $0x30] sm:$0xf]
          %v2736 = vld [vmem:[#allocation13 + $0x34] sm:$0xf]
          %v2737 = vld [vmem:[#allocation13 + $0x38] sm:$0xf]
          %v2738 = vld [vmem:[#allocation13 + $0x3c] sm:$0xf]
          %v2739 = vld [vmem:[%s15] sm:$0x1]
          %v2756 = vunpack.c.l.b16 %v2723
          %v2757 = vunpack.c.l.b16 %v2724
          %v2758 = vunpack.c.l.b16 %v2725
          %v2759 = vunpack.c.l.b16 %v2726
          %v2760 = vunpack.c.l.b16 %v2727
          %v2761 = vunpack.c.l.b16 %v2728
          %v2762 = vunpack.c.l.b16 %v2729
          %v2763 = vunpack.c.l.b16 %v2730
          %v2764 = vunpack.c.l.b16 %v2731
          %v2765 = vunpack.c.l.b16 %v2732
          %v2766 = vunpack.c.l.b16 %v2733
          %v2767 = vunpack.c.l.b16 %v2734
          %v2768 = vunpack.c.l.b16 %v2735
          %v2769 = vunpack.c.l.b16 %v2736
          %v2770 = vunpack.c.l.b16 %v2737
          %v2771 = vunpack.c.l.b16 %v2738
          %v2772 = vpack.c.b16 %v2757, %v2756
          %v2773 = vpack.c.b16 %v2759, %v2758
          %v2774 = vpack.c.b16 %v2761, %v2760
          %v2775 = vpack.c.b16 %v2763, %v2762
          %v2776 = vpack.c.b16 %v2765, %v2764
          %v2777 = vpack.c.b16 %v2767, %v2766
          %v2778 = vpack.c.b16 %v2769, %v2768
          %v2779 = vpack.c.b16 %v2771, %v2770
          %2788 = vmatprep.subr.bf16.mxu0 0
          %2789 = vmatpush1.bf16.msra.mxu0 %v2772
          %2790 = vmatprep.subr.bf16.mxu0 0
          %2791 = vmatpush1.bf16.msra.mxu0 %v2773
          %2792 = vmatprep.subr.bf16.mxu0 0
          %2793 = vmatpush1.bf16.msra.mxu0 %v2774
          %2794 = vmatprep.subr.bf16.mxu0 0
          %2795 = vmatpush1.bf16.msra.mxu0 %v2775
          %2796 = vmatprep.subr.bf16.mxu0 0
          %2797 = vmatpush1.bf16.msra.mxu0 %v2776
          %2798 = vmatprep.subr.bf16.mxu0 0
          %2799 = vmatpush1.bf16.msra.mxu0 %v2777
          %2800 = vmatprep.subr.bf16.mxu0 0
          %2801 = vmatpush1.bf16.msra.mxu0 %v2778
          %2802 = vmatprep.subr.bf16.mxu0 0
          %2803 = vmatpush1.bf16.msra.mxu0 %v2779
          %2804 = vmatprep.subr.bf16.mxu0 0
          %2805 = vmatpush1.bf16.msra.mxu0 0
          %2806 = vmatprep.subr.bf16.mxu0 0
          %2807 = vmatpush1.bf16.msra.mxu0 0
          %2808 = vmatprep.subr.bf16.mxu0 0
          %2809 = vmatpush1.bf16.msra.mxu0 0
          %2810 = vmatprep.subr.bf16.mxu0 0
          %2811 = vmatpush1.bf16.msra.mxu0 0
          %2812 = vmatprep.subr.bf16.mxu0 0
          %2813 = vmatpush1.bf16.msra.mxu0 0
          %2814 = vmatprep.subr.bf16.mxu0 0
          %2815 = vmatpush1.bf16.msra.mxu0 0
          %2816 = vmatprep.subr.bf16.mxu0 0
          %2817 = vmatpush1.bf16.msra.mxu0 0
          %2818 = vmatprep.subr.bf16.mxu0 0
          %2819 = vmatpush1.bf16.msra.mxu0 0
          %2820 = vmatprep.mubr.bf16.mxu0 0
          %2821 = vmatmul.mubr.bf16.gmra.mrb[0].mxu0 %v2722
          %v2822 = vpop.f32.mrb[0].mxu0
          %v2823 = vadd.f32 %v2739, %v2822
          %v2824 = vpop.f32.mrb[0].mxu0
          %v2825 = vpop.f32.mrb[0].mxu0
          %v2826 = vpop.f32.mrb[0].mxu0
          %2827 = vdwg.mxu0
          %v2828 = vmax.f32 %v2823, 0.0
          %2829 = vst [vmem:[%s854] sm:$0x1] %v2828
        $region132: #{tpu_custom_call.1} parent=87 // pred_fallthru
          _
        %s2830 = sand.u32 %s443, 1
        %s2831 = scalar_lea.sflag [#allocation4], %s2830
        %s2832 = sand.u32 %s443, 1
        %s2833 = smul.addr %s2832, 64
        %s2834 = scalar_lea.vmem [#allocation14], %s2833
        %s2835 = sand.u32 %s50, 1
        %s2836 = scalar_lea.sflag [#allocation16], %s2835
        %s2837 = sand.u32 %s471, 1
        %s2838 = smul.addr %s2837, 64
        %s2839 = scalar_lea.vmem [#allocation15], %s2838
        %s2840 = sand.u32 %s50, 1
        %s2841 = scalar_lea.sflag [#allocation16], %s2840
        %s2842 = sand.u32 %s497, 1
        %s2843 = scalar_lea.vmem [#allocation17], %s2842
        %s2844 = sand.u32 %s50, 1
        %s2845 = scalar_lea.sflag [#allocation19], %s2844
        %s2846 = sand.u32 %s523, 1
        %s2847 = scalar_lea.vmem [#allocation18], %s2846
        %s2848 = sand.u32 %s50, 1
        %s2849 = scalar_lea.sflag [#allocation19], %s2848
        %s2850 = sand.u32 %s549, 1
        %s2851 = scalar_lea.vmem [#allocation20], %s2850
        %s2852 = sand.u32 %s575, 1
        %s2853 = scalar_lea.sflag [#allocation22], %s2852
        %s2854 = sand.u32 %s575, 1
        %s2855 = scalar_lea.vmem [#allocation21], %s2854
        // Predicated region
        $region133: #{tpu_custom_call.1} parent=87 // pred_check
          %p2856 = pneg %p453
        $region134: #{tpu_custom_call.1} parent=87 // pred_check_branch
          %2858 = sbr.rel (%p2856) target = $region136
        $region135: #{tpu_custom_call.1} parent=87 // pred_region
          %s2859 = smul.u32 16, %s55
          %s2861 = ssub.s32 1024, 1024
          %2862 = vsyncadd %s2831, %s2861
          %s2863 = smul.addr %s54, 32
          %s2864 = sadd.s32 %s2859, %s2863
          %s2865 = smul.addr %s2864, 64
          %s2866 = scalar_lea.hbm %s17, %s2865
          %s2867 = sshll.u32 %s2834, 4
          %s2868 = int_to_ptr.vmem [resolvable:$true] %s2867
          %2873 = dma.vmem_to_hbm [thread:$0]  %s2868, 1024, %s2866, %s2831, 64, 64, 4
        $region136: #{tpu_custom_call.1} parent=87 // pred_fallthru
          _
        // Predicated region
        $region137: #{tpu_custom_call.1} parent=87 // pred_check
          %p2874 = pneg %p481
        $region138: #{tpu_custom_call.1} parent=87 // pred_check_branch
          %2876 = sbr.rel (%p2874) target = $region140
        $region139: #{tpu_custom_call.1} parent=87 // pred_region
          %s2877 = smul.u32 16, %s55
          %s2879 = ssub.s32 1024, 1024
          %2880 = vsyncadd %s2836, %s2879
          %s2881 = smul.addr %s54, 32
          %s2882 = sadd.s32 %s2877, %s2881
          %s2883 = smul.addr %s2882, 64
          %s2884 = scalar_lea.hbm %s18, %s2883
          %s2885 = sshll.u32 %s2839, 4
          %s2886 = int_to_ptr.vmem [resolvable:$true] %s2885
          %2891 = dma.vmem_to_hbm [thread:$0]  %s2886, 1024, %s2884, %s2836, 64, 64, 4
        $region140: #{tpu_custom_call.1} parent=87 // pred_fallthru
          _
        // Predicated region
        $region141: #{tpu_custom_call.1} parent=87 // pred_check
          %p2892 = pneg %p507
        $region142: #{tpu_custom_call.1} parent=87 // pred_check_branch
          %2894 = sbr.rel (%p2892) target = $region144
        $region143: #{tpu_custom_call.1} parent=87 // pred_region
          %s2896 = ssub.s32 16, 16
          %2897 = vsyncadd %s2841, %s2896
          %s2898 = smul.addr %s54, 16
          %s2899 = scalar_lea.hbm %s19, %s2898
          %s2901 = sshll.u32 %s2843, 4
          %s2902 = int_to_ptr.vmem [resolvable:$true] %s2901
          %2904 = dma.vmem_to_hbm [thread:$0]  %s2902, 16, %s2899, %s2841
        $region144: #{tpu_custom_call.1} parent=87 // pred_fallthru
          _
        // Predicated region
        $region145: #{tpu_custom_call.1} parent=87 // pred_check
          %p2905 = pneg %p533
        $region146: #{tpu_custom_call.1} parent=87 // pred_check_branch
          %2907 = sbr.rel (%p2905) target = $region148
        $region147: #{tpu_custom_call.1} parent=87 // pred_region
          %s2909 = ssub.s32 16, 16
          %2910 = vsyncadd %s2845, %s2909
          %s2911 = smul.addr %s54, 16
          %s2912 = scalar_lea.hbm %s20, %s2911
          %s2914 = sshll.u32 %s2847, 4
          %s2915 = int_to_ptr.vmem [resolvable:$true] %s2914
          %2917 = dma.vmem_to_hbm [thread:$0]  %s2915, 16, %s2912, %s2845
        $region148: #{tpu_custom_call.1} parent=87 // pred_fallthru
          _
        // Predicated region
        $region149: #{tpu_custom_call.1} parent=87 // pred_check
          %p2918 = pneg %p559
        $region150: #{tpu_custom_call.1} parent=87 // pred_check_branch
          %2920 = sbr.rel (%p2918) target = $region152
        $region151: #{tpu_custom_call.1} parent=87 // pred_region
          %s2922 = ssub.s32 16, 16
          %2923 = vsyncadd %s2849, %s2922
          %s2924 = smul.addr %s54, 16
          %s2925 = scalar_lea.hbm %s21, %s2924
          %s2927 = sshll.u32 %s2851, 4
          %s2928 = int_to_ptr.vmem [resolvable:$true] %s2927
          %2930 = dma.vmem_to_hbm [thread:$0]  %s2928, 16, %s2925, %s2849
        $region152: #{tpu_custom_call.1} parent=87 // pred_fallthru
          _
        // Predicated region
        $region153: #{tpu_custom_call.1} parent=87 // pred_check
          %p2931 = pneg %p585
        $region154: #{tpu_custom_call.1} parent=87 // pred_check_branch
          %2933 = sbr.rel (%p2931) target = $region156
        $region155: #{tpu_custom_call.1} parent=87 // pred_region
          %s2935 = ssub.s32 16, 16
          %2936 = vsyncadd %s2853, %s2935
          %s2937 = smul.addr %s54, 16
          %s2938 = scalar_lea.hbm %s22, %s2937
          %s2940 = sshll.u32 %s2855, 4
          %s2941 = int_to_ptr.vmem [resolvable:$true] %s2940
          %2943 = dma.vmem_to_hbm [thread:$0]  %s2941, 16, %s2938, %s2853
        $region156: #{tpu_custom_call.1} parent=87 // pred_fallthru
          _
      $region88: #{tpu_custom_call.1} parent=5 // pred_fallthru
        _
      %p2944 = scmp.le.s32.totalorder 2, %s45
      // Predicated region
      $region157: #{tpu_custom_call.1} parent=5 // pred_check
        %p2945 = pneg %p2944
      $region158: #{tpu_custom_call.1} parent=5 // pred_check_branch
        %2947 = sbr.rel (%p2945) target = $region160
      $region159: #{tpu_custom_call.1} parent=5 // pred_region
        %s2948 = ssub.s32 %s45, 2
        // Predicated region
        $region161: #{tpu_custom_call.1} parent=159 // pred_check
          %p2949 = pneg %p459
        $region162: #{tpu_custom_call.1} parent=159 // pred_check_branch
          %2951 = sbr.rel (%p2949) target = $region164
        $region163: #{tpu_custom_call.1} parent=159 // pred_region
          %s2952 = sand.u32 %s444, 1
          %s2953 = scalar_lea.sflag [#allocation4], %s2952
          %s2954 = sand.u32 %s444, 1
          %s2955 = smul.addr %s2954, 64
          %s2956 = scalar_lea.vmem [#allocation14], %s2955
          %2957 = dma.done %s2953, 1024
        $region164: #{tpu_custom_call.1} parent=159 // pred_fallthru
          _
        // Predicated region
        $region165: #{tpu_custom_call.1} parent=159 // pred_check
          %p2958 = pneg %p487
        $region166: #{tpu_custom_call.1} parent=159 // pred_check_branch
          %2960 = sbr.rel (%p2958) target = $region168
        $region167: #{tpu_custom_call.1} parent=159 // pred_region
          %s2961 = sand.u32 %s51, 1
          %s2962 = scalar_lea.sflag [#allocation16], %s2961
          %s2963 = sand.u32 %s472, 1
          %s2964 = smul.addr %s2963, 64
          %s2965 = scalar_lea.vmem [#allocation15], %s2964
          %2966 = dma.done %s2962, 1024
        $region168: #{tpu_custom_call.1} parent=159 // pred_fallthru
          _
        // Predicated region
        $region169: #{tpu_custom_call.1} parent=159 // pred_check
          %p2967 = pneg %p513
        $region170: #{tpu_custom_call.1} parent=159 // pred_check_branch
          %2969 = sbr.rel (%p2967) target = $region172
        $region171: #{tpu_custom_call.1} parent=159 // pred_region
          %s2970 = sand.u32 %s51, 1
          %s2971 = scalar_lea.sflag [#allocation16], %s2970
          %s2972 = sand.u32 %s498, 1
          %s2973 = scalar_lea.vmem [#allocation17], %s2972
          %2974 = dma.done %s2971, 16
        $region172: #{tpu_custom_call.1} parent=159 // pred_fallthru
          _
        // Predicated region
        $region173: #{tpu_custom_call.1} parent=159 // pred_check
          %p2975 = pneg %p539
        $region174: #{tpu_custom_call.1} parent=159 // pred_check_branch
          %2977 = sbr.rel (%p2975) target = $region176
        $region175: #{tpu_custom_call.1} parent=159 // pred_region
          %s2978 = sand.u32 %s51, 1
          %s2979 = scalar_lea.sflag [#allocation19], %s2978
          %s2980 = sand.u32 %s524, 1
          %s2981 = scalar_lea.vmem [#allocation18], %s2980
          %2982 = dma.done %s2979, 16
        $region176: #{tpu_custom_call.1} parent=159 // pred_fallthru
          _
        // Predicated region
        $region177: #{tpu_custom_call.1} parent=159 // pred_check
          %p2983 = pneg %p565
        $region178: #{tpu_custom_call.1} parent=159 // pred_check_branch
          %2985 = sbr.rel (%p2983) target = $region180
        $region179: #{tpu_custom_call.1} parent=159 // pred_region
          %s2986 = sand.u32 %s51, 1
          %s2987 = scalar_lea.sflag [#allocation19], %s2986
          %s2988 = sand.u32 %s550, 1
          %s2989 = scalar_lea.vmem [#allocation20], %s2988
          %2990 = dma.done %s2987, 16
        $region180: #{tpu_custom_call.1} parent=159 // pred_fallthru
          _
        // Predicated region
        $region181: #{tpu_custom_call.1} parent=159 // pred_check
          %p2991 = pneg %p591
        $region182: #{tpu_custom_call.1} parent=159 // pred_check_branch
          %2993 = sbr.rel (%p2991) target = $region184
        $region183: #{tpu_custom_call.1} parent=159 // pred_region
          %s2994 = sand.u32 %s576, 1
          %s2995 = scalar_lea.sflag [#allocation22], %s2994
          %s2996 = sand.u32 %s576, 1
          %s2997 = scalar_lea.vmem [#allocation21], %s2996
          %2998 = dma.done %s2995, 16
        $region184: #{tpu_custom_call.1} parent=159 // pred_fallthru
          _
      $region160: #{tpu_custom_call.1} parent=5 // pred_fallthru
        _
    $region6: #{tpu_custom_call.1} parent=1 // loop_footer
      %s49 = sadd.s32 1, %s45
    $region7: #{tpu_custom_call.1} parent=1 // loop_footer_branch
      %44 = sbr.rel target = $region3
    $region8: #{tpu_custom_call.1} parent=1 // loop_exit
      _
    %2999 = vsyncpa [#allocation3], 1
    %s3000 = scalar_lea.sflag [#allocation3], 1
    %3001 = vsyncpa %s3000, 1
    %3002 = vsyncpa [#allocation6], 1
    %3003 = vsyncpa [#allocation9], 1
    %3004 = vsyncpa [#allocation12], 1
    %3005 = vsyncpa [#allocation4], 1
    %s3006 = scalar_lea.sflag [#allocation4], 1
    %3007 = vsyncpa %s3006, 1
    %3008 = vsyncpa [#allocation16], 1
    %s3009 = scalar_lea.sflag [#allocation16], 1
    %3010 = vsyncpa %s3009, 1
    %3011 = vsyncpa [#allocation19], 1
    %s3012 = scalar_lea.sflag [#allocation19], 1
    %3013 = vsyncpa %s3012, 1
    %3014 = vsyncpa [#allocation22], 1
    %s3015 = scalar_lea.sflag [#allocation22], 1
    %3016 = vsyncpa %s3015, 1

</llo_original>
